<compile_context>
chip_gen: v7x
topology: tpu7x:2x2x1
jax: 0.10.0
libtpu: 0.0.40
codegen_flags: <defaults>
</compile_context>

<pallas_src>
import functools
import math

import jax
import jax.numpy as jnp
from jax.experimental import pallas as pl
from jax.experimental.pallas import tpu as pltpu


# ----------------------------------------------------------------------------
# In-kernel building blocks (traced inside the single fused Pallas kernel)
# ----------------------------------------------------------------------------
def _conv_taps(xb, width):
    """(Cin, H*W) bf16 tile of ONE image -> (9*Cin, H*W) bf16 3x3 tap stack.

    Row (a*3 + b)*Cin + ci holds channel ci shifted by (dh, dw) = (a-1, b-1)
    with 'same' zero padding.  Row over/underflow lands in a (W+1)-wide zero
    pad of the flat spatial axis; column wrap is killed with a bitwise select.
    """
    cin, hw = xb.shape
    w = width
    zpad = jnp.zeros((cin, w + 1), xb.dtype)
    xpad = jnp.concatenate([zpad, xb, zpad], axis=1)         # (Cin, HW + 2W + 2)

    col = jax.lax.broadcasted_iota(jnp.int32, (1, hw), 1) % w
    keep_l = col > 0                                         # valid for dw = -1
    keep_r = col < (w - 1)                                   # valid for dw = +1

    taps = []
    for a in range(3):            # dh = a - 1
        for b in range(3):        # dw = b - 1
            xs = xpad[:, a * w + b: a * w + b + hw]
            if b == 0:
                xs = jnp.where(keep_l, xs, jnp.zeros_like(xs))
            elif b == 2:
                xs = jnp.where(keep_r, xs, jnp.zeros_like(xs))
            taps.append(xs)
    return jnp.concatenate(taps, axis=0)                     # (9*Cin, HW)


def _conv3x3_bn_act(x, w_ref, b_ref, nb, width, act):
    """3x3 'same' conv (== ConvTranspose2d k3 s1 p1) + folded-BN bias + act.

    x:      (Cin, nb*H*W) bf16, nb images lane-concatenated.
    w_ref:  (Cout, 9*Cin) bf16 ref, BatchNorm scale folded in.
    b_ref:  (Cout, 1) f32 ref (conv bias + BN shift).
    Returns (Cout, nb*H*W): bf16 for act='relu', f32 for act='sigmoid'.
    """
    hw = x.shape[1] // nb
    # TODO(synk): on v5e accumulate three K=3*Cin matmuls instead of
    # materializing the full (9*Cin, nb*H*W) tap stack (single vst slot there).
    stacks = [_conv_taps(x[:, b * hw:(b + 1) * hw], width) for b in range(nb)]
    xstack = jnp.concatenate(stacks, axis=1)                 # (9*Cin, nb*HW)
    y = jnp.dot(w_ref[...], xstack,
                preferred_element_type=jnp.float32)          # f32 accumulate
    y = y + b_ref[...]
    if act == "relu":
        return jnp.maximum(y, 0.0).astype(jnp.bfloat16)
    # sigmoid(y) = 0.5*(tanh(y/2) + 1): tanh goes to the otherwise-idle EUP.
    return 0.5 * (jnp.tanh(0.5 * y) + 1.0)


def _upsample2x(x, nb, h, w, awt_ref, hblend):
    """Separable bilinear x2 (align_corners=True) on lane-flattened images.

    x:        (C, nb*H*W) bf16.
    awt_ref:  (W, 2W) bf16 ref = A_w^T (1-D width-interp matrix, transposed).
    hblend:   host tuple of (h0, h1, frac) per output row (height interp).
    Returns   (C, nb*2H*2W) bf16.

    Width pass: gather the nb*H image rows into a (nb*H*C, W) stack via static
    lane slices + a sublane concat (no lane-dim reshape) and apply ONE K=W
    matmul.  Height pass: each of the 2H output rows is a 2-row scalar-weight
    blend (VPU), assembled back to the lane-flattened layout by a lane concat.
    """
    c = x.shape[0]
    hw = h * w

    rows = []
    for b in range(nb):
        for r in range(h):
            s = b * hw + r * w
            rows.append(x[:, s:s + w])                       # (C, W)
    stack = jnp.concatenate(rows, axis=0)                    # (nb*H*C, W)
    wide = jnp.dot(stack, awt_ref[...],
                   preferred_element_type=jnp.float32)
    wide = wide.astype(jnp.bfloat16)                         # (nb*H*C, 2W)

    # TODO(synk): for large H, replace this unrolled blend with a rolled loop /
    # tiled operator to keep trace size bounded.
    out_imgs = []
    for b in range(nb):
        base = b * h * c
        pieces = []
        for (h0, h1, f) in hblend:
            r0 = wide[base + h0 * c: base + (h0 + 1) * c, :]
            if f == 0.0:
                pieces.append(r0)
            else:
                r1 = wide[base + h1 * c: base + (h1 + 1) * c, :]
                pieces.append((1.0 - f) * r0 + f * r1)
        out_imgs.append(jnp.concatenate(pieces, axis=1))     # (C, 2H*2W)
    return jnp.concatenate(out_imgs, axis=1)                 # (C, nb*2H*2W)


def _decode_kernel(x_ref, w1_ref, b1_ref, a1_ref, w2_ref, b2_ref, a2_ref,
                   w3_ref, b3_ref, o_ref, *, nb, h0, w0, hb1, hb2):
    """Whole DecodeModule for one batch tile, fully VMEM/vreg resident."""
    hw_out = 16 * h0 * w0
    x = jnp.concatenate([x_ref[b] for b in range(nb)], axis=1)    # (C0, nb*H0*W0)
    h = _conv3x3_bn_act(x, w1_ref, b1_ref, nb, w0, "relu")         # decode1
    h = _upsample2x(h, nb, h0, w0, a1_ref, hb1)                    # bilinear x2
    h = _conv3x3_bn_act(h, w2_ref, b2_ref, nb, 2 * w0, "relu")     # decode2
    h = _upsample2x(h, nb, 2 * h0, 2 * w0, a2_ref, hb2)            # bilinear x2
    h = _conv3x3_bn_act(h, w3_ref, b3_ref, nb, 4 * w0, "sigmoid")  # decode3
    for b in range(nb):
        o_ref[b] = h[:, b * hw_out:(b + 1) * hw_out]               # (1, 16*H0*W0)


# ----------------------------------------------------------------------------
# Host-side constants (interpolation operators, blend weights, weight packing)
# ----------------------------------------------------------------------------
def _interp_matrix_1d(out_size, in_size):
    """Bilinear (align_corners=True) 1-D interpolation matrix (out, in)."""
    if in_size == 1:
        return jnp.ones((out_size, 1), jnp.float32)
    i = jnp.arange(out_size, dtype=jnp.float32)
    src = i * (in_size - 1) / (out_size - 1)
    i0 = jnp.clip(jnp.floor(src).astype(jnp.int32), 0, in_size - 2)
    frac = src - i0.astype(jnp.float32)
    eye = jnp.eye(in_size, dtype=jnp.float32)
    return (1.0 - frac)[:, None] * eye[i0] + frac[:, None] * eye[i0 + 1]


def _width_op_t(w_in):
    """(W, 2W) bf16 = A_w^T, used on the lane side of the width pass."""
    return _interp_matrix_1d(2 * w_in, w_in).T.astype(jnp.bfloat16)


def _height_blend(h_in):
    """Per output row g: (h0, h1, frac) s.t. out_g = (1-f)*in_h0 + f*in_h1."""
    if h_in == 1:
        return ((0, 0, 0.0), (0, 0, 0.0))
    rows = []
    for g in range(2 * h_in):
        src = g * (h_in - 1) / (2 * h_in - 1)
        i0 = min(int(math.floor(src)), h_in - 2)
        rows.append((i0, i0 + 1, float(src - i0)))
    return tuple(rows)


def init_params(key, channel_num=16, intermediate_feature=64, bn_eps=1e-5):
    """Per stage: (w_stack (Cout, 9*Cin) bf16 with BN scale folded, bias (Cout,1))."""
    dims = [(channel_num, channel_num),
            (channel_num, intermediate_feature),
            (intermediate_feature, 1)]
    params = []
    for cin, cout in dims:
        key, k_w, k_b = jax.random.split(key, 3)
        wt = jax.random.normal(k_w, (cin, cout, 3, 3), jnp.float32) * 0.1
        conv_bias = jax.random.normal(k_b, (cout,), jnp.float32) * 0.1
        # BatchNorm inference-mode defaults.
        gamma = jnp.ones((cout,), jnp.float32)
        beta = jnp.zeros((cout,), jnp.float32)
        mean = jnp.zeros((cout,), jnp.float32)
        var = jnp.ones((cout,), jnp.float32)

        # ConvTranspose2d(k=3, s=1, p=1) == 3x3 'same' conv with the kernel
        # spatially flipped and in/out channels swapped.
        taps = jnp.transpose(wt[:, :, ::-1, ::-1], (2, 3, 1, 0))  # (a,b,co,ci)

        # Fold BN: scale into weights, shift (+conv bias) into one bias vector.
        scale = gamma / jnp.sqrt(var + bn_eps)                    # (cout,)
        taps = taps * scale[None, None, :, None]
        bias = ((conv_bias - mean) * scale + beta).reshape(cout, 1)

        w_stack = jnp.transpose(taps, (2, 0, 1, 3)).reshape(cout, 9 * cin)
        params.append((w_stack.astype(jnp.bfloat16), bias))
    return params


# ----------------------------------------------------------------------------
# DecodeModule forward (one fused pallas_call)
# ----------------------------------------------------------------------------
def decode_module_forward(x_nchw, params):
    n, c0, h0, w0 = x_nchw.shape
    hw0 = h0 * w0
    hw_out = 16 * hw0
    x = x_nchw.reshape(n, c0, hw0).astype(jnp.bfloat16)      # bf16 input DMA

    (w1, b1), (w2, b2), (w3, b3) = params
    a1t = _width_op_t(w0)                                    # (W0, 2W0)
    a2t = _width_op_t(2 * w0)                                # (2W0, 4W0)
    hb1 = _height_blend(h0)
    hb2 = _height_blend(2 * h0)

    # Batch tile: lane-concat nb images per grid step so stage-1 matmuls see
    # >= 128 lanes, but keep >= 2 grid steps so both v7x TensorCores get work
    # (for N=2 / 8x8 this resolves to nb=1, grid=(2,)).
    # TODO(synk): for N == 1 on v7x, split the spatial axis instead.
    nb = 1
    for cand in range(min(n, max(1, 128 // hw0)), 0, -1):
        if n % cand == 0 and (n // cand >= 2 or n == 1):
            nb = cand
            break

    def const_spec(a):
        # Grid-invariant operand: same (tiny, ~KiB) block every step, copied
        # once; after the separable-upsample change all constants total
        # ~26 KiB so default double-buffering is negligible.
        return pl.BlockSpec(a.shape, lambda i: (0, 0))

    kernel = functools.partial(_decode_kernel, nb=nb, h0=h0, w0=w0,
                               hb1=hb1, hb2=hb2)

    out = pl.pallas_call(
        kernel,
        out_shape=jax.ShapeDtypeStruct((n, 1, hw_out), jnp.float32),
        grid=(n // nb,),
        in_specs=[
            pl.BlockSpec((nb, c0, hw0), lambda i: (i, 0, 0)),
            const_spec(w1), const_spec(b1), const_spec(a1t),
            const_spec(w2), const_spec(b2), const_spec(a2t),
            const_spec(w3), const_spec(b3),
        ],
        out_specs=pl.BlockSpec((nb, 1, hw_out), lambda i: (i, 0, 0)),
        compiler_params=pltpu.CompilerParams(
            dimension_semantics=("parallel",)),
    )(x, w1, b1, a1t, w2, b2, a2t, w3, b3)

    return out.reshape(n, 1, 4 * h0, 4 * w0)


if __name__ == "__main__":
    key = jax.random.PRNGKey(0)
    k_x, k_p = jax.random.split(key)
    # batch=2, channel_num=16 (module default), spatial 8x8 -> output (2,1,32,32)
    x = jax.random.normal(k_x, (2, 16, 8, 8), jnp.float32)
    params = init_params(k_p, channel_num=16, intermediate_feature=64)

    out = jax.jit(decode_module_forward)(x, params)
    out = jax.block_until_ready(out)

    assert out.shape == (2, 1, 32, 32), out.shape
    assert bool(jnp.all(jnp.isfinite(out)))
    assert bool(jnp.all((out >= 0.0) & (out <= 1.0)))  # sigmoid output range
    print("KERNEL_OK")
</pallas_src>

<mosaic_0001>
module attributes {stable_mosaic.version = 11 : i64} {
  func.func @_decode_kernel(%arg0: i32, %arg1: memref<1x16x64xbf16, #tpu.memory_space<vmem>>, %arg2: memref<16x144xbf16, #tpu.memory_space<vmem>>, %arg3: memref<16x1xf32, #tpu.memory_space<vmem>>, %arg4: memref<8x16xbf16, #tpu.memory_space<vmem>>, %arg5: memref<64x144xbf16, #tpu.memory_space<vmem>>, %arg6: memref<64x1xf32, #tpu.memory_space<vmem>>, %arg7: memref<16x32xbf16, #tpu.memory_space<vmem>>, %arg8: memref<1x576xbf16, #tpu.memory_space<vmem>>, %arg9: memref<1x1xf32, #tpu.memory_space<vmem>>, %arg10: memref<1x1x1024xf32, #tpu.memory_space<vmem>>) attributes {dimension_semantics = [#tpu.dimension_semantics<parallel>], iteration_bounds = array<i64: 2>, scalar_prefetch = 0 : i64, scratch_operands = 0 : i64, tpu.core_type = #tpu.core_type<tc>, window_params = [{transform_indices = @transform_0, window_bounds = array<i64: 1, 16, 64>}, {pipeline_mode = #tpu.pipeline_mode<synchronous>, transform_indices = @transform_1, window_bounds = array<i64: 16, 144>}, {pipeline_mode = #tpu.pipeline_mode<synchronous>, transform_indices = @transform_2, window_bounds = array<i64: 16, 1>}, {pipeline_mode = #tpu.pipeline_mode<synchronous>, transform_indices = @transform_3, window_bounds = array<i64: 8, 16>}, {pipeline_mode = #tpu.pipeline_mode<synchronous>, transform_indices = @transform_4, window_bounds = array<i64: 64, 144>}, {pipeline_mode = #tpu.pipeline_mode<synchronous>, transform_indices = @transform_5, window_bounds = array<i64: 64, 1>}, {pipeline_mode = #tpu.pipeline_mode<synchronous>, transform_indices = @transform_6, window_bounds = array<i64: 16, 32>}, {pipeline_mode = #tpu.pipeline_mode<synchronous>, transform_indices = @transform_7, window_bounds = array<i64: 1, 576>}, {pipeline_mode = #tpu.pipeline_mode<synchronous>, transform_indices = @transform_8, window_bounds = array<i64: 1, 1>}, {transform_indices = @transform_9, window_bounds = array<i64: 1, 1, 1024>}]} {
    %c0 = arith.constant 0 : index
    %c0_0 = arith.constant 0 : index
    %c0_1 = arith.constant 0 : index
    %0 = vector.load %arg1[%c0, %c0_0, %c0_1] : memref<1x16x64xbf16, #tpu.memory_space<vmem>>, vector<1x16x64xbf16>
    %1 = vector.shape_cast %0 : vector<1x16x64xbf16> to vector<16x64xbf16>
    %cst = arith.constant 0.000000e+00 : bf16
    %2 = vector.broadcast %cst : bf16 to vector<16x9xbf16>
    %3 = tpu.concatenate %2, %1, %2 in 1 : vector<16x9xbf16>, vector<16x64xbf16>, vector<16x9xbf16> -> vector<16x82xbf16>
    %4 = tpu.iota {dimensions = array<i32: 1>} : vector<1x64xi32>
    %c8_i32 = arith.constant 8 : i32
    %c0_i32 = arith.constant 0 : i32
    %5 = arith.cmpi eq, %c8_i32, %c0_i32 : i32
    %c1_i32 = arith.constant 1 : i32
    %6 = arith.select %5, %c1_i32, %c8_i32 : i32
    %7 = vector.broadcast %6 : i32 to vector<1x64xi32>
    %8 = arith.remsi %4, %7 : vector<1x64xi32>
    %c0_i32_2 = arith.constant 0 : i32
    %9 = vector.broadcast %c0_i32_2 : i32 to vector<1x64xi32>
    %10 = arith.cmpi ne, %8, %9 : vector<1x64xi32>
    %c0_i32_3 = arith.constant 0 : i32
    %11 = vector.broadcast %c0_i32_3 : i32 to vector<1x64xi32>
    %12 = arith.cmpi slt, %8, %11 : vector<1x64xi32>
    %c0_i32_4 = arith.constant 0 : i32
    %13 = arith.cmpi slt, %6, %c0_i32_4 : i32
    %14 = vector.broadcast %13 : i1 to vector<1x64xi1>
    %15 = vector.broadcast %14 : vector<1x64xi1> to vector<1x64xi1>
    %16 = arith.xori %12, %15 : vector<1x64xi1>
    %17 = arith.andi %16, %10 : vector<1x64xi1>
    %18 = vector.broadcast %6 : i32 to vector<1x64xi32>
    %19 = arith.addi %8, %18 : vector<1x64xi32>
    %20 = arith.select %17, %19, %8 : vector<1x64xi1>, vector<1x64xi32>
    %c0_i32_5 = arith.constant 0 : i32
    %21 = vector.broadcast %c0_i32_5 : i32 to vector<1x64xi32>
    %22 = arith.cmpi sgt, %20, %21 : vector<1x64xi32>
    %c7_i32 = arith.constant 7 : i32
    %23 = vector.broadcast %c7_i32 : i32 to vector<1x64xi32>
    %24 = arith.cmpi slt, %20, %23 : vector<1x64xi32>
    %25 = vector.extract_strided_slice %3 {offsets = [0, 0], sizes = [16, 64], strides = [1, 1]} : vector<16x82xbf16> to vector<16x64xbf16>
    %cst_6 = arith.constant 0.000000e+00 : bf16
    %26 = vector.broadcast %cst_6 : bf16 to vector<16x64xbf16>
    %27 = vector.shape_cast %22 : vector<1x64xi1> to vector<1x64xi1>
    %28 = vector.broadcast %27 : vector<1x64xi1> to vector<16x64xi1>
    %29 = arith.select %28, %25, %26 : vector<16x64xi1>, vector<16x64xbf16>
    %30 = vector.extract_strided_slice %3 {offsets = [0, 1], sizes = [16, 64], strides = [1, 1]} : vector<16x82xbf16> to vector<16x64xbf16>
    %31 = vector.extract_strided_slice %3 {offsets = [0, 2], sizes = [16, 64], strides = [1, 1]} : vector<16x82xbf16> to vector<16x64xbf16>
    %cst_7 = arith.constant 0.000000e+00 : bf16
    %32 = vector.broadcast %cst_7 : bf16 to vector<16x64xbf16>
    %33 = vector.shape_cast %24 : vector<1x64xi1> to vector<1x64xi1>
    %34 = vector.broadcast %33 : vector<1x64xi1> to vector<16x64xi1>
    %35 = arith.select %34, %31, %32 : vector<16x64xi1>, vector<16x64xbf16>
    %36 = vector.extract_strided_slice %3 {offsets = [0, 8], sizes = [16, 64], strides = [1, 1]} : vector<16x82xbf16> to vector<16x64xbf16>
    %cst_8 = arith.constant 0.000000e+00 : bf16
    %37 = vector.broadcast %cst_8 : bf16 to vector<16x64xbf16>
    %38 = vector.shape_cast %22 : vector<1x64xi1> to vector<1x64xi1>
    %39 = vector.broadcast %38 : vector<1x64xi1> to vector<16x64xi1>
    %40 = arith.select %39, %36, %37 : vector<16x64xi1>, vector<16x64xbf16>
    %41 = vector.extract_strided_slice %3 {offsets = [0, 9], sizes = [16, 64], strides = [1, 1]} : vector<16x82xbf16> to vector<16x64xbf16>
    %42 = vector.extract_strided_slice %3 {offsets = [0, 10], sizes = [16, 64], strides = [1, 1]} : vector<16x82xbf16> to vector<16x64xbf16>
    %cst_9 = arith.constant 0.000000e+00 : bf16
    %43 = vector.broadcast %cst_9 : bf16 to vector<16x64xbf16>
    %44 = vector.shape_cast %24 : vector<1x64xi1> to vector<1x64xi1>
    %45 = vector.broadcast %44 : vector<1x64xi1> to vector<16x64xi1>
    %46 = arith.select %45, %42, %43 : vector<16x64xi1>, vector<16x64xbf16>
    %47 = vector.extract_strided_slice %3 {offsets = [0, 16], sizes = [16, 64], strides = [1, 1]} : vector<16x82xbf16> to vector<16x64xbf16>
    %cst_10 = arith.constant 0.000000e+00 : bf16
    %48 = vector.broadcast %cst_10 : bf16 to vector<16x64xbf16>
    %49 = vector.shape_cast %22 : vector<1x64xi1> to vector<1x64xi1>
    %50 = vector.broadcast %49 : vector<1x64xi1> to vector<16x64xi1>
    %51 = arith.select %50, %47, %48 : vector<16x64xi1>, vector<16x64xbf16>
    %52 = vector.extract_strided_slice %3 {offsets = [0, 17], sizes = [16, 64], strides = [1, 1]} : vector<16x82xbf16> to vector<16x64xbf16>
    %53 = vector.extract_strided_slice %3 {offsets = [0, 18], sizes = [16, 64], strides = [1, 1]} : vector<16x82xbf16> to vector<16x64xbf16>
    %cst_11 = arith.constant 0.000000e+00 : bf16
    %54 = vector.broadcast %cst_11 : bf16 to vector<16x64xbf16>
    %55 = vector.shape_cast %24 : vector<1x64xi1> to vector<1x64xi1>
    %56 = vector.broadcast %55 : vector<1x64xi1> to vector<16x64xi1>
    %57 = arith.select %56, %53, %54 : vector<16x64xi1>, vector<16x64xbf16>
    %58 = tpu.concatenate %29, %30, %35, %40, %41, %46, %51, %52, %57 in 0 : vector<16x64xbf16>, vector<16x64xbf16>, vector<16x64xbf16>, vector<16x64xbf16>, vector<16x64xbf16>, vector<16x64xbf16>, vector<16x64xbf16>, vector<16x64xbf16>, vector<16x64xbf16> -> vector<144x64xbf16>
    %c0_12 = arith.constant 0 : index
    %c0_13 = arith.constant 0 : index
    %59 = vector.load %arg2[%c0_12, %c0_13] : memref<16x144xbf16, #tpu.memory_space<vmem>>, vector<16x144xbf16>
    %cst_14 = arith.constant dense<0.000000e+00> : vector<16x64xf32>
    %60 = tpu.matmul %59, %58, %cst_14 {dimension_numbers = #tpu.dot_dimension_numbers<[1], [0], [0], [1], [0, 0, 1, 1], [], []>} : vector<16x144xbf16>, vector<144x64xbf16>, vector<16x64xf32> -> vector<16x64xf32>
    %c0_15 = arith.constant 0 : index
    %c0_16 = arith.constant 0 : index
    %61 = vector.load %arg3[%c0_15, %c0_16] : memref<16x1xf32, #tpu.memory_space<vmem>>, vector<16x1xf32>
    %62 = vector.broadcast %61 : vector<16x1xf32> to vector<16x64xf32>
    %63 = arith.addf %60, %62 : vector<16x64xf32>
    %cst_17 = arith.constant 0.000000e+00 : f32
    %64 = vector.broadcast %cst_17 : f32 to vector<16x64xf32>
    %65 = arith.maximumf %63, %64 : vector<16x64xf32>
    %66 = arith.truncf %65 : vector<16x64xf32> to vector<16x64xbf16>
    %67 = vector.extract_strided_slice %66 {offsets = [0, 0], sizes = [16, 8], strides = [1, 1]} : vector<16x64xbf16> to vector<16x8xbf16>
    %68 = vector.extract_strided_slice %66 {offsets = [0, 8], sizes = [16, 8], strides = [1, 1]} : vector<16x64xbf16> to vector<16x8xbf16>
    %69 = vector.extract_strided_slice %66 {offsets = [0, 16], sizes = [16, 8], strides = [1, 1]} : vector<16x64xbf16> to vector<16x8xbf16>
    %70 = vector.extract_strided_slice %66 {offsets = [0, 24], sizes = [16, 8], strides = [1, 1]} : vector<16x64xbf16> to vector<16x8xbf16>
    %71 = vector.extract_strided_slice %66 {offsets = [0, 32], sizes = [16, 8], strides = [1, 1]} : vector<16x64xbf16> to vector<16x8xbf16>
    %72 = vector.extract_strided_slice %66 {offsets = [0, 40], sizes = [16, 8], strides = [1, 1]} : vector<16x64xbf16> to vector<16x8xbf16>
    %73 = vector.extract_strided_slice %66 {offsets = [0, 48], sizes = [16, 8], strides = [1, 1]} : vector<16x64xbf16> to vector<16x8xbf16>
    %74 = vector.extract_strided_slice %66 {offsets = [0, 56], sizes = [16, 8], strides = [1, 1]} : vector<16x64xbf16> to vector<16x8xbf16>
    %75 = tpu.concatenate %67, %68, %69, %70, %71, %72, %73, %74 in 0 : vector<16x8xbf16>, vector<16x8xbf16>, vector<16x8xbf16>, vector<16x8xbf16>, vector<16x8xbf16>, vector<16x8xbf16>, vector<16x8xbf16>, vector<16x8xbf16> -> vector<128x8xbf16>
    %c0_18 = arith.constant 0 : index
    %c0_19 = arith.constant 0 : index
    %76 = vector.load %arg4[%c0_18, %c0_19] : memref<8x16xbf16, #tpu.memory_space<vmem>>, vector<8x16xbf16>
    %cst_20 = arith.constant dense<0.000000e+00> : vector<128x16xf32>
    %77 = tpu.matmul %75, %76, %cst_20 {dimension_numbers = #tpu.dot_dimension_numbers<[1], [0], [0], [1], [0, 0, 1, 1], [], []>} : vector<128x8xbf16>, vector<8x16xbf16>, vector<128x16xf32> -> vector<128x16xf32>
    %78 = arith.truncf %77 : vector<128x16xf32> to vector<128x16xbf16>
    %79 = vector.extract_strided_slice %78 {offsets = [0, 0], sizes = [16, 16], strides = [1, 1]} : vector<128x16xbf16> to vector<16x16xbf16>
    %80 = vector.extract_strided_slice %78 {offsets = [0, 0], sizes = [16, 16], strides = [1, 1]} : vector<128x16xbf16> to vector<16x16xbf16>
    %81 = vector.extract_strided_slice %78 {offsets = [16, 0], sizes = [16, 16], strides = [1, 1]} : vector<128x16xbf16> to vector<16x16xbf16>
    %cst_21 = arith.constant 5.351560e-01 : bf16
    %82 = vector.broadcast %cst_21 : bf16 to vector<16x16xbf16>
    %83 = arith.mulf %82, %80 : vector<16x16xbf16>
    %cst_22 = arith.constant 4.667970e-01 : bf16
    %84 = vector.broadcast %cst_22 : bf16 to vector<16x16xbf16>
    %85 = arith.mulf %84, %81 : vector<16x16xbf16>
    %86 = arith.addf %83, %85 : vector<16x16xbf16>
    %87 = vector.extract_strided_slice %78 {offsets = [0, 0], sizes = [16, 16], strides = [1, 1]} : vector<128x16xbf16> to vector<16x16xbf16>
    %88 = vector.extract_strided_slice %78 {offsets = [16, 0], sizes = [16, 16], strides = [1, 1]} : vector<128x16xbf16> to vector<16x16xbf16>
    %cst_23 = arith.constant 6.689450e-02 : bf16
    %89 = vector.broadcast %cst_23 : bf16 to vector<16x16xbf16>
    %90 = arith.mulf %89, %87 : vector<16x16xbf16>
    %cst_24 = arith.constant 9.335930e-01 : bf16
    %91 = vector.broadcast %cst_24 : bf16 to vector<16x16xbf16>
    %92 = arith.mulf %91, %88 : vector<16x16xbf16>
    %93 = arith.addf %90, %92 : vector<16x16xbf16>
    %94 = vector.extract_strided_slice %78 {offsets = [16, 0], sizes = [16, 16], strides = [1, 1]} : vector<128x16xbf16> to vector<16x16xbf16>
    %95 = vector.extract_strided_slice %78 {offsets = [32, 0], sizes = [16, 16], strides = [1, 1]} : vector<128x16xbf16> to vector<16x16xbf16>
    %cst_25 = arith.constant 6.015630e-01 : bf16
    %96 = vector.broadcast %cst_25 : bf16 to vector<16x16xbf16>
    %97 = arith.mulf %96, %94 : vector<16x16xbf16>
    %cst_26 = arith.constant 4.003910e-01 : bf16
    %98 = vector.broadcast %cst_26 : bf16 to vector<16x16xbf16>
    %99 = arith.mulf %98, %95 : vector<16x16xbf16>
    %100 = arith.addf %97, %99 : vector<16x16xbf16>
    %101 = vector.extract_strided_slice %78 {offsets = [16, 0], sizes = [16, 16], strides = [1, 1]} : vector<128x16xbf16> to vector<16x16xbf16>
    %102 = vector.extract_strided_slice %78 {offsets = [32, 0], sizes = [16, 16], strides = [1, 1]} : vector<128x16xbf16> to vector<16x16xbf16>
    %cst_27 = arith.constant 1.337890e-01 : bf16
    %103 = vector.broadcast %cst_27 : bf16 to vector<16x16xbf16>
    %104 = arith.mulf %103, %101 : vector<16x16xbf16>
    %cst_28 = arith.constant 8.671870e-01 : bf16
    %105 = vector.broadcast %cst_28 : bf16 to vector<16x16xbf16>
    %106 = arith.mulf %105, %102 : vector<16x16xbf16>
    %107 = arith.addf %104, %106 : vector<16x16xbf16>
    %108 = vector.extract_strided_slice %78 {offsets = [32, 0], sizes = [16, 16], strides = [1, 1]} : vector<128x16xbf16> to vector<16x16xbf16>
    %109 = vector.extract_strided_slice %78 {offsets = [48, 0], sizes = [16, 16], strides = [1, 1]} : vector<128x16xbf16> to vector<16x16xbf16>
    %cst_29 = arith.constant 6.679690e-01 : bf16
    %110 = vector.broadcast %cst_29 : bf16 to vector<16x16xbf16>
    %111 = arith.mulf %110, %108 : vector<16x16xbf16>
    %cst_30 = arith.constant 3.339840e-01 : bf16
    %112 = vector.broadcast %cst_30 : bf16 to vector<16x16xbf16>
    %113 = arith.mulf %112, %109 : vector<16x16xbf16>
    %114 = arith.addf %111, %113 : vector<16x16xbf16>
    %115 = vector.extract_strided_slice %78 {offsets = [32, 0], sizes = [16, 16], strides = [1, 1]} : vector<128x16xbf16> to vector<16x16xbf16>
    %116 = vector.extract_strided_slice %78 {offsets = [48, 0], sizes = [16, 16], strides = [1, 1]} : vector<128x16xbf16> to vector<16x16xbf16>
    %cst_31 = arith.constant 2.001950e-01 : bf16
    %117 = vector.broadcast %cst_31 : bf16 to vector<16x16xbf16>
    %118 = arith.mulf %117, %115 : vector<16x16xbf16>
    %cst_32 = arith.constant 8.007810e-01 : bf16
    %119 = vector.broadcast %cst_32 : bf16 to vector<16x16xbf16>
    %120 = arith.mulf %119, %116 : vector<16x16xbf16>
    %121 = arith.addf %118, %120 : vector<16x16xbf16>
    %122 = vector.extract_strided_slice %78 {offsets = [48, 0], sizes = [16, 16], strides = [1, 1]} : vector<128x16xbf16> to vector<16x16xbf16>
    %123 = vector.extract_strided_slice %78 {offsets = [64, 0], sizes = [16, 16], strides = [1, 1]} : vector<128x16xbf16> to vector<16x16xbf16>
    %cst_33 = arith.constant 7.343750e-01 : bf16
    %124 = vector.broadcast %cst_33 : bf16 to vector<16x16xbf16>
    %125 = arith.mulf %124, %122 : vector<16x16xbf16>
    %cst_34 = arith.constant 2.675780e-01 : bf16
    %126 = vector.broadcast %cst_34 : bf16 to vector<16x16xbf16>
    %127 = arith.mulf %126, %123 : vector<16x16xbf16>
    %128 = arith.addf %125, %127 : vector<16x16xbf16>
    %129 = vector.extract_strided_slice %78 {offsets = [48, 0], sizes = [16, 16], strides = [1, 1]} : vector<128x16xbf16> to vector<16x16xbf16>
    %130 = vector.extract_strided_slice %78 {offsets = [64, 0], sizes = [16, 16], strides = [1, 1]} : vector<128x16xbf16> to vector<16x16xbf16>
    %cst_35 = arith.constant 2.675780e-01 : bf16
    %131 = vector.broadcast %cst_35 : bf16 to vector<16x16xbf16>
    %132 = arith.mulf %131, %129 : vector<16x16xbf16>
    %cst_36 = arith.constant 7.343750e-01 : bf16
    %133 = vector.broadcast %cst_36 : bf16 to vector<16x16xbf16>
    %134 = arith.mulf %133, %130 : vector<16x16xbf16>
    %135 = arith.addf %132, %134 : vector<16x16xbf16>
    %136 = vector.extract_strided_slice %78 {offsets = [64, 0], sizes = [16, 16], strides = [1, 1]} : vector<128x16xbf16> to vector<16x16xbf16>
    %137 = vector.extract_strided_slice %78 {offsets = [80, 0], sizes = [16, 16], strides = [1, 1]} : vector<128x16xbf16> to vector<16x16xbf16>
    %cst_37 = arith.constant 8.007810e-01 : bf16
    %138 = vector.broadcast %cst_37 : bf16 to vector<16x16xbf16>
    %139 = arith.mulf %138, %136 : vector<16x16xbf16>
    %cst_38 = arith.constant 2.001950e-01 : bf16
    %140 = vector.broadcast %cst_38 : bf16 to vector<16x16xbf16>
    %141 = arith.mulf %140, %137 : vector<16x16xbf16>
    %142 = arith.addf %139, %141 : vector<16x16xbf16>
    %143 = vector.extract_strided_slice %78 {offsets = [64, 0], sizes = [16, 16], strides = [1, 1]} : vector<128x16xbf16> to vector<16x16xbf16>
    %144 = vector.extract_strided_slice %78 {offsets = [80, 0], sizes = [16, 16], strides = [1, 1]} : vector<128x16xbf16> to vector<16x16xbf16>
    %cst_39 = arith.constant 3.339840e-01 : bf16
    %145 = vector.broadcast %cst_39 : bf16 to vector<16x16xbf16>
    %146 = arith.mulf %145, %143 : vector<16x16xbf16>
    %cst_40 = arith.constant 6.679690e-01 : bf16
    %147 = vector.broadcast %cst_40 : bf16 to vector<16x16xbf16>
    %148 = arith.mulf %147, %144 : vector<16x16xbf16>
    %149 = arith.addf %146, %148 : vector<16x16xbf16>
    %150 = vector.extract_strided_slice %78 {offsets = [80, 0], sizes = [16, 16], strides = [1, 1]} : vector<128x16xbf16> to vector<16x16xbf16>
    %151 = vector.extract_strided_slice %78 {offsets = [96, 0], sizes = [16, 16], strides = [1, 1]} : vector<128x16xbf16> to vector<16x16xbf16>
    %cst_41 = arith.constant 8.671870e-01 : bf16
    %152 = vector.broadcast %cst_41 : bf16 to vector<16x16xbf16>
    %153 = arith.mulf %152, %150 : vector<16x16xbf16>
    %cst_42 = arith.constant 1.337890e-01 : bf16
    %154 = vector.broadcast %cst_42 : bf16 to vector<16x16xbf16>
    %155 = arith.mulf %154, %151 : vector<16x16xbf16>
    %156 = arith.addf %153, %155 : vector<16x16xbf16>
    %157 = vector.extract_strided_slice %78 {offsets = [80, 0], sizes = [16, 16], strides = [1, 1]} : vector<128x16xbf16> to vector<16x16xbf16>
    %158 = vector.extract_strided_slice %78 {offsets = [96, 0], sizes = [16, 16], strides = [1, 1]} : vector<128x16xbf16> to vector<16x16xbf16>
    %cst_43 = arith.constant 4.003910e-01 : bf16
    %159 = vector.broadcast %cst_43 : bf16 to vector<16x16xbf16>
    %160 = arith.mulf %159, %157 : vector<16x16xbf16>
    %cst_44 = arith.constant 6.015630e-01 : bf16
    %161 = vector.broadcast %cst_44 : bf16 to vector<16x16xbf16>
    %162 = arith.mulf %161, %158 : vector<16x16xbf16>
    %163 = arith.addf %160, %162 : vector<16x16xbf16>
    %164 = vector.extract_strided_slice %78 {offsets = [96, 0], sizes = [16, 16], strides = [1, 1]} : vector<128x16xbf16> to vector<16x16xbf16>
    %165 = vector.extract_strided_slice %78 {offsets = [112, 0], sizes = [16, 16], strides = [1, 1]} : vector<128x16xbf16> to vector<16x16xbf16>
    %cst_45 = arith.constant 9.335930e-01 : bf16
    %166 = vector.broadcast %cst_45 : bf16 to vector<16x16xbf16>
    %167 = arith.mulf %166, %164 : vector<16x16xbf16>
    %cst_46 = arith.constant 6.689450e-02 : bf16
    %168 = vector.broadcast %cst_46 : bf16 to vector<16x16xbf16>
    %169 = arith.mulf %168, %165 : vector<16x16xbf16>
    %170 = arith.addf %167, %169 : vector<16x16xbf16>
    %171 = vector.extract_strided_slice %78 {offsets = [96, 0], sizes = [16, 16], strides = [1, 1]} : vector<128x16xbf16> to vector<16x16xbf16>
    %172 = vector.extract_strided_slice %78 {offsets = [112, 0], sizes = [16, 16], strides = [1, 1]} : vector<128x16xbf16> to vector<16x16xbf16>
    %cst_47 = arith.constant 4.667970e-01 : bf16
    %173 = vector.broadcast %cst_47 : bf16 to vector<16x16xbf16>
    %174 = arith.mulf %173, %171 : vector<16x16xbf16>
    %cst_48 = arith.constant 5.351560e-01 : bf16
    %175 = vector.broadcast %cst_48 : bf16 to vector<16x16xbf16>
    %176 = arith.mulf %175, %172 : vector<16x16xbf16>
    %177 = arith.addf %174, %176 : vector<16x16xbf16>
    %178 = vector.extract_strided_slice %78 {offsets = [96, 0], sizes = [16, 16], strides = [1, 1]} : vector<128x16xbf16> to vector<16x16xbf16>
    %179 = vector.extract_strided_slice %78 {offsets = [112, 0], sizes = [16, 16], strides = [1, 1]} : vector<128x16xbf16> to vector<16x16xbf16>
    %cst_49 = arith.constant 0.000000e+00 : bf16
    %180 = vector.broadcast %cst_49 : bf16 to vector<16x16xbf16>
    %181 = arith.mulf %180, %178 : vector<16x16xbf16>
    %cst_50 = arith.constant 1.000000e+00 : bf16
    %182 = vector.broadcast %cst_50 : bf16 to vector<16x16xbf16>
    %183 = arith.mulf %182, %179 : vector<16x16xbf16>
    %184 = arith.addf %181, %183 : vector<16x16xbf16>
    %185 = tpu.concatenate %79, %86, %93, %100, %107, %114, %121, %128, %135, %142, %149, %156, %163, %170, %177, %184 in 1 : vector<16x16xbf16>, vector<16x16xbf16>, vector<16x16xbf16>, vector<16x16xbf16>, vector<16x16xbf16>, vector<16x16xbf16>, vector<16x16xbf16>, vector<16x16xbf16>, vector<16x16xbf16>, vector<16x16xbf16>, vector<16x16xbf16>, vector<16x16xbf16>, vector<16x16xbf16>, vector<16x16xbf16>, vector<16x16xbf16>, vector<16x16xbf16> -> vector<16x256xbf16>
    %cst_51 = arith.constant 0.000000e+00 : bf16
    %186 = vector.broadcast %cst_51 : bf16 to vector<16x17xbf16>
    %187 = tpu.concatenate %186, %185, %186 in 1 : vector<16x17xbf16>, vector<16x256xbf16>, vector<16x17xbf16> -> vector<16x290xbf16>
    %188 = tpu.iota {dimensions = array<i32: 1>} : vector<1x256xi32>
    %c16_i32 = arith.constant 16 : i32
    %c0_i32_52 = arith.constant 0 : i32
    %189 = arith.cmpi eq, %c16_i32, %c0_i32_52 : i32
    %c1_i32_53 = arith.constant 1 : i32
    %190 = arith.select %189, %c1_i32_53, %c16_i32 : i32
    %191 = vector.broadcast %190 : i32 to vector<1x256xi32>
    %192 = arith.remsi %188, %191 : vector<1x256xi32>
    %c0_i32_54 = arith.constant 0 : i32
    %193 = vector.broadcast %c0_i32_54 : i32 to vector<1x256xi32>
    %194 = arith.cmpi ne, %192, %193 : vector<1x256xi32>
    %c0_i32_55 = arith.constant 0 : i32
    %195 = vector.broadcast %c0_i32_55 : i32 to vector<1x256xi32>
    %196 = arith.cmpi slt, %192, %195 : vector<1x256xi32>
    %c0_i32_56 = arith.constant 0 : i32
    %197 = arith.cmpi slt, %190, %c0_i32_56 : i32
    %198 = vector.broadcast %197 : i1 to vector<1x256xi1>
    %199 = vector.broadcast %198 : vector<1x256xi1> to vector<1x256xi1>
    %200 = arith.xori %196, %199 : vector<1x256xi1>
    %201 = arith.andi %200, %194 : vector<1x256xi1>
    %202 = vector.broadcast %190 : i32 to vector<1x256xi32>
    %203 = arith.addi %192, %202 : vector<1x256xi32>
    %204 = arith.select %201, %203, %192 : vector<1x256xi1>, vector<1x256xi32>
    %c0_i32_57 = arith.constant 0 : i32
    %205 = vector.broadcast %c0_i32_57 : i32 to vector<1x256xi32>
    %206 = arith.cmpi sgt, %204, %205 : vector<1x256xi32>
    %c15_i32 = arith.constant 15 : i32
    %207 = vector.broadcast %c15_i32 : i32 to vector<1x256xi32>
    %208 = arith.cmpi slt, %204, %207 : vector<1x256xi32>
    %209 = vector.extract_strided_slice %187 {offsets = [0, 0], sizes = [16, 256], strides = [1, 1]} : vector<16x290xbf16> to vector<16x256xbf16>
    %cst_58 = arith.constant 0.000000e+00 : bf16
    %210 = vector.broadcast %cst_58 : bf16 to vector<16x256xbf16>
    %211 = vector.shape_cast %206 : vector<1x256xi1> to vector<1x256xi1>
    %212 = vector.broadcast %211 : vector<1x256xi1> to vector<16x256xi1>
    %213 = arith.select %212, %209, %210 : vector<16x256xi1>, vector<16x256xbf16>
    %214 = vector.extract_strided_slice %187 {offsets = [0, 1], sizes = [16, 256], strides = [1, 1]} : vector<16x290xbf16> to vector<16x256xbf16>
    %215 = vector.extract_strided_slice %187 {offsets = [0, 2], sizes = [16, 256], strides = [1, 1]} : vector<16x290xbf16> to vector<16x256xbf16>
    %cst_59 = arith.constant 0.000000e+00 : bf16
    %216 = vector.broadcast %cst_59 : bf16 to vector<16x256xbf16>
    %217 = vector.shape_cast %208 : vector<1x256xi1> to vector<1x256xi1>
    %218 = vector.broadcast %217 : vector<1x256xi1> to vector<16x256xi1>
    %219 = arith.select %218, %215, %216 : vector<16x256xi1>, vector<16x256xbf16>
    %220 = vector.extract_strided_slice %187 {offsets = [0, 16], sizes = [16, 256], strides = [1, 1]} : vector<16x290xbf16> to vector<16x256xbf16>
    %cst_60 = arith.constant 0.000000e+00 : bf16
    %221 = vector.broadcast %cst_60 : bf16 to vector<16x256xbf16>
    %222 = vector.shape_cast %206 : vector<1x256xi1> to vector<1x256xi1>
    %223 = vector.broadcast %222 : vector<1x256xi1> to vector<16x256xi1>
    %224 = arith.select %223, %220, %221 : vector<16x256xi1>, vector<16x256xbf16>
    %225 = vector.extract_strided_slice %187 {offsets = [0, 17], sizes = [16, 256], strides = [1, 1]} : vector<16x290xbf16> to vector<16x256xbf16>
    %226 = vector.extract_strided_slice %187 {offsets = [0, 18], sizes = [16, 256], strides = [1, 1]} : vector<16x290xbf16> to vector<16x256xbf16>
    %cst_61 = arith.constant 0.000000e+00 : bf16
    %227 = vector.broadcast %cst_61 : bf16 to vector<16x256xbf16>
    %228 = vector.shape_cast %208 : vector<1x256xi1> to vector<1x256xi1>
    %229 = vector.broadcast %228 : vector<1x256xi1> to vector<16x256xi1>
    %230 = arith.select %229, %226, %227 : vector<16x256xi1>, vector<16x256xbf16>
    %231 = vector.extract_strided_slice %187 {offsets = [0, 32], sizes = [16, 256], strides = [1, 1]} : vector<16x290xbf16> to vector<16x256xbf16>
    %cst_62 = arith.constant 0.000000e+00 : bf16
    %232 = vector.broadcast %cst_62 : bf16 to vector<16x256xbf16>
    %233 = vector.shape_cast %206 : vector<1x256xi1> to vector<1x256xi1>
    %234 = vector.broadcast %233 : vector<1x256xi1> to vector<16x256xi1>
    %235 = arith.select %234, %231, %232 : vector<16x256xi1>, vector<16x256xbf16>
    %236 = vector.extract_strided_slice %187 {offsets = [0, 33], sizes = [16, 256], strides = [1, 1]} : vector<16x290xbf16> to vector<16x256xbf16>
    %237 = vector.extract_strided_slice %187 {offsets = [0, 34], sizes = [16, 256], strides = [1, 1]} : vector<16x290xbf16> to vector<16x256xbf16>
    %cst_63 = arith.constant 0.000000e+00 : bf16
    %238 = vector.broadcast %cst_63 : bf16 to vector<16x256xbf16>
    %239 = vector.shape_cast %208 : vector<1x256xi1> to vector<1x256xi1>
    %240 = vector.broadcast %239 : vector<1x256xi1> to vector<16x256xi1>
    %241 = arith.select %240, %237, %238 : vector<16x256xi1>, vector<16x256xbf16>
    %242 = tpu.concatenate %213, %214, %219, %224, %225, %230, %235, %236, %241 in 0 : vector<16x256xbf16>, vector<16x256xbf16>, vector<16x256xbf16>, vector<16x256xbf16>, vector<16x256xbf16>, vector<16x256xbf16>, vector<16x256xbf16>, vector<16x256xbf16>, vector<16x256xbf16> -> vector<144x256xbf16>
    %c0_64 = arith.constant 0 : index
    %c0_65 = arith.constant 0 : index
    %243 = vector.load %arg5[%c0_64, %c0_65] : memref<64x144xbf16, #tpu.memory_space<vmem>>, vector<64x144xbf16>
    %cst_66 = arith.constant dense<0.000000e+00> : vector<64x256xf32>
    %244 = tpu.matmul %243, %242, %cst_66 {dimension_numbers = #tpu.dot_dimension_numbers<[1], [0], [0], [1], [0, 0, 1, 1], [], []>} : vector<64x144xbf16>, vector<144x256xbf16>, vector<64x256xf32> -> vector<64x256xf32>
    %c0_67 = arith.constant 0 : index
    %c0_68 = arith.constant 0 : index
    %245 = vector.load %arg6[%c0_67, %c0_68] : memref<64x1xf32, #tpu.memory_space<vmem>>, vector<64x1xf32>
    %246 = vector.broadcast %245 : vector<64x1xf32> to vector<64x256xf32>
    %247 = arith.addf %244, %246 : vector<64x256xf32>
    %cst_69 = arith.constant 0.000000e+00 : f32
    %248 = vector.broadcast %cst_69 : f32 to vector<64x256xf32>
    %249 = arith.maximumf %247, %248 : vector<64x256xf32>
    %250 = arith.truncf %249 : vector<64x256xf32> to vector<64x256xbf16>
    %251 = vector.extract_strided_slice %250 {offsets = [0, 0], sizes = [64, 16], strides = [1, 1]} : vector<64x256xbf16> to vector<64x16xbf16>
    %252 = vector.extract_strided_slice %250 {offsets = [0, 16], sizes = [64, 16], strides = [1, 1]} : vector<64x256xbf16> to vector<64x16xbf16>
    %253 = vector.extract_strided_slice %250 {offsets = [0, 32], sizes = [64, 16], strides = [1, 1]} : vector<64x256xbf16> to vector<64x16xbf16>
    %254 = vector.extract_strided_slice %250 {offsets = [0, 48], sizes = [64, 16], strides = [1, 1]} : vector<64x256xbf16> to vector<64x16xbf16>
    %255 = vector.extract_strided_slice %250 {offsets = [0, 64], sizes = [64, 16], strides = [1, 1]} : vector<64x256xbf16> to vector<64x16xbf16>
    %256 = vector.extract_strided_slice %250 {offsets = [0, 80], sizes = [64, 16], strides = [1, 1]} : vector<64x256xbf16> to vector<64x16xbf16>
    %257 = vector.extract_strided_slice %250 {offsets = [0, 96], sizes = [64, 16], strides = [1, 1]} : vector<64x256xbf16> to vector<64x16xbf16>
    %258 = vector.extract_strided_slice %250 {offsets = [0, 112], sizes = [64, 16], strides = [1, 1]} : vector<64x256xbf16> to vector<64x16xbf16>
    %259 = vector.extract_strided_slice %250 {offsets = [0, 128], sizes = [64, 16], strides = [1, 1]} : vector<64x256xbf16> to vector<64x16xbf16>
    %260 = vector.extract_strided_slice %250 {offsets = [0, 144], sizes = [64, 16], strides = [1, 1]} : vector<64x256xbf16> to vector<64x16xbf16>
    %261 = vector.extract_strided_slice %250 {offsets = [0, 160], sizes = [64, 16], strides = [1, 1]} : vector<64x256xbf16> to vector<64x16xbf16>
    %262 = vector.extract_strided_slice %250 {offsets = [0, 176], sizes = [64, 16], strides = [1, 1]} : vector<64x256xbf16> to vector<64x16xbf16>
    %263 = vector.extract_strided_slice %250 {offsets = [0, 192], sizes = [64, 16], strides = [1, 1]} : vector<64x256xbf16> to vector<64x16xbf16>
    %264 = vector.extract_strided_slice %250 {offsets = [0, 208], sizes = [64, 16], strides = [1, 1]} : vector<64x256xbf16> to vector<64x16xbf16>
    %265 = vector.extract_strided_slice %250 {offsets = [0, 224], sizes = [64, 16], strides = [1, 1]} : vector<64x256xbf16> to vector<64x16xbf16>
    %266 = vector.extract_strided_slice %250 {offsets = [0, 240], sizes = [64, 16], strides = [1, 1]} : vector<64x256xbf16> to vector<64x16xbf16>
    %267 = tpu.concatenate %251, %252, %253, %254, %255, %256, %257, %258, %259, %260, %261, %262, %263, %264, %265, %266 in 0 : vector<64x16xbf16>, vector<64x16xbf16>, vector<64x16xbf16>, vector<64x16xbf16>, vector<64x16xbf16>, vector<64x16xbf16>, vector<64x16xbf16>, vector<64x16xbf16>, vector<64x16xbf16>, vector<64x16xbf16>, vector<64x16xbf16>, vector<64x16xbf16>, vector<64x16xbf16>, vector<64x16xbf16>, vector<64x16xbf16>, vector<64x16xbf16> -> vector<1024x16xbf16>
    %c0_70 = arith.constant 0 : index
    %c0_71 = arith.constant 0 : index
    %268 = vector.load %arg7[%c0_70, %c0_71] : memref<16x32xbf16, #tpu.memory_space<vmem>>, vector<16x32xbf16>
    %cst_72 = arith.constant dense<0.000000e+00> : vector<1024x32xf32>
    %269 = tpu.matmul %267, %268, %cst_72 {dimension_numbers = #tpu.dot_dimension_numbers<[1], [0], [0], [1], [0, 0, 1, 1], [], []>} : vector<1024x16xbf16>, vector<16x32xbf16>, vector<1024x32xf32> -> vector<1024x32xf32>
    %270 = arith.truncf %269 : vector<1024x32xf32> to vector<1024x32xbf16>
    %271 = vector.extract_strided_slice %270 {offsets = [0, 0], sizes = [64, 32], strides = [1, 1]} : vector<1024x32xbf16> to vector<64x32xbf16>
    %272 = vector.extract_strided_slice %270 {offsets = [0, 0], sizes = [64, 32], strides = [1, 1]} : vector<1024x32xbf16> to vector<64x32xbf16>
    %273 = vector.extract_strided_slice %270 {offsets = [64, 0], sizes = [64, 32], strides = [1, 1]} : vector<1024x32xbf16> to vector<64x32xbf16>
    %cst_73 = arith.constant 5.156250e-01 : bf16
    %274 = vector.broadcast %cst_73 : bf16 to vector<64x32xbf16>
    %275 = arith.mulf %274, %272 : vector<64x32xbf16>
    %cst_74 = arith.constant 4.843750e-01 : bf16
    %276 = vector.broadcast %cst_74 : bf16 to vector<64x32xbf16>
    %277 = arith.mulf %276, %273 : vector<64x32xbf16>
    %278 = arith.addf %275, %277 : vector<64x32xbf16>
    %279 = vector.extract_strided_slice %270 {offsets = [0, 0], sizes = [64, 32], strides = [1, 1]} : vector<1024x32xbf16> to vector<64x32xbf16>
    %280 = vector.extract_strided_slice %270 {offsets = [64, 0], sizes = [64, 32], strides = [1, 1]} : vector<1024x32xbf16> to vector<64x32xbf16>
    %cst_75 = arith.constant 3.222660e-02 : bf16
    %281 = vector.broadcast %cst_75 : bf16 to vector<64x32xbf16>
    %282 = arith.mulf %281, %279 : vector<64x32xbf16>
    %cst_76 = arith.constant 9.687500e-01 : bf16
    %283 = vector.broadcast %cst_76 : bf16 to vector<64x32xbf16>
    %284 = arith.mulf %283, %280 : vector<64x32xbf16>
    %285 = arith.addf %282, %284 : vector<64x32xbf16>
    %286 = vector.extract_strided_slice %270 {offsets = [64, 0], sizes = [64, 32], strides = [1, 1]} : vector<1024x32xbf16> to vector<64x32xbf16>
    %287 = vector.extract_strided_slice %270 {offsets = [128, 0], sizes = [64, 32], strides = [1, 1]} : vector<1024x32xbf16> to vector<64x32xbf16>
    %cst_77 = arith.constant 5.468750e-01 : bf16
    %288 = vector.broadcast %cst_77 : bf16 to vector<64x32xbf16>
    %289 = arith.mulf %288, %286 : vector<64x32xbf16>
    %cst_78 = arith.constant 4.511720e-01 : bf16
    %290 = vector.broadcast %cst_78 : bf16 to vector<64x32xbf16>
    %291 = arith.mulf %290, %287 : vector<64x32xbf16>
    %292 = arith.addf %289, %291 : vector<64x32xbf16>
    %293 = vector.extract_strided_slice %270 {offsets = [64, 0], sizes = [64, 32], strides = [1, 1]} : vector<1024x32xbf16> to vector<64x32xbf16>
    %294 = vector.extract_strided_slice %270 {offsets = [128, 0], sizes = [64, 32], strides = [1, 1]} : vector<1024x32xbf16> to vector<64x32xbf16>
    %cst_79 = arith.constant 6.445310e-02 : bf16
    %295 = vector.broadcast %cst_79 : bf16 to vector<64x32xbf16>
    %296 = arith.mulf %295, %293 : vector<64x32xbf16>
    %cst_80 = arith.constant 9.335930e-01 : bf16
    %297 = vector.broadcast %cst_80 : bf16 to vector<64x32xbf16>
    %298 = arith.mulf %297, %294 : vector<64x32xbf16>
    %299 = arith.addf %296, %298 : vector<64x32xbf16>
    %300 = vector.extract_strided_slice %270 {offsets = [128, 0], sizes = [64, 32], strides = [1, 1]} : vector<1024x32xbf16> to vector<64x32xbf16>
    %301 = vector.extract_strided_slice %270 {offsets = [192, 0], sizes = [64, 32], strides = [1, 1]} : vector<1024x32xbf16> to vector<64x32xbf16>
    %cst_81 = arith.constant 5.820310e-01 : bf16
    %302 = vector.broadcast %cst_81 : bf16 to vector<64x32xbf16>
    %303 = arith.mulf %302, %300 : vector<64x32xbf16>
    %cst_82 = arith.constant 4.199220e-01 : bf16
    %304 = vector.broadcast %cst_82 : bf16 to vector<64x32xbf16>
    %305 = arith.mulf %304, %301 : vector<64x32xbf16>
    %306 = arith.addf %303, %305 : vector<64x32xbf16>
    %307 = vector.extract_strided_slice %270 {offsets = [128, 0], sizes = [64, 32], strides = [1, 1]} : vector<1024x32xbf16> to vector<64x32xbf16>
    %308 = vector.extract_strided_slice %270 {offsets = [192, 0], sizes = [64, 32], strides = [1, 1]} : vector<1024x32xbf16> to vector<64x32xbf16>
    %cst_83 = arith.constant 9.667960e-02 : bf16
    %309 = vector.broadcast %cst_83 : bf16 to vector<64x32xbf16>
    %310 = arith.mulf %309, %307 : vector<64x32xbf16>
    %cst_84 = arith.constant 9.023430e-01 : bf16
    %311 = vector.broadcast %cst_84 : bf16 to vector<64x32xbf16>
    %312 = arith.mulf %311, %308 : vector<64x32xbf16>
    %313 = arith.addf %310, %312 : vector<64x32xbf16>
    %314 = vector.extract_strided_slice %270 {offsets = [192, 0], sizes = [64, 32], strides = [1, 1]} : vector<1024x32xbf16> to vector<64x32xbf16>
    %315 = vector.extract_strided_slice %270 {offsets = [256, 0], sizes = [64, 32], strides = [1, 1]} : vector<1024x32xbf16> to vector<64x32xbf16>
    %cst_85 = arith.constant 6.132810e-01 : bf16
    %316 = vector.broadcast %cst_85 : bf16 to vector<64x32xbf16>
    %317 = arith.mulf %316, %314 : vector<64x32xbf16>
    %cst_86 = arith.constant 3.867190e-01 : bf16
    %318 = vector.broadcast %cst_86 : bf16 to vector<64x32xbf16>
    %319 = arith.mulf %318, %315 : vector<64x32xbf16>
    %320 = arith.addf %317, %319 : vector<64x32xbf16>
    %321 = vector.extract_strided_slice %270 {offsets = [192, 0], sizes = [64, 32], strides = [1, 1]} : vector<1024x32xbf16> to vector<64x32xbf16>
    %322 = vector.extract_strided_slice %270 {offsets = [256, 0], sizes = [64, 32], strides = [1, 1]} : vector<1024x32xbf16> to vector<64x32xbf16>
    %cst_87 = arith.constant 1.289060e-01 : bf16
    %323 = vector.broadcast %cst_87 : bf16 to vector<64x32xbf16>
    %324 = arith.mulf %323, %321 : vector<64x32xbf16>
    %cst_88 = arith.constant 8.710930e-01 : bf16
    %325 = vector.broadcast %cst_88 : bf16 to vector<64x32xbf16>
    %326 = arith.mulf %325, %322 : vector<64x32xbf16>
    %327 = arith.addf %324, %326 : vector<64x32xbf16>
    %328 = vector.extract_strided_slice %270 {offsets = [256, 0], sizes = [64, 32], strides = [1, 1]} : vector<1024x32xbf16> to vector<64x32xbf16>
    %329 = vector.extract_strided_slice %270 {offsets = [320, 0], sizes = [64, 32], strides = [1, 1]} : vector<1024x32xbf16> to vector<64x32xbf16>
    %cst_89 = arith.constant 6.445310e-01 : bf16
    %330 = vector.broadcast %cst_89 : bf16 to vector<64x32xbf16>
    %331 = arith.mulf %330, %328 : vector<64x32xbf16>
    %cst_90 = arith.constant 3.554690e-01 : bf16
    %332 = vector.broadcast %cst_90 : bf16 to vector<64x32xbf16>
    %333 = arith.mulf %332, %329 : vector<64x32xbf16>
    %334 = arith.addf %331, %333 : vector<64x32xbf16>
    %335 = vector.extract_strided_slice %270 {offsets = [256, 0], sizes = [64, 32], strides = [1, 1]} : vector<1024x32xbf16> to vector<64x32xbf16>
    %336 = vector.extract_strided_slice %270 {offsets = [320, 0], sizes = [64, 32], strides = [1, 1]} : vector<1024x32xbf16> to vector<64x32xbf16>
    %cst_91 = arith.constant 1.611330e-01 : bf16
    %337 = vector.broadcast %cst_91 : bf16 to vector<64x32xbf16>
    %338 = arith.mulf %337, %335 : vector<64x32xbf16>
    %cst_92 = arith.constant 8.398430e-01 : bf16
    %339 = vector.broadcast %cst_92 : bf16 to vector<64x32xbf16>
    %340 = arith.mulf %339, %336 : vector<64x32xbf16>
    %341 = arith.addf %338, %340 : vector<64x32xbf16>
    %342 = vector.extract_strided_slice %270 {offsets = [320, 0], sizes = [64, 32], strides = [1, 1]} : vector<1024x32xbf16> to vector<64x32xbf16>
    %343 = vector.extract_strided_slice %270 {offsets = [384, 0], sizes = [64, 32], strides = [1, 1]} : vector<1024x32xbf16> to vector<64x32xbf16>
    %cst_93 = arith.constant 6.757810e-01 : bf16
    %344 = vector.broadcast %cst_93 : bf16 to vector<64x32xbf16>
    %345 = arith.mulf %344, %342 : vector<64x32xbf16>
    %cst_94 = arith.constant 3.222660e-01 : bf16
    %346 = vector.broadcast %cst_94 : bf16 to vector<64x32xbf16>
    %347 = arith.mulf %346, %343 : vector<64x32xbf16>
    %348 = arith.addf %345, %347 : vector<64x32xbf16>
    %349 = vector.extract_strided_slice %270 {offsets = [320, 0], sizes = [64, 32], strides = [1, 1]} : vector<1024x32xbf16> to vector<64x32xbf16>
    %350 = vector.extract_strided_slice %270 {offsets = [384, 0], sizes = [64, 32], strides = [1, 1]} : vector<1024x32xbf16> to vector<64x32xbf16>
    %cst_95 = arith.constant 1.933590e-01 : bf16
    %351 = vector.broadcast %cst_95 : bf16 to vector<64x32xbf16>
    %352 = arith.mulf %351, %349 : vector<64x32xbf16>
    %cst_96 = arith.constant 8.046880e-01 : bf16
    %353 = vector.broadcast %cst_96 : bf16 to vector<64x32xbf16>
    %354 = arith.mulf %353, %350 : vector<64x32xbf16>
    %355 = arith.addf %352, %354 : vector<64x32xbf16>
    %356 = vector.extract_strided_slice %270 {offsets = [384, 0], sizes = [64, 32], strides = [1, 1]} : vector<1024x32xbf16> to vector<64x32xbf16>
    %357 = vector.extract_strided_slice %270 {offsets = [448, 0], sizes = [64, 32], strides = [1, 1]} : vector<1024x32xbf16> to vector<64x32xbf16>
    %cst_97 = arith.constant 7.109380e-01 : bf16
    %358 = vector.broadcast %cst_97 : bf16 to vector<64x32xbf16>
    %359 = arith.mulf %358, %356 : vector<64x32xbf16>
    %cst_98 = arith.constant 2.910160e-01 : bf16
    %360 = vector.broadcast %cst_98 : bf16 to vector<64x32xbf16>
    %361 = arith.mulf %360, %357 : vector<64x32xbf16>
    %362 = arith.addf %359, %361 : vector<64x32xbf16>
    %363 = vector.extract_strided_slice %270 {offsets = [384, 0], sizes = [64, 32], strides = [1, 1]} : vector<1024x32xbf16> to vector<64x32xbf16>
    %364 = vector.extract_strided_slice %270 {offsets = [448, 0], sizes = [64, 32], strides = [1, 1]} : vector<1024x32xbf16> to vector<64x32xbf16>
    %cst_99 = arith.constant 2.255860e-01 : bf16
    %365 = vector.broadcast %cst_99 : bf16 to vector<64x32xbf16>
    %366 = arith.mulf %365, %363 : vector<64x32xbf16>
    %cst_100 = arith.constant 7.734380e-01 : bf16
    %367 = vector.broadcast %cst_100 : bf16 to vector<64x32xbf16>
    %368 = arith.mulf %367, %364 : vector<64x32xbf16>
    %369 = arith.addf %366, %368 : vector<64x32xbf16>
    %370 = vector.extract_strided_slice %270 {offsets = [448, 0], sizes = [64, 32], strides = [1, 1]} : vector<1024x32xbf16> to vector<64x32xbf16>
    %371 = vector.extract_strided_slice %270 {offsets = [512, 0], sizes = [64, 32], strides = [1, 1]} : vector<1024x32xbf16> to vector<64x32xbf16>
    %cst_101 = arith.constant 7.421880e-01 : bf16
    %372 = vector.broadcast %cst_101 : bf16 to vector<64x32xbf16>
    %373 = arith.mulf %372, %370 : vector<64x32xbf16>
    %cst_102 = arith.constant 2.578130e-01 : bf16
    %374 = vector.broadcast %cst_102 : bf16 to vector<64x32xbf16>
    %375 = arith.mulf %374, %371 : vector<64x32xbf16>
    %376 = arith.addf %373, %375 : vector<64x32xbf16>
    %377 = vector.extract_strided_slice %270 {offsets = [448, 0], sizes = [64, 32], strides = [1, 1]} : vector<1024x32xbf16> to vector<64x32xbf16>
    %378 = vector.extract_strided_slice %270 {offsets = [512, 0], sizes = [64, 32], strides = [1, 1]} : vector<1024x32xbf16> to vector<64x32xbf16>
    %cst_103 = arith.constant 2.578130e-01 : bf16
    %379 = vector.broadcast %cst_103 : bf16 to vector<64x32xbf16>
    %380 = arith.mulf %379, %377 : vector<64x32xbf16>
    %cst_104 = arith.constant 7.421880e-01 : bf16
    %381 = vector.broadcast %cst_104 : bf16 to vector<64x32xbf16>
    %382 = arith.mulf %381, %378 : vector<64x32xbf16>
    %383 = arith.addf %380, %382 : vector<64x32xbf16>
    %384 = vector.extract_strided_slice %270 {offsets = [512, 0], sizes = [64, 32], strides = [1, 1]} : vector<1024x32xbf16> to vector<64x32xbf16>
    %385 = vector.extract_strided_slice %270 {offsets = [576, 0], sizes = [64, 32], strides = [1, 1]} : vector<1024x32xbf16> to vector<64x32xbf16>
    %cst_105 = arith.constant 7.734380e-01 : bf16
    %386 = vector.broadcast %cst_105 : bf16 to vector<64x32xbf16>
    %387 = arith.mulf %386, %384 : vector<64x32xbf16>
    %cst_106 = arith.constant 2.255860e-01 : bf16
    %388 = vector.broadcast %cst_106 : bf16 to vector<64x32xbf16>
    %389 = arith.mulf %388, %385 : vector<64x32xbf16>
    %390 = arith.addf %387, %389 : vector<64x32xbf16>
    %391 = vector.extract_strided_slice %270 {offsets = [512, 0], sizes = [64, 32], strides = [1, 1]} : vector<1024x32xbf16> to vector<64x32xbf16>
    %392 = vector.extract_strided_slice %270 {offsets = [576, 0], sizes = [64, 32], strides = [1, 1]} : vector<1024x32xbf16> to vector<64x32xbf16>
    %cst_107 = arith.constant 2.910160e-01 : bf16
    %393 = vector.broadcast %cst_107 : bf16 to vector<64x32xbf16>
    %394 = arith.mulf %393, %391 : vector<64x32xbf16>
    %cst_108 = arith.constant 7.109380e-01 : bf16
    %395 = vector.broadcast %cst_108 : bf16 to vector<64x32xbf16>
    %396 = arith.mulf %395, %392 : vector<64x32xbf16>
    %397 = arith.addf %394, %396 : vector<64x32xbf16>
    %398 = vector.extract_strided_slice %270 {offsets = [576, 0], sizes = [64, 32], strides = [1, 1]} : vector<1024x32xbf16> to vector<64x32xbf16>
    %399 = vector.extract_strided_slice %270 {offsets = [640, 0], sizes = [64, 32], strides = [1, 1]} : vector<1024x32xbf16> to vector<64x32xbf16>
    %cst_109 = arith.constant 8.046880e-01 : bf16
    %400 = vector.broadcast %cst_109 : bf16 to vector<64x32xbf16>
    %401 = arith.mulf %400, %398 : vector<64x32xbf16>
    %cst_110 = arith.constant 1.933590e-01 : bf16
    %402 = vector.broadcast %cst_110 : bf16 to vector<64x32xbf16>
    %403 = arith.mulf %402, %399 : vector<64x32xbf16>
    %404 = arith.addf %401, %403 : vector<64x32xbf16>
    %405 = vector.extract_strided_slice %270 {offsets = [576, 0], sizes = [64, 32], strides = [1, 1]} : vector<1024x32xbf16> to vector<64x32xbf16>
    %406 = vector.extract_strided_slice %270 {offsets = [640, 0], sizes = [64, 32], strides = [1, 1]} : vector<1024x32xbf16> to vector<64x32xbf16>
    %cst_111 = arith.constant 3.222660e-01 : bf16
    %407 = vector.broadcast %cst_111 : bf16 to vector<64x32xbf16>
    %408 = arith.mulf %407, %405 : vector<64x32xbf16>
    %cst_112 = arith.constant 6.757810e-01 : bf16
    %409 = vector.broadcast %cst_112 : bf16 to vector<64x32xbf16>
    %410 = arith.mulf %409, %406 : vector<64x32xbf16>
    %411 = arith.addf %408, %410 : vector<64x32xbf16>
    %412 = vector.extract_strided_slice %270 {offsets = [640, 0], sizes = [64, 32], strides = [1, 1]} : vector<1024x32xbf16> to vector<64x32xbf16>
    %413 = vector.extract_strided_slice %270 {offsets = [704, 0], sizes = [64, 32], strides = [1, 1]} : vector<1024x32xbf16> to vector<64x32xbf16>
    %cst_113 = arith.constant 8.398430e-01 : bf16
    %414 = vector.broadcast %cst_113 : bf16 to vector<64x32xbf16>
    %415 = arith.mulf %414, %412 : vector<64x32xbf16>
    %cst_114 = arith.constant 1.611330e-01 : bf16
    %416 = vector.broadcast %cst_114 : bf16 to vector<64x32xbf16>
    %417 = arith.mulf %416, %413 : vector<64x32xbf16>
    %418 = arith.addf %415, %417 : vector<64x32xbf16>
    %419 = vector.extract_strided_slice %270 {offsets = [640, 0], sizes = [64, 32], strides = [1, 1]} : vector<1024x32xbf16> to vector<64x32xbf16>
    %420 = vector.extract_strided_slice %270 {offsets = [704, 0], sizes = [64, 32], strides = [1, 1]} : vector<1024x32xbf16> to vector<64x32xbf16>
    %cst_115 = arith.constant 3.554690e-01 : bf16
    %421 = vector.broadcast %cst_115 : bf16 to vector<64x32xbf16>
    %422 = arith.mulf %421, %419 : vector<64x32xbf16>
    %cst_116 = arith.constant 6.445310e-01 : bf16
    %423 = vector.broadcast %cst_116 : bf16 to vector<64x32xbf16>
    %424 = arith.mulf %423, %420 : vector<64x32xbf16>
    %425 = arith.addf %422, %424 : vector<64x32xbf16>
    %426 = vector.extract_strided_slice %270 {offsets = [704, 0], sizes = [64, 32], strides = [1, 1]} : vector<1024x32xbf16> to vector<64x32xbf16>
    %427 = vector.extract_strided_slice %270 {offsets = [768, 0], sizes = [64, 32], strides = [1, 1]} : vector<1024x32xbf16> to vector<64x32xbf16>
    %cst_117 = arith.constant 8.710930e-01 : bf16
    %428 = vector.broadcast %cst_117 : bf16 to vector<64x32xbf16>
    %429 = arith.mulf %428, %426 : vector<64x32xbf16>
    %cst_118 = arith.constant 1.289060e-01 : bf16
    %430 = vector.broadcast %cst_118 : bf16 to vector<64x32xbf16>
    %431 = arith.mulf %430, %427 : vector<64x32xbf16>
    %432 = arith.addf %429, %431 : vector<64x32xbf16>
    %433 = vector.extract_strided_slice %270 {offsets = [704, 0], sizes = [64, 32], strides = [1, 1]} : vector<1024x32xbf16> to vector<64x32xbf16>
    %434 = vector.extract_strided_slice %270 {offsets = [768, 0], sizes = [64, 32], strides = [1, 1]} : vector<1024x32xbf16> to vector<64x32xbf16>
    %cst_119 = arith.constant 3.867190e-01 : bf16
    %435 = vector.broadcast %cst_119 : bf16 to vector<64x32xbf16>
    %436 = arith.mulf %435, %433 : vector<64x32xbf16>
    %cst_120 = arith.constant 6.132810e-01 : bf16
    %437 = vector.broadcast %cst_120 : bf16 to vector<64x32xbf16>
    %438 = arith.mulf %437, %434 : vector<64x32xbf16>
    %439 = arith.addf %436, %438 : vector<64x32xbf16>
    %440 = vector.extract_strided_slice %270 {offsets = [768, 0], sizes = [64, 32], strides = [1, 1]} : vector<1024x32xbf16> to vector<64x32xbf16>
    %441 = vector.extract_strided_slice %270 {offsets = [832, 0], sizes = [64, 32], strides = [1, 1]} : vector<1024x32xbf16> to vector<64x32xbf16>
    %cst_121 = arith.constant 9.023430e-01 : bf16
    %442 = vector.broadcast %cst_121 : bf16 to vector<64x32xbf16>
    %443 = arith.mulf %442, %440 : vector<64x32xbf16>
    %cst_122 = arith.constant 9.667960e-02 : bf16
    %444 = vector.broadcast %cst_122 : bf16 to vector<64x32xbf16>
    %445 = arith.mulf %444, %441 : vector<64x32xbf16>
    %446 = arith.addf %443, %445 : vector<64x32xbf16>
    %447 = vector.extract_strided_slice %270 {offsets = [768, 0], sizes = [64, 32], strides = [1, 1]} : vector<1024x32xbf16> to vector<64x32xbf16>
    %448 = vector.extract_strided_slice %270 {offsets = [832, 0], sizes = [64, 32], strides = [1, 1]} : vector<1024x32xbf16> to vector<64x32xbf16>
    %cst_123 = arith.constant 4.199220e-01 : bf16
    %449 = vector.broadcast %cst_123 : bf16 to vector<64x32xbf16>
    %450 = arith.mulf %449, %447 : vector<64x32xbf16>
    %cst_124 = arith.constant 5.820310e-01 : bf16
    %451 = vector.broadcast %cst_124 : bf16 to vector<64x32xbf16>
    %452 = arith.mulf %451, %448 : vector<64x32xbf16>
    %453 = arith.addf %450, %452 : vector<64x32xbf16>
    %454 = vector.extract_strided_slice %270 {offsets = [832, 0], sizes = [64, 32], strides = [1, 1]} : vector<1024x32xbf16> to vector<64x32xbf16>
    %455 = vector.extract_strided_slice %270 {offsets = [896, 0], sizes = [64, 32], strides = [1, 1]} : vector<1024x32xbf16> to vector<64x32xbf16>
    %cst_125 = arith.constant 9.335930e-01 : bf16
    %456 = vector.broadcast %cst_125 : bf16 to vector<64x32xbf16>
    %457 = arith.mulf %456, %454 : vector<64x32xbf16>
    %cst_126 = arith.constant 6.445310e-02 : bf16
    %458 = vector.broadcast %cst_126 : bf16 to vector<64x32xbf16>
    %459 = arith.mulf %458, %455 : vector<64x32xbf16>
    %460 = arith.addf %457, %459 : vector<64x32xbf16>
    %461 = vector.extract_strided_slice %270 {offsets = [832, 0], sizes = [64, 32], strides = [1, 1]} : vector<1024x32xbf16> to vector<64x32xbf16>
    %462 = vector.extract_strided_slice %270 {offsets = [896, 0], sizes = [64, 32], strides = [1, 1]} : vector<1024x32xbf16> to vector<64x32xbf16>
    %cst_127 = arith.constant 4.511720e-01 : bf16
    %463 = vector.broadcast %cst_127 : bf16 to vector<64x32xbf16>
    %464 = arith.mulf %463, %461 : vector<64x32xbf16>
    %cst_128 = arith.constant 5.468750e-01 : bf16
    %465 = vector.broadcast %cst_128 : bf16 to vector<64x32xbf16>
    %466 = arith.mulf %465, %462 : vector<64x32xbf16>
    %467 = arith.addf %464, %466 : vector<64x32xbf16>
    %468 = vector.extract_strided_slice %270 {offsets = [896, 0], sizes = [64, 32], strides = [1, 1]} : vector<1024x32xbf16> to vector<64x32xbf16>
    %469 = vector.extract_strided_slice %270 {offsets = [960, 0], sizes = [64, 32], strides = [1, 1]} : vector<1024x32xbf16> to vector<64x32xbf16>
    %cst_129 = arith.constant 9.687500e-01 : bf16
    %470 = vector.broadcast %cst_129 : bf16 to vector<64x32xbf16>
    %471 = arith.mulf %470, %468 : vector<64x32xbf16>
    %cst_130 = arith.constant 3.222660e-02 : bf16
    %472 = vector.broadcast %cst_130 : bf16 to vector<64x32xbf16>
    %473 = arith.mulf %472, %469 : vector<64x32xbf16>
    %474 = arith.addf %471, %473 : vector<64x32xbf16>
    %475 = vector.extract_strided_slice %270 {offsets = [896, 0], sizes = [64, 32], strides = [1, 1]} : vector<1024x32xbf16> to vector<64x32xbf16>
    %476 = vector.extract_strided_slice %270 {offsets = [960, 0], sizes = [64, 32], strides = [1, 1]} : vector<1024x32xbf16> to vector<64x32xbf16>
    %cst_131 = arith.constant 4.843750e-01 : bf16
    %477 = vector.broadcast %cst_131 : bf16 to vector<64x32xbf16>
    %478 = arith.mulf %477, %475 : vector<64x32xbf16>
    %cst_132 = arith.constant 5.156250e-01 : bf16
    %479 = vector.broadcast %cst_132 : bf16 to vector<64x32xbf16>
    %480 = arith.mulf %479, %476 : vector<64x32xbf16>
    %481 = arith.addf %478, %480 : vector<64x32xbf16>
    %482 = vector.extract_strided_slice %270 {offsets = [896, 0], sizes = [64, 32], strides = [1, 1]} : vector<1024x32xbf16> to vector<64x32xbf16>
    %483 = vector.extract_strided_slice %270 {offsets = [960, 0], sizes = [64, 32], strides = [1, 1]} : vector<1024x32xbf16> to vector<64x32xbf16>
    %cst_133 = arith.constant 0.000000e+00 : bf16
    %484 = vector.broadcast %cst_133 : bf16 to vector<64x32xbf16>
    %485 = arith.mulf %484, %482 : vector<64x32xbf16>
    %cst_134 = arith.constant 1.000000e+00 : bf16
    %486 = vector.broadcast %cst_134 : bf16 to vector<64x32xbf16>
    %487 = arith.mulf %486, %483 : vector<64x32xbf16>
    %488 = arith.addf %485, %487 : vector<64x32xbf16>
    %489 = tpu.concatenate %271, %278, %285, %292, %299, %306, %313, %320, %327, %334, %341, %348, %355, %362, %369, %376 in 1 : vector<64x32xbf16>, vector<64x32xbf16>, vector<64x32xbf16>, vector<64x32xbf16>, vector<64x32xbf16>, vector<64x32xbf16>, vector<64x32xbf16>, vector<64x32xbf16>, vector<64x32xbf16>, vector<64x32xbf16>, vector<64x32xbf16>, vector<64x32xbf16>, vector<64x32xbf16>, vector<64x32xbf16>, vector<64x32xbf16>, vector<64x32xbf16> -> vector<64x512xbf16>
    %490 = tpu.concatenate %383, %390, %397, %404, %411, %418, %425, %432, %439, %446, %453, %460, %467, %474, %481, %488 in 1 : vector<64x32xbf16>, vector<64x32xbf16>, vector<64x32xbf16>, vector<64x32xbf16>, vector<64x32xbf16>, vector<64x32xbf16>, vector<64x32xbf16>, vector<64x32xbf16>, vector<64x32xbf16>, vector<64x32xbf16>, vector<64x32xbf16>, vector<64x32xbf16>, vector<64x32xbf16>, vector<64x32xbf16>, vector<64x32xbf16>, vector<64x32xbf16> -> vector<64x512xbf16>
    %491 = tpu.concatenate %489, %490 in 1 : vector<64x512xbf16>, vector<64x512xbf16> -> vector<64x1024xbf16>
    %cst_135 = arith.constant 0.000000e+00 : bf16
    %492 = vector.broadcast %cst_135 : bf16 to vector<64x33xbf16>
    %493 = tpu.concatenate %492, %491, %492 in 1 : vector<64x33xbf16>, vector<64x1024xbf16>, vector<64x33xbf16> -> vector<64x1090xbf16>
    %494 = tpu.iota {dimensions = array<i32: 1>} : vector<1x1024xi32>
    %c32_i32 = arith.constant 32 : i32
    %c0_i32_136 = arith.constant 0 : i32
    %495 = arith.cmpi eq, %c32_i32, %c0_i32_136 : i32
    %c1_i32_137 = arith.constant 1 : i32
    %496 = arith.select %495, %c1_i32_137, %c32_i32 : i32
    %497 = vector.broadcast %496 : i32 to vector<1x1024xi32>
    %498 = arith.remsi %494, %497 : vector<1x1024xi32>
    %c0_i32_138 = arith.constant 0 : i32
    %499 = vector.broadcast %c0_i32_138 : i32 to vector<1x1024xi32>
    %500 = arith.cmpi ne, %498, %499 : vector<1x1024xi32>
    %c0_i32_139 = arith.constant 0 : i32
    %501 = vector.broadcast %c0_i32_139 : i32 to vector<1x1024xi32>
    %502 = arith.cmpi slt, %498, %501 : vector<1x1024xi32>
    %c0_i32_140 = arith.constant 0 : i32
    %503 = arith.cmpi slt, %496, %c0_i32_140 : i32
    %504 = vector.broadcast %503 : i1 to vector<1x1024xi1>
    %505 = vector.broadcast %504 : vector<1x1024xi1> to vector<1x1024xi1>
    %506 = arith.xori %502, %505 : vector<1x1024xi1>
    %507 = arith.andi %506, %500 : vector<1x1024xi1>
    %508 = vector.broadcast %496 : i32 to vector<1x1024xi32>
    %509 = arith.addi %498, %508 : vector<1x1024xi32>
    %510 = arith.select %507, %509, %498 : vector<1x1024xi1>, vector<1x1024xi32>
    %c0_i32_141 = arith.constant 0 : i32
    %511 = vector.broadcast %c0_i32_141 : i32 to vector<1x1024xi32>
    %512 = arith.cmpi sgt, %510, %511 : vector<1x1024xi32>
    %c31_i32 = arith.constant 31 : i32
    %513 = vector.broadcast %c31_i32 : i32 to vector<1x1024xi32>
    %514 = arith.cmpi slt, %510, %513 : vector<1x1024xi32>
    %515 = vector.extract_strided_slice %493 {offsets = [0, 0], sizes = [64, 1024], strides = [1, 1]} : vector<64x1090xbf16> to vector<64x1024xbf16>
    %cst_142 = arith.constant 0.000000e+00 : bf16
    %516 = vector.broadcast %cst_142 : bf16 to vector<64x1024xbf16>
    %517 = vector.shape_cast %512 : vector<1x1024xi1> to vector<1x1024xi1>
    %518 = vector.broadcast %517 : vector<1x1024xi1> to vector<64x1024xi1>
    %519 = arith.select %518, %515, %516 : vector<64x1024xi1>, vector<64x1024xbf16>
    %520 = vector.extract_strided_slice %493 {offsets = [0, 1], sizes = [64, 1024], strides = [1, 1]} : vector<64x1090xbf16> to vector<64x1024xbf16>
    %521 = vector.extract_strided_slice %493 {offsets = [0, 2], sizes = [64, 1024], strides = [1, 1]} : vector<64x1090xbf16> to vector<64x1024xbf16>
    %cst_143 = arith.constant 0.000000e+00 : bf16
    %522 = vector.broadcast %cst_143 : bf16 to vector<64x1024xbf16>
    %523 = vector.shape_cast %514 : vector<1x1024xi1> to vector<1x1024xi1>
    %524 = vector.broadcast %523 : vector<1x1024xi1> to vector<64x1024xi1>
    %525 = arith.select %524, %521, %522 : vector<64x1024xi1>, vector<64x1024xbf16>
    %526 = vector.extract_strided_slice %493 {offsets = [0, 32], sizes = [64, 1024], strides = [1, 1]} : vector<64x1090xbf16> to vector<64x1024xbf16>
    %cst_144 = arith.constant 0.000000e+00 : bf16
    %527 = vector.broadcast %cst_144 : bf16 to vector<64x1024xbf16>
    %528 = vector.shape_cast %512 : vector<1x1024xi1> to vector<1x1024xi1>
    %529 = vector.broadcast %528 : vector<1x1024xi1> to vector<64x1024xi1>
    %530 = arith.select %529, %526, %527 : vector<64x1024xi1>, vector<64x1024xbf16>
    %531 = vector.extract_strided_slice %493 {offsets = [0, 33], sizes = [64, 1024], strides = [1, 1]} : vector<64x1090xbf16> to vector<64x1024xbf16>
    %532 = vector.extract_strided_slice %493 {offsets = [0, 34], sizes = [64, 1024], strides = [1, 1]} : vector<64x1090xbf16> to vector<64x1024xbf16>
    %cst_145 = arith.constant 0.000000e+00 : bf16
    %533 = vector.broadcast %cst_145 : bf16 to vector<64x1024xbf16>
    %534 = vector.shape_cast %514 : vector<1x1024xi1> to vector<1x1024xi1>
    %535 = vector.broadcast %534 : vector<1x1024xi1> to vector<64x1024xi1>
    %536 = arith.select %535, %532, %533 : vector<64x1024xi1>, vector<64x1024xbf16>
    %537 = vector.extract_strided_slice %493 {offsets = [0, 64], sizes = [64, 1024], strides = [1, 1]} : vector<64x1090xbf16> to vector<64x1024xbf16>
    %cst_146 = arith.constant 0.000000e+00 : bf16
    %538 = vector.broadcast %cst_146 : bf16 to vector<64x1024xbf16>
    %539 = vector.shape_cast %512 : vector<1x1024xi1> to vector<1x1024xi1>
    %540 = vector.broadcast %539 : vector<1x1024xi1> to vector<64x1024xi1>
    %541 = arith.select %540, %537, %538 : vector<64x1024xi1>, vector<64x1024xbf16>
    %542 = vector.extract_strided_slice %493 {offsets = [0, 65], sizes = [64, 1024], strides = [1, 1]} : vector<64x1090xbf16> to vector<64x1024xbf16>
    %543 = vector.extract_strided_slice %493 {offsets = [0, 66], sizes = [64, 1024], strides = [1, 1]} : vector<64x1090xbf16> to vector<64x1024xbf16>
    %cst_147 = arith.constant 0.000000e+00 : bf16
    %544 = vector.broadcast %cst_147 : bf16 to vector<64x1024xbf16>
    %545 = vector.shape_cast %514 : vector<1x1024xi1> to vector<1x1024xi1>
    %546 = vector.broadcast %545 : vector<1x1024xi1> to vector<64x1024xi1>
    %547 = arith.select %546, %543, %544 : vector<64x1024xi1>, vector<64x1024xbf16>
    %548 = tpu.concatenate %519, %520, %525, %530, %531, %536, %541, %542, %547 in 0 : vector<64x1024xbf16>, vector<64x1024xbf16>, vector<64x1024xbf16>, vector<64x1024xbf16>, vector<64x1024xbf16>, vector<64x1024xbf16>, vector<64x1024xbf16>, vector<64x1024xbf16>, vector<64x1024xbf16> -> vector<576x1024xbf16>
    %c0_148 = arith.constant 0 : index
    %c0_149 = arith.constant 0 : index
    %549 = vector.load %arg8[%c0_148, %c0_149] : memref<1x576xbf16, #tpu.memory_space<vmem>>, vector<1x576xbf16>
    %cst_150 = arith.constant dense<0.000000e+00> : vector<1x1024xf32>
    %550 = tpu.matmul %549, %548, %cst_150 {dimension_numbers = #tpu.dot_dimension_numbers<[1], [0], [0], [1], [0, 0, 1, 1], [], []>} : vector<1x576xbf16>, vector<576x1024xbf16>, vector<1x1024xf32> -> vector<1x1024xf32>
    %c0_151 = arith.constant 0 : index
    %c0_152 = arith.constant 0 : index
    %551 = vector.load %arg9[%c0_151, %c0_152] : memref<1x1xf32, #tpu.memory_space<vmem>>, vector<1x1xf32>
    %552 = vector.broadcast %551 : vector<1x1xf32> to vector<1x1024xf32>
    %553 = arith.addf %550, %552 : vector<1x1024xf32>
    %cst_153 = arith.constant 5.000000e-01 : f32
    %554 = vector.broadcast %cst_153 : f32 to vector<1x1024xf32>
    %555 = arith.mulf %554, %553 : vector<1x1024xf32>
    %556 = math.tanh %555 : vector<1x1024xf32>
    %cst_154 = arith.constant 1.000000e+00 : f32
    %557 = vector.broadcast %cst_154 : f32 to vector<1x1024xf32>
    %558 = arith.addf %556, %557 : vector<1x1024xf32>
    %cst_155 = arith.constant 5.000000e-01 : f32
    %559 = vector.broadcast %cst_155 : f32 to vector<1x1024xf32>
    %560 = arith.mulf %559, %558 : vector<1x1024xf32>
    %c0_156 = arith.constant 0 : index
    %c0_157 = arith.constant 0 : index
    %c0_158 = arith.constant 0 : index
    %561 = vector.load %arg10[%c0_156, %c0_157, %c0_158] : memref<1x1x1024xf32, #tpu.memory_space<vmem>>, vector<1x1x1024xf32>
    %562 = vector.shape_cast %561 : vector<1x1x1024xf32> to vector<1x1024xf32>
    %563 = vector.shape_cast %560 : vector<1x1024xf32> to vector<1x1x1024xf32>
    tpu.vector_store %arg10[%c0_156, %c0_157, %c0_158], %563 {strides = array<i32>} : memref<1x1x1024xf32, #tpu.memory_space<vmem>>, vector<1x1x1024xf32>,
    return
  }
  func.func @transform_0(%arg0: i32) -> (i32, i32, i32) {
    %c0_i32 = arith.constant 0 : i32
    %c0_i32_0 = arith.constant 0 : i32
    %c0_i32_1 = arith.constant 0 : i32
    return %arg0, %c0_i32, %c0_i32_0 : i32, i32, i32
  }
  func.func @transform_1(%arg0: i32) -> (i32, i32) {
    %c0_i32 = arith.constant 0 : i32
    %c0_i32_0 = arith.constant 0 : i32
    %c0_i32_1 = arith.constant 0 : i32
    return %c0_i32, %c0_i32_0 : i32, i32
  }
  func.func @transform_2(%arg0: i32) -> (i32, i32) {
    %c0_i32 = arith.constant 0 : i32
    %c0_i32_0 = arith.constant 0 : i32
    %c0_i32_1 = arith.constant 0 : i32
    return %c0_i32, %c0_i32_0 : i32, i32
  }
  func.func @transform_3(%arg0: i32) -> (i32, i32) {
    %c0_i32 = arith.constant 0 : i32
    %c0_i32_0 = arith.constant 0 : i32
    %c0_i32_1 = arith.constant 0 : i32
    return %c0_i32, %c0_i32_0 : i32, i32
  }
  func.func @transform_4(%arg0: i32) -> (i32, i32) {
    %c0_i32 = arith.constant 0 : i32
    %c0_i32_0 = arith.constant 0 : i32
    %c0_i32_1 = arith.constant 0 : i32
    return %c0_i32, %c0_i32_0 : i32, i32
  }
  func.func @transform_5(%arg0: i32) -> (i32, i32) {
    %c0_i32 = arith.constant 0 : i32
    %c0_i32_0 = arith.constant 0 : i32
    %c0_i32_1 = arith.constant 0 : i32
    return %c0_i32, %c0_i32_0 : i32, i32
  }
  func.func @transform_6(%arg0: i32) -> (i32, i32) {
    %c0_i32 = arith.constant 0 : i32
    %c0_i32_0 = arith.constant 0 : i32
    %c0_i32_1 = arith.constant 0 : i32
    return %c0_i32, %c0_i32_0 : i32, i32
  }
  func.func @transform_7(%arg0: i32) -> (i32, i32) {
    %c0_i32 = arith.constant 0 : i32
    %c0_i32_0 = arith.constant 0 : i32
    %c0_i32_1 = arith.constant 0 : i32
    return %c0_i32, %c0_i32_0 : i32, i32
  }
  func.func @transform_8(%arg0: i32) -> (i32, i32) {
    %c0_i32 = arith.constant 0 : i32
    %c0_i32_0 = arith.constant 0 : i32
    %c0_i32_1 = arith.constant 0 : i32
    return %c0_i32, %c0_i32_0 : i32, i32
  }
  func.func @transform_9(%arg0: i32) -> (i32, i32, i32) {
    %c0_i32 = arith.constant 0 : i32
    %c0_i32_0 = arith.constant 0 : i32
    %c0_i32_1 = arith.constant 0 : i32
    return %arg0, %c0_i32, %c0_i32_0 : i32, i32, i32
  }
}

</mosaic_0001>

<llo_original>
// kernel: decode_module_forward.1
$region0: #{decode_module_forward.1}
  #allocation0 [shape = 'u32[]', space=smem, size = 0x4, offset = 0x4, fixed_abs, tag = 'smem constant byte address 0x4 - core index']
  #allocation1 [shape = 'u32[144,128]{1,0:T(1,128)}', space=vmem, size = 0x12000, scoped, tag = 'internal scratch']
  #allocation2 [shape = 'f32[1,1]{1,0:T(1,128)S(1)}', space=vmem, size = 0x200, scoped, tag = 'scoped memory for decode_module_forward.1']
  %s0 = inlined_call_operand.vmem [shape: bf16[2,16,64], index: 0, kind: input, shape index: {}]
  %s1 = inlined_call_operand.vmem [shape: bf16[16,144], index: 1, kind: input, shape index: {}]
  %s2 = inlined_call_operand.vmem [shape: f32[16,1], index: 2, kind: input, shape index: {}]
  %s3 = inlined_call_operand.vmem [shape: bf16[8,16], index: 3, kind: input, shape index: {}]
  %s4 = inlined_call_operand.vmem [shape: bf16[64,144], index: 4, kind: input, shape index: {}]
  %s5 = inlined_call_operand.vmem [shape: f32[64,1], index: 5, kind: input, shape index: {}]
  %s6 = inlined_call_operand.vmem [shape: bf16[16,32], index: 6, kind: input, shape index: {}]
  %s7 = inlined_call_operand.vmem [shape: bf16[1,576], index: 7, kind: input, shape index: {}]
  %s8 = inlined_call_operand.<no memory space> [shape: f32[1,1], index: 8, kind: input, shape index: {}]
  %s9 = inlined_call_operand.vmem [shape: f32[2,1,1024], index: 9, kind: output, shape index: {}]
  %s10 = sld [smem:[#allocation0]]
  $region69: #{decode_module_forward.1} parent=0
    _
  %s12 = ssub.s32 1, %s10
  %s13 = scalar_select 0, %s12, %s10
  %v14 = vstv %s8
  %15 = vst [vmem:[#allocation2] sm:$0x1] %v14
  loop: start=0, step=1, limit=4
  $region2: #{decode_module_forward.1} parent=0 // loop_pre_header
    _
  $region3: #{decode_module_forward.1} parent=0 // loop_header
    %s17 = sphi 0, %s21
    %p18 = scmp.ge.s32.totalorder %s17, 4
    %s27 = sphi 0, %s29
    %s30 = sphi 0, %s27
    %s31 = sphi 0, %s30
    %s47 = sphi 0, %s31
    %s51 = sphi 0, %s51
    %s53 = sphi 0, %s51
    %s54 = sphi 0, %s53
    %s68 = sphi 0, %s54
    %s72 = sphi 0, %s72
    %s74 = sphi 0, %s72
    %s75 = sphi 0, %s74
    %s89 = sphi 0, %s75
    %s93 = sphi 0, %s93
    %s95 = sphi 0, %s93
    %s96 = sphi 0, %s95
    %s110 = sphi 0, %s96
    %s114 = sphi 0, %s114
    %s116 = sphi 0, %s114
    %s117 = sphi 0, %s116
    %s131 = sphi 0, %s117
    %s135 = sphi 0, %s135
    %s137 = sphi 0, %s135
    %s138 = sphi 0, %s137
    %s152 = sphi 0, %s138
    %s156 = sphi 0, %s156
    %s158 = sphi 0, %s156
    %s159 = sphi 0, %s158
    %s173 = sphi 0, %s159
    %s177 = sphi 0, %s177
    %s179 = sphi 0, %s177
    %s180 = sphi 0, %s179
    %s194 = sphi 0, %s180
    %s198 = sphi 0, %s198
    %s200 = sphi 0, %s198
    %s201 = sphi 0, %s200
    %s215 = sphi 0, %s201
    %s221 = sphi 0, %s223
    %s224 = sphi 0, %s221
    %s225 = sphi 0, %s224
    %s241 = sphi 0, %s225
  $region4: #{decode_module_forward.1} parent=0 // loop_header_branch
    %20 = sbr.rel (%p18) target = $region8
  $region5: #{decode_module_forward.1} parent=0 // loop_body
    %s22 = ssub.s32 %s17, 1
    %s23 = ssub.s32 %s17, 2
    %s24 = sadd.s32 %s17, 1
    %s25 = ssub.s32 %s17, %s24
    %p26 = scmp.eq.s32.totalorder %s25, 0
    %s28 = sadd.s32 %s27, 1
    %s29 = scalar_select %p26, %s27, %s28
    %p32 = pneg %p26
    %p33 = scmp.eq.s32.totalorder %s17, 1
    %p34 = por %p32, %p33
    %p35 = scmp.ne.s32.totalorder %s27, %s30
    %p36 = scmp.eq.s32.totalorder %s17, 0
    %p37 = por %p35, %p36
    %p38 = scmp.ne.s32.totalorder %s27, %s30
    %p39 = scmp.eq.s32.totalorder %s22, 1
    %p40 = por %p38, %p39
    %p41 = scmp.ne.s32.totalorder %s30, %s31
    %p42 = scmp.eq.s32.totalorder %s22, 0
    %p43 = por %p41, %p42
    %p44 = scmp.ne.s32.totalorder %s30, %s31
    %p45 = scmp.eq.s32.totalorder %s23, 1
    %p46 = por %p44, %p45
    %p48 = scmp.ne.s32.totalorder %s31, %s47
    %p49 = scmp.eq.s32.totalorder %s23, 0
    %p50 = por %p48, %p49
    %s52 = sadd.s32 %s51, 1
    %p55 = scmp.eq.s32.totalorder %s17, 1
    %p56 = scmp.ne.s32.totalorder %s51, %s53
    %p57 = scmp.eq.s32.totalorder %s17, 0
    %p58 = por %p56, %p57
    %p59 = scmp.ne.s32.totalorder %s51, %s53
    %p60 = scmp.eq.s32.totalorder %s22, 1
    %p61 = por %p59, %p60
    %p62 = scmp.ne.s32.totalorder %s53, %s54
    %p63 = scmp.eq.s32.totalorder %s22, 0
    %p64 = por %p62, %p63
    %p65 = scmp.ne.s32.totalorder %s53, %s54
    %p66 = scmp.eq.s32.totalorder %s23, 1
    %p67 = por %p65, %p66
    %p69 = scmp.ne.s32.totalorder %s54, %s68
    %p70 = scmp.eq.s32.totalorder %s23, 0
    %p71 = por %p69, %p70
    %s73 = sadd.s32 %s72, 1
    %p76 = scmp.eq.s32.totalorder %s17, 1
    %p77 = scmp.ne.s32.totalorder %s72, %s74
    %p78 = scmp.eq.s32.totalorder %s17, 0
    %p79 = por %p77, %p78
    %p80 = scmp.ne.s32.totalorder %s72, %s74
    %p81 = scmp.eq.s32.totalorder %s22, 1
    %p82 = por %p80, %p81
    %p83 = scmp.ne.s32.totalorder %s74, %s75
    %p84 = scmp.eq.s32.totalorder %s22, 0
    %p85 = por %p83, %p84
    %p86 = scmp.ne.s32.totalorder %s74, %s75
    %p87 = scmp.eq.s32.totalorder %s23, 1
    %p88 = por %p86, %p87
    %p90 = scmp.ne.s32.totalorder %s75, %s89
    %p91 = scmp.eq.s32.totalorder %s23, 0
    %p92 = por %p90, %p91
    %s94 = sadd.s32 %s93, 1
    %p97 = scmp.eq.s32.totalorder %s17, 1
    %p98 = scmp.ne.s32.totalorder %s93, %s95
    %p99 = scmp.eq.s32.totalorder %s17, 0
    %p100 = por %p98, %p99
    %p101 = scmp.ne.s32.totalorder %s93, %s95
    %p102 = scmp.eq.s32.totalorder %s22, 1
    %p103 = por %p101, %p102
    %p104 = scmp.ne.s32.totalorder %s95, %s96
    %p105 = scmp.eq.s32.totalorder %s22, 0
    %p106 = por %p104, %p105
    %p107 = scmp.ne.s32.totalorder %s95, %s96
    %p108 = scmp.eq.s32.totalorder %s23, 1
    %p109 = por %p107, %p108
    %p111 = scmp.ne.s32.totalorder %s96, %s110
    %p112 = scmp.eq.s32.totalorder %s23, 0
    %p113 = por %p111, %p112
    %s115 = sadd.s32 %s114, 1
    %p118 = scmp.eq.s32.totalorder %s17, 1
    %p119 = scmp.ne.s32.totalorder %s114, %s116
    %p120 = scmp.eq.s32.totalorder %s17, 0
    %p121 = por %p119, %p120
    %p122 = scmp.ne.s32.totalorder %s114, %s116
    %p123 = scmp.eq.s32.totalorder %s22, 1
    %p124 = por %p122, %p123
    %p125 = scmp.ne.s32.totalorder %s116, %s117
    %p126 = scmp.eq.s32.totalorder %s22, 0
    %p127 = por %p125, %p126
    %p128 = scmp.ne.s32.totalorder %s116, %s117
    %p129 = scmp.eq.s32.totalorder %s23, 1
    %p130 = por %p128, %p129
    %p132 = scmp.ne.s32.totalorder %s117, %s131
    %p133 = scmp.eq.s32.totalorder %s23, 0
    %p134 = por %p132, %p133
    %s136 = sadd.s32 %s135, 1
    %p139 = scmp.eq.s32.totalorder %s17, 1
    %p140 = scmp.ne.s32.totalorder %s135, %s137
    %p141 = scmp.eq.s32.totalorder %s17, 0
    %p142 = por %p140, %p141
    %p143 = scmp.ne.s32.totalorder %s135, %s137
    %p144 = scmp.eq.s32.totalorder %s22, 1
    %p145 = por %p143, %p144
    %p146 = scmp.ne.s32.totalorder %s137, %s138
    %p147 = scmp.eq.s32.totalorder %s22, 0
    %p148 = por %p146, %p147
    %p149 = scmp.ne.s32.totalorder %s137, %s138
    %p150 = scmp.eq.s32.totalorder %s23, 1
    %p151 = por %p149, %p150
    %p153 = scmp.ne.s32.totalorder %s138, %s152
    %p154 = scmp.eq.s32.totalorder %s23, 0
    %p155 = por %p153, %p154
    %s157 = sadd.s32 %s156, 1
    %p160 = scmp.eq.s32.totalorder %s17, 1
    %p161 = scmp.ne.s32.totalorder %s156, %s158
    %p162 = scmp.eq.s32.totalorder %s17, 0
    %p163 = por %p161, %p162
    %p164 = scmp.ne.s32.totalorder %s156, %s158
    %p165 = scmp.eq.s32.totalorder %s22, 1
    %p166 = por %p164, %p165
    %p167 = scmp.ne.s32.totalorder %s158, %s159
    %p168 = scmp.eq.s32.totalorder %s22, 0
    %p169 = por %p167, %p168
    %p170 = scmp.ne.s32.totalorder %s158, %s159
    %p171 = scmp.eq.s32.totalorder %s23, 1
    %p172 = por %p170, %p171
    %p174 = scmp.ne.s32.totalorder %s159, %s173
    %p175 = scmp.eq.s32.totalorder %s23, 0
    %p176 = por %p174, %p175
    %s178 = sadd.s32 %s177, 1
    %p181 = scmp.eq.s32.totalorder %s17, 1
    %p182 = scmp.ne.s32.totalorder %s177, %s179
    %p183 = scmp.eq.s32.totalorder %s17, 0
    %p184 = por %p182, %p183
    %p185 = scmp.ne.s32.totalorder %s177, %s179
    %p186 = scmp.eq.s32.totalorder %s22, 1
    %p187 = por %p185, %p186
    %p188 = scmp.ne.s32.totalorder %s179, %s180
    %p189 = scmp.eq.s32.totalorder %s22, 0
    %p190 = por %p188, %p189
    %p191 = scmp.ne.s32.totalorder %s179, %s180
    %p192 = scmp.eq.s32.totalorder %s23, 1
    %p193 = por %p191, %p192
    %p195 = scmp.ne.s32.totalorder %s180, %s194
    %p196 = scmp.eq.s32.totalorder %s23, 0
    %p197 = por %p195, %p196
    %s199 = sadd.s32 %s198, 1
    %p202 = scmp.eq.s32.totalorder %s17, 1
    %p203 = scmp.ne.s32.totalorder %s198, %s200
    %p204 = scmp.eq.s32.totalorder %s17, 0
    %p205 = por %p203, %p204
    %p206 = scmp.ne.s32.totalorder %s198, %s200
    %p207 = scmp.eq.s32.totalorder %s22, 1
    %p208 = por %p206, %p207
    %p209 = scmp.ne.s32.totalorder %s200, %s201
    %p210 = scmp.eq.s32.totalorder %s22, 0
    %p211 = por %p209, %p210
    %p212 = scmp.ne.s32.totalorder %s200, %s201
    %p213 = scmp.eq.s32.totalorder %s23, 1
    %p214 = por %p212, %p213
    %p216 = scmp.ne.s32.totalorder %s201, %s215
    %p217 = scmp.eq.s32.totalorder %s23, 0
    %p218 = por %p216, %p217
    %s219 = ssub.s32 %s17, %s24
    %p220 = scmp.eq.s32.totalorder %s219, 0
    %s222 = sadd.s32 %s221, 1
    %s223 = scalar_select %p220, %s221, %s222
    %p226 = pneg %p220
    %p227 = scmp.eq.s32.totalorder %s17, 1
    %p228 = por %p226, %p227
    %p229 = scmp.ne.s32.totalorder %s221, %s224
    %p230 = scmp.eq.s32.totalorder %s17, 0
    %p231 = por %p229, %p230
    %p232 = scmp.ne.s32.totalorder %s221, %s224
    %p233 = scmp.eq.s32.totalorder %s22, 1
    %p234 = por %p232, %p233
    %p235 = scmp.ne.s32.totalorder %s224, %s225
    %p236 = scmp.eq.s32.totalorder %s22, 0
    %p237 = por %p235, %p236
    %p238 = scmp.ne.s32.totalorder %s224, %s225
    %p239 = scmp.eq.s32.totalorder %s23, 1
    %p240 = por %p238, %p239
    %p242 = scmp.ne.s32.totalorder %s225, %s241
    %p243 = scmp.eq.s32.totalorder %s23, 0
    %p244 = por %p242, %p243
    %p245 = scmp.le.s32.totalorder 1, %s17
    %p246 = scmp.lt.s32.totalorder %s17, 3
    %p247 = pnand %p245, %p246
    %p248 = pneg %p247
    // Predicated region
    $region9: #{decode_module_forward.1} parent=5 // pred_check
      _
    $region10: #{decode_module_forward.1} parent=5 // pred_check_branch
      %250 = sbr.rel (%p247) target = $region12
    $region11: #{decode_module_forward.1} parent=5 // pred_region
      %s251 = ssub.s32 %s17, 1
      // Predicated region
      $region13: #{decode_module_forward.1} parent=11 // pred_check
        %p252 = pneg %p64
      $region14: #{decode_module_forward.1} parent=11 // pred_check_branch
        %254 = sbr.rel (%p252) target = $region16
      $region15: #{decode_module_forward.1} parent=11 // pred_region
        _
      $region16: #{decode_module_forward.1} parent=11 // pred_fallthru
        _
      // Predicated region
      $region17: #{decode_module_forward.1} parent=11 // pred_check
        %p255 = pneg %p85
      $region18: #{decode_module_forward.1} parent=11 // pred_check_branch
        %257 = sbr.rel (%p255) target = $region20
      $region19: #{decode_module_forward.1} parent=11 // pred_region
        _
      $region20: #{decode_module_forward.1} parent=11 // pred_fallthru
        _
      // Predicated region
      $region21: #{decode_module_forward.1} parent=11 // pred_check
        %p258 = pneg %p106
      $region22: #{decode_module_forward.1} parent=11 // pred_check_branch
        %260 = sbr.rel (%p258) target = $region24
      $region23: #{decode_module_forward.1} parent=11 // pred_region
        _
      $region24: #{decode_module_forward.1} parent=11 // pred_fallthru
        _
      // Predicated region
      $region25: #{decode_module_forward.1} parent=11 // pred_check
        %p261 = pneg %p127
      $region26: #{decode_module_forward.1} parent=11 // pred_check_branch
        %263 = sbr.rel (%p261) target = $region28
      $region27: #{decode_module_forward.1} parent=11 // pred_region
        _
      $region28: #{decode_module_forward.1} parent=11 // pred_fallthru
        _
      // Predicated region
      $region29: #{decode_module_forward.1} parent=11 // pred_check
        %p264 = pneg %p148
      $region30: #{decode_module_forward.1} parent=11 // pred_check_branch
        %266 = sbr.rel (%p264) target = $region32
      $region31: #{decode_module_forward.1} parent=11 // pred_region
        _
      $region32: #{decode_module_forward.1} parent=11 // pred_fallthru
        _
      // Predicated region
      $region33: #{decode_module_forward.1} parent=11 // pred_check
        %p267 = pneg %p169
      $region34: #{decode_module_forward.1} parent=11 // pred_check_branch
        %269 = sbr.rel (%p267) target = $region36
      $region35: #{decode_module_forward.1} parent=11 // pred_region
        _
      $region36: #{decode_module_forward.1} parent=11 // pred_fallthru
        _
      // Predicated region
      $region37: #{decode_module_forward.1} parent=11 // pred_check
        %p270 = pneg %p190
      $region38: #{decode_module_forward.1} parent=11 // pred_check_branch
        %272 = sbr.rel (%p270) target = $region40
      $region39: #{decode_module_forward.1} parent=11 // pred_region
        _
      $region40: #{decode_module_forward.1} parent=11 // pred_fallthru
        _
      // Predicated region
      $region41: #{decode_module_forward.1} parent=11 // pred_check
        %p273 = pneg %p211
      $region42: #{decode_module_forward.1} parent=11 // pred_check_branch
        %275 = sbr.rel (%p273) target = $region44
      $region43: #{decode_module_forward.1} parent=11 // pred_region
        _
      $region44: #{decode_module_forward.1} parent=11 // pred_fallthru
        _
    $region12: #{decode_module_forward.1} parent=5 // pred_fallthru
      _
    %p276 = scmp.lt.s32.totalorder %s17, 2
    // Predicated region
    $region45: #{decode_module_forward.1} parent=5 // pred_check
      %p277 = pneg %p276
    $region46: #{decode_module_forward.1} parent=5 // pred_check_branch
      %279 = sbr.rel (%p277) target = $region48
    $region47: #{decode_module_forward.1} parent=5 // pred_region
      // Predicated region
      $region49: #{decode_module_forward.1} parent=47 // pred_check
        %p280 = pneg %p37
      $region50: #{decode_module_forward.1} parent=47 // pred_check_branch
        %282 = sbr.rel (%p280) target = $region52
      $region51: #{decode_module_forward.1} parent=47 // pred_region
        %p283 = scmp.lt.s32.totalorder %s17, 1
        %s284 = scalar_select %p283, %s17, 1
        %s285 = smul.addr %s284, 2
        %s286 = smul.addr %s285, 4
        %s287 = scalar_lea.vmem %s0, %s286
      $region52: #{decode_module_forward.1} parent=47 // pred_fallthru
        _
    $region48: #{decode_module_forward.1} parent=5 // pred_fallthru
      _
    %p288 = scmp.le.s32.totalorder 1, %s17
    %p289 = scmp.lt.s32.totalorder %s17, 3
    %p290 = pnand %p288, %p289
    %p291 = pneg %p290
    // Predicated region
    $region53: #{decode_module_forward.1} parent=5 // pred_check
      _
    $region54: #{decode_module_forward.1} parent=5 // pred_check_branch
      %293 = sbr.rel (%p290) target = $region56
    $region55: #{decode_module_forward.1} parent=5 // pred_region
      %s294 = ssub.s32 %s17, 1
      %p295 = scmp.lt.s32.totalorder %s22, 1
      %s296 = scalar_select %p295, %s22, 1
      %s297 = smul.addr %s296, 2
      %s298 = smul.addr %s297, 4
      %s299 = scalar_lea.vmem %s0, %s298
      %p300 = pneg %p43
      %p301 = pneg %p40
      %p302 = pneg %p64
      %p303 = pneg %p61
      %p304 = pneg %p85
      %p305 = pneg %p82
      %p306 = pneg %p106
      %p307 = pneg %p103
      %p308 = pneg %p127
      %p309 = pneg %p124
      %p310 = pneg %p148
      %p311 = pneg %p145
      %p312 = pneg %p169
      %p313 = pneg %p166
      %p314 = pneg %p190
      %p315 = pneg %p187
      %p316 = pneg %p211
      %p317 = pneg %p208
      %p318 = pneg %p237
      %p319 = pneg %p234
      %p320 = scmp.lt.s32.totalorder %s22, 1
      %s321 = scalar_select %p320, %s22, 1
      %s322 = smul.addr %s321, 8
      %s323 = scalar_lea.vmem %s9, %s322
      %p324 = scmp.lt.s32.totalorder %s22, 1
      %s325 = scalar_select %p324, %s22, 1
      %s326 = smul.addr %s325, 2
      %s327 = smul.addr %s326, 4
      %s328 = scalar_lea.vmem %s0, %s327
      %p329 = scmp.lt.s32.totalorder %s22, 1
      %s330 = scalar_select %p329, %s22, 1
      %s331 = smul.addr %s330, 8
      %s332 = scalar_lea.vmem %s9, %s331
      %v379 = vld [vmem:[%s328] sm:$0xf]
      %v380 = vld [vmem:[%s328 + $0x4] sm:$0xf]
      %v383 = vunpack.c.l.b16 %v379
      %v384 = vunpack.c.l.b16 %v380
      %v385 = vpack.c.b16 %v384, %v383
      %386 = vrot.lane.b32.xlu0 %v385, 9
      %v387 = vpop.permute.xlu0 %386
      %vm388 = vcmask 72704
      %v391 = vsel %vm388, 0, %v387
      %vm392 = vcmask 596992
      %v393 = vsel %vm392, %v391, 0
      %v395 = vlaneseq
      %v396 = vand.u32 %v395, 127
      %vm397 = vcmp.lt.s32.totalorder %v396, 0
      %v398 = vsub.s32 0, %v396
      %v399 = vsel %vm397, %v398, %v396
      %v400 = vshrl.u32 %v399, 3
      %v401 = vand.u32 %v399, 7
      %v402 = vsub.s32 0, %v401
      %v403 = vsel %vm397, %v402, %v401
      %vm404 = vcmp.ne.s32.totalorder %v403, 0
      %vm405 = vcmp.lt.s32.totalorder %v403, 0
      %vm406 = vmand %vm405, %vm404
      %v407 = vadd.s32 %v403, 8
      %v408 = vsel %vm406, %v407, %v403
      %vm409 = vcmp.gt.s32.totalorder %v408, 0
      %vm410 = vcmp.lt.s32.totalorder %v408, 7
      %v411 = vsel %vm409, 1, 0
      %vm412 = vcmp.eq.s32.totalorder %v411, 1
      %vm413 = vmpackc.low %vm412, %vm412
      %v414 = vsel %vm413, 65537, 0
      %v415 = vlaneseq
      %v416 = vshrl.u32 %v415, 7
      %v417 = vsub.s32 0, %v416
      %v418 = vrot.slane %v414, %v417
      %vm419 = vcmp.ne.s16.totalorder %v418, 0
      %v420 = vsel %vm419, %v393, 0
      %v421 = vsel %vm410, 1, 0
      %vm422 = vcmp.eq.s32.totalorder %v421, 1
      %vm423 = vmpackc.low %vm422, %vm422
      %v424 = vsel %vm423, 65537, 0
      %v425 = vlaneseq
      %v426 = vshrl.u32 %v425, 7
      %v427 = vsub.s32 0, %v426
      %v428 = vrot.slane %v424, %v427
      %429 = vrot.lane.b32.xlu0 %v428, 2
      %v430 = vpop.permute.xlu0 %429
      %vm431 = vcmp.ne.s16.totalorder %v430, 0
      %v432 = vsel %vm431, %v393, 0
      %433 = vrot.lane.b32.xlu0 %v418, 8
      %v434 = vpop.permute.xlu0 %433
      %vm435 = vcmp.ne.s16.totalorder %v434, 0
      %v436 = vsel %vm435, %v393, 0
      %437 = vrot.lane.b32.xlu0 %v428, 10
      %v438 = vpop.permute.xlu0 %437
      %vm439 = vcmp.ne.s16.totalorder %v438, 0
      %v440 = vsel %vm439, %v393, 0
      %441 = vrot.lane.b32.xlu0 %v418, 16
      %v442 = vpop.permute.xlu0 %441
      %vm443 = vcmp.ne.s16.totalorder %v442, 0
      %v444 = vsel %vm443, %v393, 0
      %445 = vrot.lane.b32.xlu0 %v428, 18
      %v446 = vpop.permute.xlu0 %445
      %vm447 = vcmp.ne.s16.totalorder %v446, 0
      %v448 = vsel %vm447, %v393, 0
      %450 = vrot.lane.b32.xlu0 %v393, 127
      %v451 = vpop.permute.xlu0 %450
      %454 = vrot.lane.b32.xlu0 %v432, 126
      %v455 = vpop.permute.xlu0 %454
      %458 = vrot.lane.b32.xlu0 %v436, 120
      %v459 = vpop.permute.xlu0 %458
      %461 = vrot.lane.b32.xlu0 %v393, 119
      %v462 = vpop.permute.xlu0 %461
      %465 = vrot.lane.b32.xlu0 %v440, 118
      %v466 = vpop.permute.xlu0 %465
      %469 = vrot.lane.b32.xlu0 %v444, 112
      %v470 = vpop.permute.xlu0 %469
      %472 = vrot.lane.b32.xlu0 %v393, 111
      %v473 = vpop.permute.xlu0 %472
      %476 = vrot.lane.b32.xlu0 %v448, 110
      %v477 = vpop.permute.xlu0 %476
      %v479 = vld [vmem:[%s1] sm:$0xff]
      %v480 = vld [vmem:[%s1 + $0x8] sm:$0xff]
      %v481 = vld [vmem:[%s2] sm:$0xff]
      %v482 = vld [vmem:[%s2 + $0x8] sm:$0xff]
      %484 = vset.pattern.permute.xlu0 0
      %485 = vperm.xlu0 %484, %v481
      %v486 = vpop.permute.xlu0 %485
      %489 = vset.pattern.permute.xlu0 0
      %490 = vperm.xlu0 %489, %v482
      %v491 = vpop.permute.xlu0 %490
      %v495 = vunpack.c.l.b16 %v479
      %v496 = vunpack.c.h.b16 %v479
      %v497 = vunpack.c.l.b16 %v480
      %v498 = vunpack.c.h.b16 %v480
      %v499 = vpack.c.b16 %v497, %v495
      %v500 = vpack.c.b16 %v498, %v496
      %vm502 = vcmask 130048
      %v504 = vsel %vm502, %v500, 0
      %506 = vmatprep.subr.bf16.mxu0 0
      %507 = vmatpush1.bf16.msra.mxu0 %v420
      %508 = vmatprep.subr.bf16.mxu0 0
      %509 = vmatpush1.bf16.msra.mxu0 %v451
      %510 = vmatprep.subr.bf16.mxu0 0
      %511 = vmatpush1.bf16.msra.mxu0 %v455
      %512 = vmatprep.subr.bf16.mxu0 0
      %513 = vmatpush1.bf16.msra.mxu0 %v459
      %514 = vmatprep.subr.bf16.mxu0 0
      %515 = vmatpush1.bf16.msra.mxu0 %v462
      %516 = vmatprep.subr.bf16.mxu0 0
      %517 = vmatpush1.bf16.msra.mxu0 %v466
      %518 = vmatprep.subr.bf16.mxu0 0
      %519 = vmatpush1.bf16.msra.mxu0 %v470
      %520 = vmatprep.subr.bf16.mxu0 0
      %521 = vmatpush1.bf16.msra.mxu0 %v473
      %522 = vmatprep.subr.bf16.mxu0 0
      %523 = vmatpush1.bf16.msra.mxu0 %v477
      %524 = vmatprep.subr.bf16.mxu0 0
      %525 = vmatpush1.bf16.msra.mxu0 0
      %526 = vmatprep.subr.bf16.mxu0 0
      %527 = vmatpush1.bf16.msra.mxu0 0
      %528 = vmatprep.subr.bf16.mxu0 0
      %529 = vmatpush1.bf16.msra.mxu0 0
      %530 = vmatprep.subr.bf16.mxu0 0
      %531 = vmatpush1.bf16.msra.mxu0 0
      %532 = vmatprep.subr.bf16.mxu0 0
      %533 = vmatpush1.bf16.msra.mxu0 0
      %534 = vmatprep.subr.bf16.mxu0 0
      %535 = vmatpush1.bf16.msra.mxu0 0
      %536 = vmatprep.subr.bf16.mxu0 0
      %537 = vmatpush1.bf16.msra.mxu0 0
      %538 = vmatprep.mubr.bf16.mxu0 %v504
      %539 = vmatmul.mubr.bf16.gmra.mrb[0].mxu0 %v499
      %v540 = vpop.f32.mrb[0].mxu0
      %v541 = vadd.f32 %v486, %v540
      %v542 = vpop.f32.mrb[0].mxu0
      %v543 = vpop.f32.mrb[0].mxu0
      %v544 = vadd.f32 %v491, %v543
      %v545 = vpop.f32.mrb[0].mxu0
      %546 = vdwg.mxu0
      %v547 = vmax.f32 %v541, 0.0
      %v548 = vmax.f32 %v544, 0.0
      %v549 = vpack.c.bf16 %v548, %v547
      %551 = vrot.lane.b32.xlu0 %v549, 120
      %v552 = vpop.permute.xlu0 %551
      %553 = vrot.lane.b32.xlu0 %v549, 112
      %v554 = vpop.permute.xlu0 %553
      %555 = vrot.lane.b32.xlu0 %v549, 104
      %v556 = vpop.permute.xlu0 %555
      %557 = vrot.lane.b32.xlu0 %v549, 96
      %v558 = vpop.permute.xlu0 %557
      %559 = vrot.lane.b32.xlu0 %v549, 88
      %v560 = vpop.permute.xlu0 %559
      %561 = vrot.lane.b32.xlu0 %v549, 80
      %v562 = vpop.permute.xlu0 %561
      %563 = vrot.lane.b32.xlu0 %v549, 72
      %v564 = vpop.permute.xlu0 %563
      %v565 = vld [vmem:[%s3] sm:$0xf]
      %vm566 = vcmask 64512
      %v568 = vsel %vm566, %v549, 0
      %v571 = vsel %vm566, %v552, 0
      %v574 = vsel %vm566, %v554, 0
      %v577 = vsel %vm566, %v556, 0
      %v580 = vsel %vm566, %v558, 0
      %v583 = vsel %vm566, %v560, 0
      %v586 = vsel %vm566, %v562, 0
      %v589 = vsel %vm566, %v564, 0
      %vm591 = vcmask 1043456
      %v593 = vsel %vm591, %v565, 0
      %595 = vmatprep.subr.bf16.mxu0 0
      %596 = vmatpush1.bf16.msra.mxu0 %v593
      %597 = vmatprep.subr.bf16.mxu0 0
      %598 = vmatpush1.bf16.msra.mxu0 0
      %599 = vmatprep.subr.bf16.mxu0 0
      %600 = vmatpush1.bf16.msra.mxu0 0
      %601 = vmatprep.subr.bf16.mxu0 0
      %602 = vmatpush1.bf16.msra.mxu0 0
      %603 = vmatprep.subr.bf16.mxu0 0
      %604 = vmatpush1.bf16.msra.mxu0 0
      %605 = vmatprep.subr.bf16.mxu0 0
      %606 = vmatpush1.bf16.msra.mxu0 0
      %607 = vmatprep.subr.bf16.mxu0 0
      %608 = vmatpush1.bf16.msra.mxu0 0
      %609 = vmatprep.subr.bf16.mxu0 0
      %610 = vmatpush1.bf16.msra.mxu0 0
      %611 = vmatprep.subr.bf16.mxu0 0
      %612 = vmatpush1.bf16.msra.mxu0 0
      %613 = vmatprep.subr.bf16.mxu0 0
      %614 = vmatpush1.bf16.msra.mxu0 0
      %615 = vmatprep.subr.bf16.mxu0 0
      %616 = vmatpush1.bf16.msra.mxu0 0
      %617 = vmatprep.subr.bf16.mxu0 0
      %618 = vmatpush1.bf16.msra.mxu0 0
      %619 = vmatprep.subr.bf16.mxu0 0
      %620 = vmatpush1.bf16.msra.mxu0 0
      %621 = vmatprep.subr.bf16.mxu0 0
      %622 = vmatpush1.bf16.msra.mxu0 0
      %623 = vmatprep.subr.bf16.mxu0 0
      %624 = vmatpush1.bf16.msra.mxu0 0
      %625 = vmatprep.subr.bf16.mxu0 0
      %626 = vmatpush1.bf16.msra.mxu0 0
      %627 = vmatprep.mubr.bf16.mxu0 0
      %628 = vmatmul.mubr.bf16.gmra.mrb[0].mxu0 %v568
      %v629 = vpop.f32.mrb[0].mxu0
      %v630 = vadd.f32 0.0, %v629
      %v631 = vpop.f32.mrb[0].mxu0
      %v632 = vpop.f32.mrb[0].mxu0
      %v633 = vadd.f32 0.0, %v632
      %v634 = vpop.f32.mrb[0].mxu0
      %635 = vmatprep.mubr.bf16.mxu0 0
      %636 = vmatmul.mubr.bf16.gmra.mrb[0].mxu0 %v571
      %v637 = vpop.f32.mrb[0].mxu0
      %v638 = vadd.f32 0.0, %v637
      %v639 = vpop.f32.mrb[0].mxu0
      %v640 = vpop.f32.mrb[0].mxu0
      %v641 = vadd.f32 0.0, %v640
      %v642 = vpop.f32.mrb[0].mxu0
      %643 = vmatprep.mubr.bf16.mxu0 0
      %644 = vmatmul.mubr.bf16.gmra.mrb[0].mxu0 %v574
      %v645 = vpop.f32.mrb[0].mxu0
      %v646 = vadd.f32 0.0, %v645
      %v647 = vpop.f32.mrb[0].mxu0
      %v648 = vpop.f32.mrb[0].mxu0
      %v649 = vadd.f32 0.0, %v648
      %v650 = vpop.f32.mrb[0].mxu0
      %651 = vmatprep.mubr.bf16.mxu0 0
      %652 = vmatmul.mubr.bf16.gmra.mrb[0].mxu0 %v577
      %v653 = vpop.f32.mrb[0].mxu0
      %v654 = vadd.f32 0.0, %v653
      %v655 = vpop.f32.mrb[0].mxu0
      %v656 = vpop.f32.mrb[0].mxu0
      %v657 = vadd.f32 0.0, %v656
      %v658 = vpop.f32.mrb[0].mxu0
      %659 = vmatprep.mubr.bf16.mxu0 0
      %660 = vmatmul.mubr.bf16.gmra.mrb[0].mxu0 %v580
      %v661 = vpop.f32.mrb[0].mxu0
      %v662 = vadd.f32 0.0, %v661
      %v663 = vpop.f32.mrb[0].mxu0
      %v664 = vpop.f32.mrb[0].mxu0
      %v665 = vadd.f32 0.0, %v664
      %v666 = vpop.f32.mrb[0].mxu0
      %667 = vmatprep.mubr.bf16.mxu0 0
      %668 = vmatmul.mubr.bf16.gmra.mrb[0].mxu0 %v583
      %v669 = vpop.f32.mrb[0].mxu0
      %v670 = vadd.f32 0.0, %v669
      %v671 = vpop.f32.mrb[0].mxu0
      %v672 = vpop.f32.mrb[0].mxu0
      %v673 = vadd.f32 0.0, %v672
      %v674 = vpop.f32.mrb[0].mxu0
      %675 = vmatprep.mubr.bf16.mxu0 0
      %676 = vmatmul.mubr.bf16.gmra.mrb[0].mxu0 %v586
      %v677 = vpop.f32.mrb[0].mxu0
      %v678 = vadd.f32 0.0, %v677
      %v679 = vpop.f32.mrb[0].mxu0
      %v680 = vpop.f32.mrb[0].mxu0
      %v681 = vadd.f32 0.0, %v680
      %v682 = vpop.f32.mrb[0].mxu0
      %683 = vmatprep.mubr.bf16.mxu0 0
      %684 = vmatmul.mubr.bf16.gmra.mrb[0].mxu0 %v589
      %v685 = vpop.f32.mrb[0].mxu0
      %v686 = vadd.f32 0.0, %v685
      %v687 = vpop.f32.mrb[0].mxu0
      %v688 = vpop.f32.mrb[0].mxu0
      %v689 = vadd.f32 0.0, %v688
      %v690 = vpop.f32.mrb[0].mxu0
      %691 = vdwg.mxu0
      %v692 = vpack.c.bf16 %v633, %v630
      %v693 = vpack.c.bf16 %v641, %v638
      %v694 = vpack.c.bf16 %v649, %v646
      %v695 = vpack.c.bf16 %v657, %v654
      %v696 = vpack.c.bf16 %v665, %v662
      %v697 = vpack.c.bf16 %v673, %v670
      %v698 = vpack.c.bf16 %v681, %v678
      %v699 = vpack.c.bf16 %v689, %v686
      %v700 = vmul.bf16 %v692, 1057570569
      %v701 = vmul.bf16 %v693, 1055866607
      %v702 = vadd.bf16 %v700, %v701
      %v703 = vmul.bf16 %v692, 1032404361
      %v704 = vmul.bf16 %v693, 1064255343
      %v705 = vadd.bf16 %v703, %v704
      %v706 = vmul.bf16 %v693, 1058684698
      %v707 = vmul.bf16 %v694, 1053638349
      %v708 = vadd.bf16 %v706, %v707
      %v709 = vmul.bf16 %v693, 1040793097
      %v710 = vmul.bf16 %v694, 1063141214
      %v711 = vadd.bf16 %v709, %v710
      %v712 = vmul.bf16 %v694, 1059798827
      %v713 = vmul.bf16 %v695, 1051410091
      %v714 = vadd.bf16 %v712, %v713
      %v715 = vmul.bf16 %v694, 1045249613
      %v716 = vmul.bf16 %v695, 1062027085
      %v717 = vadd.bf16 %v715, %v716
      %v718 = vmul.bf16 %v695, 1060912956
      %v719 = vmul.bf16 %v696, 1049181833
      %v720 = vadd.bf16 %v718, %v719
      %v721 = vmul.bf16 %v695, 1049181833
      %v722 = vmul.bf16 %v696, 1060912956
      %v723 = vadd.bf16 %v721, %v722
      %v724 = vmul.bf16 %v696, 1062027085
      %v725 = vmul.bf16 %v697, 1045249613
      %v726 = vadd.bf16 %v724, %v725
      %v727 = vmul.bf16 %v696, 1051410091
      %v728 = vmul.bf16 %v697, 1059798827
      %v729 = vadd.bf16 %v727, %v728
      %v730 = vmul.bf16 %v697, 1063141214
      %v731 = vmul.bf16 %v698, 1040793097
      %v732 = vadd.bf16 %v730, %v731
      %v733 = vmul.bf16 %v697, 1053638349
      %v734 = vmul.bf16 %v698, 1058684698
      %v735 = vadd.bf16 %v733, %v734
      %v736 = vmul.bf16 %v698, 1064255343
      %v737 = vmul.bf16 %v699, 1032404361
      %v738 = vadd.bf16 %v736, %v737
      %v739 = vmul.bf16 %v698, 1055866607
      %v740 = vmul.bf16 %v699, 1057570569
      %v741 = vadd.bf16 %v739, %v740
      %v742 = vmul.bf16 %v698, 0
      %v743 = vadd.bf16 %v742, %v699
      %745 = vrot.lane.b32.xlu0 %v702, 16
      %v746 = vpop.permute.xlu0 %745
      %748 = vrot.lane.b32.xlu0 %v705, 32
      %v749 = vpop.permute.xlu0 %748
      %751 = vrot.lane.b32.xlu0 %v708, 48
      %v752 = vpop.permute.xlu0 %751
      %754 = vrot.lane.b32.xlu0 %v711, 64
      %v755 = vpop.permute.xlu0 %754
      %757 = vrot.lane.b32.xlu0 %v714, 80
      %v758 = vpop.permute.xlu0 %757
      %760 = vrot.lane.b32.xlu0 %v717, 96
      %v761 = vpop.permute.xlu0 %760
      %763 = vrot.lane.b32.xlu0 %v720, 112
      %v764 = vpop.permute.xlu0 %763
      %766 = vrot.lane.b32.xlu0 %v726, 16
      %v767 = vpop.permute.xlu0 %766
      %769 = vrot.lane.b32.xlu0 %v729, 32
      %v770 = vpop.permute.xlu0 %769
      %772 = vrot.lane.b32.xlu0 %v732, 48
      %v773 = vpop.permute.xlu0 %772
      %775 = vrot.lane.b32.xlu0 %v735, 64
      %v776 = vpop.permute.xlu0 %775
      %778 = vrot.lane.b32.xlu0 %v738, 80
      %v779 = vpop.permute.xlu0 %778
      %781 = vrot.lane.b32.xlu0 %v741, 96
      %v782 = vpop.permute.xlu0 %781
      %784 = vrot.lane.b32.xlu0 %v743, 112
      %v785 = vpop.permute.xlu0 %784
      %v788 = vsel %vm502, %v692, %v746
      %vm789 = vcmask 261120
      %v791 = vsel %vm789, %v788, %v749
      %vm792 = vcmask 392192
      %v794 = vsel %vm792, %v791, %v752
      %vm795 = vcmask 523264
      %v797 = vsel %vm795, %v794, %v755
      %vm798 = vcmask 654336
      %v800 = vsel %vm798, %v797, %v758
      %vm801 = vcmask 785408
      %v803 = vsel %vm801, %v800, %v761
      %vm804 = vcmask 916480
      %v806 = vsel %vm804, %v803, %v764
      %v809 = vsel %vm502, %v723, %v767
      %v811 = vsel %vm789, %v809, %v770
      %v813 = vsel %vm792, %v811, %v773
      %v815 = vsel %vm795, %v813, %v776
      %v817 = vsel %vm798, %v815, %v779
      %v819 = vsel %vm801, %v817, %v782
      %v821 = vsel %vm804, %v819, %v785
      %824 = vrot.lane.b32.xlu0 %v806, 17
      %v825 = vpop.permute.xlu0 %824
      %826 = vrot.lane.b32.xlu0 %v821, 17
      %v827 = vpop.permute.xlu0 %826
      %vm828 = vcmask 138240
      %v829 = vsel %vm828, %v825, %v827
      %vm831 = vcmask 138240
      %v833 = vsel %vm831, 0, %v825
      %v836 = vsel %vm831, %v827, 0
      %v838 = vadd.s32 %v396, 128
      %vm839 = vcmp.lt.s32.totalorder %v396, 0
      %v840 = vsub.s32 0, %v396
      %v841 = vsel %vm839, %v840, %v396
      %v842 = vshrl.u32 %v841, 4
      %v843 = vand.u32 %v841, 15
      %v844 = vsub.s32 0, %v843
      %v845 = vsel %vm839, %v844, %v843
      %vm846 = vcmp.lt.s32.totalorder %v838, 0
      %v847 = vsub.s32 0, %v838
      %v848 = vsel %vm846, %v847, %v838
      %v849 = vshrl.u32 %v848, 4
      %v850 = vand.u32 %v848, 15
      %v851 = vsub.s32 0, %v850
      %v852 = vsel %vm846, %v851, %v850
      %vm853 = vcmp.ne.s32.totalorder %v845, 0
      %vm854 = vcmp.ne.s32.totalorder %v852, 0
      %vm855 = vcmp.lt.s32.totalorder %v845, 0
      %vm856 = vcmp.lt.s32.totalorder %v852, 0
      %vm857 = vmand %vm855, %vm853
      %vm858 = vmand %vm856, %vm854
      %v859 = vadd.s32 %v845, 16
      %v860 = vadd.s32 %v852, 16
      %v861 = vsel %vm857, %v859, %v845
      %v862 = vsel %vm858, %v860, %v852
      %vm863 = vcmp.gt.s32.totalorder %v861, 0
      %vm864 = vcmp.gt.s32.totalorder %v862, 0
      %vm865 = vcmp.lt.s32.totalorder %v861, 15
      %vm866 = vcmp.lt.s32.totalorder %v862, 15
      %v867 = vsel %vm863, 1, 0
      %v868 = vsel %vm864, 1, 0
      %vm869 = vcmp.eq.s32.totalorder %v867, 1
      %vm870 = vcmp.eq.s32.totalorder %v868, 1
      %vm871 = vmpackc.low %vm870, %vm869
      %v872 = vsel %vm871, 65537, 0
      %v873 = vlaneseq
      %v874 = vshrl.u32 %v873, 7
      %v875 = vsub.s32 0, %v874
      %v876 = vrot.slane %v872, %v875
      %v877 = vlaneseq
      %v878 = vshrl.u32 %v877, 7
      %v879 = vsub.s32 4, %v878
      %v880 = vrot.slane %v872, %v879
      %vm881 = vcmp.ne.s16.totalorder %v876, 0
      %vm882 = vcmp.ne.s16.totalorder %v880, 0
      %v883 = vsel %vm881, %v833, 0
      %v884 = vsel %vm882, %v829, 0
      %v885 = vsel %vm865, 1, 0
      %v886 = vsel %vm866, 1, 0
      %vm887 = vcmp.eq.s32.totalorder %v885, 1
      %vm888 = vcmp.eq.s32.totalorder %v886, 1
      %vm889 = vmpackc.low %vm888, %vm887
      %v890 = vsel %vm889, 65537, 0
      %v891 = vlaneseq
      %v892 = vshrl.u32 %v891, 7
      %v893 = vsub.s32 0, %v892
      %v894 = vrot.slane %v890, %v893
      %v895 = vlaneseq
      %v896 = vshrl.u32 %v895, 7
      %v897 = vsub.s32 4, %v896
      %v898 = vrot.slane %v890, %v897
      %899 = vrot.lane.b32.xlu0 %v894, 2
      %v900 = vpop.permute.xlu0 %899
      %901 = vrot.lane.b32.xlu0 %v898, 2
      %v902 = vpop.permute.xlu0 %901
      %vm903 = vcmask 15360
      %v904 = vsel %vm903, %v900, %v902
      %vm905 = vcmp.ne.s16.totalorder %v900, 0
      %vm906 = vcmp.ne.s16.totalorder %v904, 0
      %vm907 = vcmp.ne.s16.totalorder %v902, 0
      %v908 = vsel %vm905, %v833, 0
      %v909 = vsel %vm906, %v829, 0
      %v910 = vsel %vm907, %v836, 0
      %911 = vrot.lane.b32.xlu0 %v876, 16
      %v912 = vpop.permute.xlu0 %911
      %913 = vrot.lane.b32.xlu0 %v880, 16
      %v914 = vpop.permute.xlu0 %913
      %vm915 = vcmask 130048
      %v916 = vsel %vm915, %v912, %v914
      %vm917 = vcmp.ne.s16.totalorder %v912, 0
      %vm918 = vcmp.ne.s16.totalorder %v916, 0
      %vm919 = vcmp.ne.s16.totalorder %v914, 0
      %v920 = vsel %vm917, %v833, 0
      %v921 = vsel %vm918, %v829, 0
      %v922 = vsel %vm919, %v836, 0
      %923 = vrot.lane.b32.xlu0 %v894, 18
      %v924 = vpop.permute.xlu0 %923
      %925 = vrot.lane.b32.xlu0 %v898, 18
      %v926 = vpop.permute.xlu0 %925
      %vm927 = vcmask 146432
      %v928 = vsel %vm927, %v924, %v926
      %vm929 = vcmp.ne.s16.totalorder %v924, 0
      %vm930 = vcmp.ne.s16.totalorder %v928, 0
      %vm931 = vcmp.ne.s16.totalorder %v926, 0
      %v932 = vsel %vm929, %v833, 0
      %v933 = vsel %vm930, %v829, 0
      %v934 = vsel %vm931, %v836, 0
      %935 = vrot.lane.b32.xlu0 %v876, 32
      %v936 = vpop.permute.xlu0 %935
      %937 = vrot.lane.b32.xlu0 %v880, 32
      %v938 = vpop.permute.xlu0 %937
      %vm939 = vcmask 261120
      %v940 = vsel %vm939, %v936, %v938
      %vm941 = vcmp.ne.s16.totalorder %v936, 0
      %vm942 = vcmp.ne.s16.totalorder %v940, 0
      %vm943 = vcmp.ne.s16.totalorder %v938, 0
      %v944 = vsel %vm941, %v833, 0
      %v945 = vsel %vm942, %v829, 0
      %v946 = vsel %vm943, %v836, 0
      %947 = vrot.lane.b32.xlu0 %v894, 34
      %v948 = vpop.permute.xlu0 %947
      %949 = vrot.lane.b32.xlu0 %v898, 34
      %v950 = vpop.permute.xlu0 %949
      %vm951 = vcmask 277504
      %v952 = vsel %vm951, %v948, %v950
      %vm953 = vcmp.ne.s16.totalorder %v948, 0
      %vm954 = vcmp.ne.s16.totalorder %v952, 0
      %vm955 = vcmp.ne.s16.totalorder %v950, 0
      %v956 = vsel %vm953, %v833, 0
      %v957 = vsel %vm954, %v829, 0
      %v958 = vsel %vm955, %v836, 0
      %961 = vrot.lane.b32.xlu0 %v833, 127
      %v962 = vpop.permute.xlu0 %961
      %963 = vrot.lane.b32.xlu0 %v829, 127
      %v964 = vpop.permute.xlu0 %963
      %965 = vrot.lane.b32.xlu0 %v836, 127
      %v966 = vpop.permute.xlu0 %965
      %vm967 = vcmask 1039360
      %v968 = vsel %vm967, %v962, %v964
      %v969 = vsel %vm967, %v964, %v966
      %975 = vrot.lane.b32.xlu0 %v908, 126
      %v976 = vpop.permute.xlu0 %975
      %977 = vrot.lane.b32.xlu0 %v909, 126
      %v978 = vpop.permute.xlu0 %977
      %979 = vrot.lane.b32.xlu0 %v910, 126
      %v980 = vpop.permute.xlu0 %979
      %vm981 = vcmask 1031168
      %v982 = vsel %vm981, %v976, %v978
      %v983 = vsel %vm981, %v978, %v980
      %989 = vrot.lane.b32.xlu0 %v920, 112
      %v990 = vpop.permute.xlu0 %989
      %991 = vrot.lane.b32.xlu0 %v921, 112
      %v992 = vpop.permute.xlu0 %991
      %993 = vrot.lane.b32.xlu0 %v922, 112
      %v994 = vpop.permute.xlu0 %993
      %vm995 = vcmask 916480
      %v996 = vsel %vm995, %v990, %v992
      %v997 = vsel %vm995, %v992, %v994
      %1000 = vrot.lane.b32.xlu0 %v833, 111
      %v1001 = vpop.permute.xlu0 %1000
      %1002 = vrot.lane.b32.xlu0 %v829, 111
      %v1003 = vpop.permute.xlu0 %1002
      %1004 = vrot.lane.b32.xlu0 %v836, 111
      %v1005 = vpop.permute.xlu0 %1004
      %vm1006 = vcmask 908288
      %v1007 = vsel %vm1006, %v1001, %v1003
      %v1008 = vsel %vm1006, %v1003, %v1005
      %1014 = vrot.lane.b32.xlu0 %v932, 110
      %v1015 = vpop.permute.xlu0 %1014
      %1016 = vrot.lane.b32.xlu0 %v933, 110
      %v1017 = vpop.permute.xlu0 %1016
      %1018 = vrot.lane.b32.xlu0 %v934, 110
      %v1019 = vpop.permute.xlu0 %1018
      %vm1020 = vcmask 900096
      %v1021 = vsel %vm1020, %v1015, %v1017
      %v1022 = vsel %vm1020, %v1017, %v1019
      %1028 = vrot.lane.b32.xlu0 %v944, 96
      %v1029 = vpop.permute.xlu0 %1028
      %1030 = vrot.lane.b32.xlu0 %v945, 96
      %v1031 = vpop.permute.xlu0 %1030
      %1032 = vrot.lane.b32.xlu0 %v946, 96
      %v1033 = vpop.permute.xlu0 %1032
      %vm1034 = vcmask 785408
      %v1035 = vsel %vm1034, %v1029, %v1031
      %v1036 = vsel %vm1034, %v1031, %v1033
      %1039 = vrot.lane.b32.xlu0 %v833, 95
      %v1040 = vpop.permute.xlu0 %1039
      %1041 = vrot.lane.b32.xlu0 %v829, 95
      %v1042 = vpop.permute.xlu0 %1041
      %1043 = vrot.lane.b32.xlu0 %v836, 95
      %v1044 = vpop.permute.xlu0 %1043
      %vm1045 = vcmask 777216
      %v1046 = vsel %vm1045, %v1040, %v1042
      %v1047 = vsel %vm1045, %v1042, %v1044
      %1053 = vrot.lane.b32.xlu0 %v956, 94
      %v1054 = vpop.permute.xlu0 %1053
      %1055 = vrot.lane.b32.xlu0 %v957, 94
      %v1056 = vpop.permute.xlu0 %1055
      %1057 = vrot.lane.b32.xlu0 %v958, 94
      %v1058 = vpop.permute.xlu0 %1057
      %vm1059 = vcmask 769024
      %v1060 = vsel %vm1059, %v1054, %v1056
      %v1061 = vsel %vm1059, %v1056, %v1058
      %v1064 = vld [vmem:[%s4] sm:$0xff]
      %v1065 = vld [vmem:[%s4 + $0x8] sm:$0xff]
      %v1066 = vld [vmem:[%s4 + $0x10] sm:$0xff]
      %v1067 = vld [vmem:[%s4 + $0x18] sm:$0xff]
      %v1068 = vld [vmem:[%s4 + $0x20] sm:$0xff]
      %v1069 = vld [vmem:[%s4 + $0x28] sm:$0xff]
      %v1070 = vld [vmem:[%s4 + $0x30] sm:$0xff]
      %v1071 = vld [vmem:[%s4 + $0x38] sm:$0xff]
      %v1072 = vld [vmem:[%s5] sm:$0xff]
      %v1073 = vld [vmem:[%s5 + $0x8] sm:$0xff]
      %v1074 = vld [vmem:[%s5 + $0x10] sm:$0xff]
      %v1075 = vld [vmem:[%s5 + $0x18] sm:$0xff]
      %v1076 = vld [vmem:[%s5 + $0x20] sm:$0xff]
      %v1077 = vld [vmem:[%s5 + $0x28] sm:$0xff]
      %v1078 = vld [vmem:[%s5 + $0x30] sm:$0xff]
      %v1079 = vld [vmem:[%s5 + $0x38] sm:$0xff]
      %1081 = vset.pattern.permute.xlu0 0
      %1082 = vperm.xlu0 %1081, %v1072
      %v1083 = vpop.permute.xlu0 %1082
      %1086 = vset.pattern.permute.xlu0 0
      %1087 = vperm.xlu0 %1086, %v1073
      %v1088 = vpop.permute.xlu0 %1087
      %1091 = vset.pattern.permute.xlu0 0
      %1092 = vperm.xlu0 %1091, %v1074
      %v1093 = vpop.permute.xlu0 %1092
      %1096 = vset.pattern.permute.xlu0 0
      %1097 = vperm.xlu0 %1096, %v1075
      %v1098 = vpop.permute.xlu0 %1097
      %1101 = vset.pattern.permute.xlu0 0
      %1102 = vperm.xlu0 %1101, %v1076
      %v1103 = vpop.permute.xlu0 %1102
      %1106 = vset.pattern.permute.xlu0 0
      %1107 = vperm.xlu0 %1106, %v1077
      %v1108 = vpop.permute.xlu0 %1107
      %1111 = vset.pattern.permute.xlu0 0
      %1112 = vperm.xlu0 %1111, %v1078
      %v1113 = vpop.permute.xlu0 %1112
      %1116 = vset.pattern.permute.xlu0 0
      %1117 = vperm.xlu0 %1116, %v1079
      %v1118 = vpop.permute.xlu0 %1117
      %v1128 = vunpack.c.l.b16 %v1064
      %v1129 = vunpack.c.h.b16 %v1064
      %v1130 = vunpack.c.l.b16 %v1065
      %v1131 = vunpack.c.h.b16 %v1065
      %v1132 = vunpack.c.l.b16 %v1066
      %v1133 = vunpack.c.h.b16 %v1066
      %v1134 = vunpack.c.l.b16 %v1067
      %v1135 = vunpack.c.h.b16 %v1067
      %v1136 = vunpack.c.l.b16 %v1068
      %v1137 = vunpack.c.h.b16 %v1068
      %v1138 = vunpack.c.l.b16 %v1069
      %v1139 = vunpack.c.h.b16 %v1069
      %v1140 = vunpack.c.l.b16 %v1070
      %v1141 = vunpack.c.h.b16 %v1070
      %v1142 = vunpack.c.l.b16 %v1071
      %v1143 = vunpack.c.h.b16 %v1071
      %v1144 = vpack.c.b16 %v1130, %v1128
      %v1145 = vpack.c.b16 %v1131, %v1129
      %v1146 = vpack.c.b16 %v1134, %v1132
      %v1147 = vpack.c.b16 %v1135, %v1133
      %v1148 = vpack.c.b16 %v1138, %v1136
      %v1149 = vpack.c.b16 %v1139, %v1137
      %v1150 = vpack.c.b16 %v1142, %v1140
      %v1151 = vpack.c.b16 %v1143, %v1141
      %v1157 = vsel %vm502, %v1145, 0
      %v1160 = vsel %vm502, %v1147, 0
      %v1163 = vsel %vm502, %v1149, 0
      %v1166 = vsel %vm502, %v1151, 0
      %1168 = vmatprep.subr.bf16.mxu0 %v884
      %1169 = vmatpush1.bf16.msra.mxu0 %v883
      %1170 = vmatprep.subr.bf16.mxu0 %v969
      %1171 = vmatpush1.bf16.msra.mxu0 %v968
      %1172 = vmatprep.subr.bf16.mxu0 %v983
      %1173 = vmatpush1.bf16.msra.mxu0 %v982
      %1174 = vmatprep.subr.bf16.mxu0 %v997
      %1175 = vmatpush1.bf16.msra.mxu0 %v996
      %1176 = vmatprep.subr.bf16.mxu0 %v1008
      %1177 = vmatpush1.bf16.msra.mxu0 %v1007
      %1178 = vmatprep.subr.bf16.mxu0 %v1022
      %1179 = vmatpush1.bf16.msra.mxu0 %v1021
      %1180 = vmatprep.subr.bf16.mxu0 %v1036
      %1181 = vmatpush1.bf16.msra.mxu0 %v1035
      %1182 = vmatprep.subr.bf16.mxu0 %v1047
      %1183 = vmatpush1.bf16.msra.mxu0 %v1046
      %1184 = vmatprep.subr.bf16.mxu0 %v1061
      %1185 = vmatpush1.bf16.msra.mxu0 %v1060
      %1186 = vmatprep.subr.bf16.mxu0 0
      %1187 = vmatpush1.bf16.msra.mxu0 0
      %1188 = vmatprep.subr.bf16.mxu0 0
      %1189 = vmatpush1.bf16.msra.mxu0 0
      %1190 = vmatprep.subr.bf16.mxu0 0
      %1191 = vmatpush1.bf16.msra.mxu0 0
      %1192 = vmatprep.subr.bf16.mxu0 0
      %1193 = vmatpush1.bf16.msra.mxu0 0
      %1194 = vmatprep.subr.bf16.mxu0 0
      %1195 = vmatpush1.bf16.msra.mxu0 0
      %1196 = vmatprep.subr.bf16.mxu0 0
      %1197 = vmatpush1.bf16.msra.mxu0 0
      %1198 = vmatprep.subr.bf16.mxu0 0
      %1199 = vmatpush1.bf16.msra.mxu0 0
      %1200 = vmatprep.mubr.bf16.mxu0 %v1157
      %1201 = vmatmul.mubr.bf16.gmra.mrb[0].mxu0 %v1144
      %v1202 = vpop.f32.mrb[0].mxu0
      %v1203 = vadd.f32 %v1083, %v1202
      %v1204 = vpop.f32.mrb[0].mxu0
      %v1205 = vadd.f32 %v1083, %v1204
      %v1206 = vpop.f32.mrb[0].mxu0
      %v1207 = vadd.f32 %v1088, %v1206
      %v1208 = vpop.f32.mrb[0].mxu0
      %v1209 = vadd.f32 %v1088, %v1208
      %1210 = vmatprep.mubr.bf16.mxu0 %v1160
      %1211 = vmatmul.mubr.bf16.gmra.mrb[0].mxu0 %v1146
      %v1212 = vpop.f32.mrb[0].mxu0
      %v1213 = vadd.f32 %v1093, %v1212
      %v1214 = vpop.f32.mrb[0].mxu0
      %v1215 = vadd.f32 %v1093, %v1214
      %v1216 = vpop.f32.mrb[0].mxu0
      %v1217 = vadd.f32 %v1098, %v1216
      %v1218 = vpop.f32.mrb[0].mxu0
      %v1219 = vadd.f32 %v1098, %v1218
      %1220 = vmatprep.mubr.bf16.mxu0 %v1163
      %1221 = vmatmul.mubr.bf16.gmra.mrb[0].mxu0 %v1148
      %v1222 = vpop.f32.mrb[0].mxu0
      %v1223 = vadd.f32 %v1103, %v1222
      %v1224 = vpop.f32.mrb[0].mxu0
      %v1225 = vadd.f32 %v1103, %v1224
      %v1226 = vpop.f32.mrb[0].mxu0
      %v1227 = vadd.f32 %v1108, %v1226
      %v1228 = vpop.f32.mrb[0].mxu0
      %v1229 = vadd.f32 %v1108, %v1228
      %1230 = vmatprep.mubr.bf16.mxu0 %v1166
      %1231 = vmatmul.mubr.bf16.gmra.mrb[0].mxu0 %v1150
      %v1232 = vpop.f32.mrb[0].mxu0
      %v1233 = vadd.f32 %v1113, %v1232
      %v1234 = vpop.f32.mrb[0].mxu0
      %v1235 = vadd.f32 %v1113, %v1234
      %v1236 = vpop.f32.mrb[0].mxu0
      %v1237 = vadd.f32 %v1118, %v1236
      %v1238 = vpop.f32.mrb[0].mxu0
      %v1239 = vadd.f32 %v1118, %v1238
      %1240 = vdwg.mxu0
      %v1241 = vmax.f32 %v1203, 0.0
      %v1242 = vmax.f32 %v1205, 0.0
      %v1243 = vmax.f32 %v1207, 0.0
      %v1244 = vmax.f32 %v1209, 0.0
      %v1245 = vmax.f32 %v1213, 0.0
      %v1246 = vmax.f32 %v1215, 0.0
      %v1247 = vmax.f32 %v1217, 0.0
      %v1248 = vmax.f32 %v1219, 0.0
      %v1249 = vmax.f32 %v1223, 0.0
      %v1250 = vmax.f32 %v1225, 0.0
      %v1251 = vmax.f32 %v1227, 0.0
      %v1252 = vmax.f32 %v1229, 0.0
      %v1253 = vmax.f32 %v1233, 0.0
      %v1254 = vmax.f32 %v1235, 0.0
      %v1255 = vmax.f32 %v1237, 0.0
      %v1256 = vmax.f32 %v1239, 0.0
      %v1257 = vpack.c.bf16 %v1243, %v1241
      %v1258 = vpack.c.bf16 %v1244, %v1242
      %v1259 = vpack.c.bf16 %v1247, %v1245
      %v1260 = vpack.c.bf16 %v1248, %v1246
      %v1261 = vpack.c.bf16 %v1251, %v1249
      %v1262 = vpack.c.bf16 %v1252, %v1250
      %v1263 = vpack.c.bf16 %v1255, %v1253
      %v1264 = vpack.c.bf16 %v1256, %v1254
      %1269 = vrot.lane.b32.xlu0 %v1257, 112
      %v1270 = vpop.permute.xlu0 %1269
      %1271 = vrot.lane.b32.xlu0 %v1259, 112
      %v1272 = vpop.permute.xlu0 %1271
      %1273 = vrot.lane.b32.xlu0 %v1261, 112
      %v1274 = vpop.permute.xlu0 %1273
      %1275 = vrot.lane.b32.xlu0 %v1263, 112
      %v1276 = vpop.permute.xlu0 %1275
      %1277 = vrot.lane.b32.xlu0 %v1257, 96
      %v1278 = vpop.permute.xlu0 %1277
      %1279 = vrot.lane.b32.xlu0 %v1259, 96
      %v1280 = vpop.permute.xlu0 %1279
      %1281 = vrot.lane.b32.xlu0 %v1261, 96
      %v1282 = vpop.permute.xlu0 %1281
      %1283 = vrot.lane.b32.xlu0 %v1263, 96
      %v1284 = vpop.permute.xlu0 %1283
      %1285 = vrot.lane.b32.xlu0 %v1257, 80
      %v1286 = vpop.permute.xlu0 %1285
      %1287 = vrot.lane.b32.xlu0 %v1259, 80
      %v1288 = vpop.permute.xlu0 %1287
      %1289 = vrot.lane.b32.xlu0 %v1261, 80
      %v1290 = vpop.permute.xlu0 %1289
      %1291 = vrot.lane.b32.xlu0 %v1263, 80
      %v1292 = vpop.permute.xlu0 %1291
      %1293 = vrot.lane.b32.xlu0 %v1257, 64
      %v1294 = vpop.permute.xlu0 %1293
      %1295 = vrot.lane.b32.xlu0 %v1259, 64
      %v1296 = vpop.permute.xlu0 %1295
      %1297 = vrot.lane.b32.xlu0 %v1261, 64
      %v1298 = vpop.permute.xlu0 %1297
      %1299 = vrot.lane.b32.xlu0 %v1263, 64
      %v1300 = vpop.permute.xlu0 %1299
      %1301 = vrot.lane.b32.xlu0 %v1257, 48
      %v1302 = vpop.permute.xlu0 %1301
      %1303 = vrot.lane.b32.xlu0 %v1259, 48
      %v1304 = vpop.permute.xlu0 %1303
      %1305 = vrot.lane.b32.xlu0 %v1261, 48
      %v1306 = vpop.permute.xlu0 %1305
      %1307 = vrot.lane.b32.xlu0 %v1263, 48
      %v1308 = vpop.permute.xlu0 %1307
      %1309 = vrot.lane.b32.xlu0 %v1257, 32
      %v1310 = vpop.permute.xlu0 %1309
      %1311 = vrot.lane.b32.xlu0 %v1259, 32
      %v1312 = vpop.permute.xlu0 %1311
      %1313 = vrot.lane.b32.xlu0 %v1261, 32
      %v1314 = vpop.permute.xlu0 %1313
      %1315 = vrot.lane.b32.xlu0 %v1263, 32
      %v1316 = vpop.permute.xlu0 %1315
      %1317 = vrot.lane.b32.xlu0 %v1257, 16
      %v1318 = vpop.permute.xlu0 %1317
      %1319 = vrot.lane.b32.xlu0 %v1259, 16
      %v1320 = vpop.permute.xlu0 %1319
      %1321 = vrot.lane.b32.xlu0 %v1261, 16
      %v1322 = vpop.permute.xlu0 %1321
      %1323 = vrot.lane.b32.xlu0 %v1263, 16
      %v1324 = vpop.permute.xlu0 %1323
      %1329 = vrot.lane.b32.xlu0 %v1258, 112
      %v1330 = vpop.permute.xlu0 %1329
      %1331 = vrot.lane.b32.xlu0 %v1260, 112
      %v1332 = vpop.permute.xlu0 %1331
      %1333 = vrot.lane.b32.xlu0 %v1262, 112
      %v1334 = vpop.permute.xlu0 %1333
      %1335 = vrot.lane.b32.xlu0 %v1264, 112
      %v1336 = vpop.permute.xlu0 %1335
      %1337 = vrot.lane.b32.xlu0 %v1258, 96
      %v1338 = vpop.permute.xlu0 %1337
      %1339 = vrot.lane.b32.xlu0 %v1260, 96
      %v1340 = vpop.permute.xlu0 %1339
      %1341 = vrot.lane.b32.xlu0 %v1262, 96
      %v1342 = vpop.permute.xlu0 %1341
      %1343 = vrot.lane.b32.xlu0 %v1264, 96
      %v1344 = vpop.permute.xlu0 %1343
      %1345 = vrot.lane.b32.xlu0 %v1258, 80
      %v1346 = vpop.permute.xlu0 %1345
      %1347 = vrot.lane.b32.xlu0 %v1260, 80
      %v1348 = vpop.permute.xlu0 %1347
      %1349 = vrot.lane.b32.xlu0 %v1262, 80
      %v1350 = vpop.permute.xlu0 %1349
      %1351 = vrot.lane.b32.xlu0 %v1264, 80
      %v1352 = vpop.permute.xlu0 %1351
      %1353 = vrot.lane.b32.xlu0 %v1258, 64
      %v1354 = vpop.permute.xlu0 %1353
      %1355 = vrot.lane.b32.xlu0 %v1260, 64
      %v1356 = vpop.permute.xlu0 %1355
      %1357 = vrot.lane.b32.xlu0 %v1262, 64
      %v1358 = vpop.permute.xlu0 %1357
      %1359 = vrot.lane.b32.xlu0 %v1264, 64
      %v1360 = vpop.permute.xlu0 %1359
      %1361 = vrot.lane.b32.xlu0 %v1258, 48
      %v1362 = vpop.permute.xlu0 %1361
      %1363 = vrot.lane.b32.xlu0 %v1260, 48
      %v1364 = vpop.permute.xlu0 %1363
      %1365 = vrot.lane.b32.xlu0 %v1262, 48
      %v1366 = vpop.permute.xlu0 %1365
      %1367 = vrot.lane.b32.xlu0 %v1264, 48
      %v1368 = vpop.permute.xlu0 %1367
      %1369 = vrot.lane.b32.xlu0 %v1258, 32
      %v1370 = vpop.permute.xlu0 %1369
      %1371 = vrot.lane.b32.xlu0 %v1260, 32
      %v1372 = vpop.permute.xlu0 %1371
      %1373 = vrot.lane.b32.xlu0 %v1262, 32
      %v1374 = vpop.permute.xlu0 %1373
      %1375 = vrot.lane.b32.xlu0 %v1264, 32
      %v1376 = vpop.permute.xlu0 %1375
      %1377 = vrot.lane.b32.xlu0 %v1258, 16
      %v1378 = vpop.permute.xlu0 %1377
      %1379 = vrot.lane.b32.xlu0 %v1260, 16
      %v1380 = vpop.permute.xlu0 %1379
      %1381 = vrot.lane.b32.xlu0 %v1262, 16
      %v1382 = vpop.permute.xlu0 %1381
      %1383 = vrot.lane.b32.xlu0 %v1264, 16
      %v1384 = vpop.permute.xlu0 %1383
      %v1385 = vld [vmem:[%s6] sm:$0xf]
      %v1386 = vld [vmem:[%s6 + $0x4] sm:$0xf]
      %v1389 = vunpack.c.l.b16 %v1385
      %v1390 = vunpack.c.l.b16 %v1386
      %v1391 = vpack.c.b16 %v1390, %v1389
      %v1394 = vsel %vm502, %v1257, 0
      %v1397 = vsel %vm502, %v1259, 0
      %v1400 = vsel %vm502, %v1261, 0
      %v1403 = vsel %vm502, %v1263, 0
      %v1406 = vsel %vm502, %v1270, 0
      %v1409 = vsel %vm502, %v1272, 0
      %v1412 = vsel %vm502, %v1274, 0
      %v1415 = vsel %vm502, %v1276, 0
      %v1418 = vsel %vm502, %v1278, 0
      %v1421 = vsel %vm502, %v1280, 0
      %v1424 = vsel %vm502, %v1282, 0
      %v1427 = vsel %vm502, %v1284, 0
      %v1430 = vsel %vm502, %v1286, 0
      %v1433 = vsel %vm502, %v1288, 0
      %v1436 = vsel %vm502, %v1290, 0
      %v1439 = vsel %vm502, %v1292, 0
      %v1442 = vsel %vm502, %v1294, 0
      %v1445 = vsel %vm502, %v1296, 0
      %v1448 = vsel %vm502, %v1298, 0
      %v1451 = vsel %vm502, %v1300, 0
      %v1454 = vsel %vm502, %v1302, 0
      %v1457 = vsel %vm502, %v1304, 0
      %v1460 = vsel %vm502, %v1306, 0
      %v1463 = vsel %vm502, %v1308, 0
      %v1466 = vsel %vm502, %v1310, 0
      %v1469 = vsel %vm502, %v1312, 0
      %v1472 = vsel %vm502, %v1314, 0
      %v1475 = vsel %vm502, %v1316, 0
      %v1478 = vsel %vm502, %v1318, 0
      %v1481 = vsel %vm502, %v1320, 0
      %v1484 = vsel %vm502, %v1322, 0
      %v1487 = vsel %vm502, %v1324, 0
      %v1490 = vsel %vm502, %v1258, 0
      %v1493 = vsel %vm502, %v1260, 0
      %v1496 = vsel %vm502, %v1262, 0
      %v1499 = vsel %vm502, %v1264, 0
      %v1502 = vsel %vm502, %v1330, 0
      %v1505 = vsel %vm502, %v1332, 0
      %v1508 = vsel %vm502, %v1334, 0
      %v1511 = vsel %vm502, %v1336, 0
      %v1514 = vsel %vm502, %v1338, 0
      %v1517 = vsel %vm502, %v1340, 0
      %v1520 = vsel %vm502, %v1342, 0
      %v1523 = vsel %vm502, %v1344, 0
      %v1526 = vsel %vm502, %v1346, 0
      %v1529 = vsel %vm502, %v1348, 0
      %v1532 = vsel %vm502, %v1350, 0
      %v1535 = vsel %vm502, %v1352, 0
      %v1538 = vsel %vm502, %v1354, 0
      %v1541 = vsel %vm502, %v1356, 0
      %v1544 = vsel %vm502, %v1358, 0
      %v1547 = vsel %vm502, %v1360, 0
      %v1550 = vsel %vm502, %v1362, 0
      %v1553 = vsel %vm502, %v1364, 0
      %v1556 = vsel %vm502, %v1366, 0
      %v1559 = vsel %vm502, %v1368, 0
      %v1562 = vsel %vm502, %v1370, 0
      %v1565 = vsel %vm502, %v1372, 0
      %v1568 = vsel %vm502, %v1374, 0
      %v1571 = vsel %vm502, %v1376, 0
      %v1574 = vsel %vm502, %v1378, 0
      %v1577 = vsel %vm502, %v1380, 0
      %v1580 = vsel %vm502, %v1382, 0
      %v1583 = vsel %vm502, %v1384, 0
      %1585 = vmatprep.subr.bf16.mxu0 0
      %1586 = vmatpush1.bf16.msra.mxu0 %v1391
      %1587 = vmatprep.subr.bf16.mxu0 0
      %1588 = vmatpush1.bf16.msra.mxu0 0
      %1589 = vmatprep.subr.bf16.mxu0 0
      %1590 = vmatpush1.bf16.msra.mxu0 0
      %1591 = vmatprep.subr.bf16.mxu0 0
      %1592 = vmatpush1.bf16.msra.mxu0 0
      %1593 = vmatprep.subr.bf16.mxu0 0
      %1594 = vmatpush1.bf16.msra.mxu0 0
      %1595 = vmatprep.subr.bf16.mxu0 0
      %1596 = vmatpush1.bf16.msra.mxu0 0
      %1597 = vmatprep.subr.bf16.mxu0 0
      %1598 = vmatpush1.bf16.msra.mxu0 0
      %1599 = vmatprep.subr.bf16.mxu0 0
      %1600 = vmatpush1.bf16.msra.mxu0 0
      %1601 = vmatprep.subr.bf16.mxu0 0
      %1602 = vmatpush1.bf16.msra.mxu0 0
      %1603 = vmatprep.subr.bf16.mxu0 0
      %1604 = vmatpush1.bf16.msra.mxu0 0
      %1605 = vmatprep.subr.bf16.mxu0 0
      %1606 = vmatpush1.bf16.msra.mxu0 0
      %1607 = vmatprep.subr.bf16.mxu0 0
      %1608 = vmatpush1.bf16.msra.mxu0 0
      %1609 = vmatprep.subr.bf16.mxu0 0
      %1610 = vmatpush1.bf16.msra.mxu0 0
      %1611 = vmatprep.subr.bf16.mxu0 0
      %1612 = vmatpush1.bf16.msra.mxu0 0
      %1613 = vmatprep.subr.bf16.mxu0 0
      %1614 = vmatpush1.bf16.msra.mxu0 0
      %1615 = vmatprep.subr.bf16.mxu0 0
      %1616 = vmatpush1.bf16.msra.mxu0 0
      %1617 = vmatprep.mubr.bf16.mxu0 0
      %1618 = vmatmul.mubr.bf16.gmra.mrb[0].mxu0 %v1394
      %v1619 = vpop.f32.mrb[0].mxu0
      %v1620 = vadd.f32 0.0, %v1619
      %v1621 = vpop.f32.mrb[0].mxu0
      %v1622 = vpop.f32.mrb[0].mxu0
      %v1623 = vadd.f32 0.0, %v1622
      %v1624 = vpop.f32.mrb[0].mxu0
      %1625 = vmatprep.mubr.bf16.mxu0 0
      %1626 = vmatmul.mubr.bf16.gmra.mrb[0].mxu0 %v1397
      %v1627 = vpop.f32.mrb[0].mxu0
      %v1628 = vadd.f32 0.0, %v1627
      %v1629 = vpop.f32.mrb[0].mxu0
      %v1630 = vpop.f32.mrb[0].mxu0
      %v1631 = vadd.f32 0.0, %v1630
      %v1632 = vpop.f32.mrb[0].mxu0
      %1633 = vmatprep.mubr.bf16.mxu0 0
      %1634 = vmatmul.mubr.bf16.gmra.mrb[0].mxu0 %v1400
      %v1635 = vpop.f32.mrb[0].mxu0
      %v1636 = vadd.f32 0.0, %v1635
      %v1637 = vpop.f32.mrb[0].mxu0
      %v1638 = vpop.f32.mrb[0].mxu0
      %v1639 = vadd.f32 0.0, %v1638
      %v1640 = vpop.f32.mrb[0].mxu0
      %1641 = vmatprep.mubr.bf16.mxu0 0
      %1642 = vmatmul.mubr.bf16.gmra.mrb[0].mxu0 %v1403
      %v1643 = vpop.f32.mrb[0].mxu0
      %v1644 = vadd.f32 0.0, %v1643
      %v1645 = vpop.f32.mrb[0].mxu0
      %v1646 = vpop.f32.mrb[0].mxu0
      %v1647 = vadd.f32 0.0, %v1646
      %v1648 = vpop.f32.mrb[0].mxu0
      %1649 = vmatprep.mubr.bf16.mxu0 0
      %1650 = vmatmul.mubr.bf16.gmra.mrb[0].mxu0 %v1406
      %v1651 = vpop.f32.mrb[0].mxu0
      %v1652 = vadd.f32 0.0, %v1651
      %v1653 = vpop.f32.mrb[0].mxu0
      %v1654 = vpop.f32.mrb[0].mxu0
      %v1655 = vadd.f32 0.0, %v1654
      %v1656 = vpop.f32.mrb[0].mxu0
      %1657 = vmatprep.mubr.bf16.mxu0 0
      %1658 = vmatmul.mubr.bf16.gmra.mrb[0].mxu0 %v1409
      %v1659 = vpop.f32.mrb[0].mxu0
      %v1660 = vadd.f32 0.0, %v1659
      %v1661 = vpop.f32.mrb[0].mxu0
      %v1662 = vpop.f32.mrb[0].mxu0
      %v1663 = vadd.f32 0.0, %v1662
      %v1664 = vpop.f32.mrb[0].mxu0
      %1665 = vmatprep.mubr.bf16.mxu0 0
      %1666 = vmatmul.mubr.bf16.gmra.mrb[0].mxu0 %v1412
      %v1667 = vpop.f32.mrb[0].mxu0
      %v1668 = vadd.f32 0.0, %v1667
      %v1669 = vpop.f32.mrb[0].mxu0
      %v1670 = vpop.f32.mrb[0].mxu0
      %v1671 = vadd.f32 0.0, %v1670
      %v1672 = vpop.f32.mrb[0].mxu0
      %1673 = vmatprep.mubr.bf16.mxu0 0
      %1674 = vmatmul.mubr.bf16.gmra.mrb[0].mxu0 %v1415
      %v1675 = vpop.f32.mrb[0].mxu0
      %v1676 = vadd.f32 0.0, %v1675
      %v1677 = vpop.f32.mrb[0].mxu0
      %v1678 = vpop.f32.mrb[0].mxu0
      %v1679 = vadd.f32 0.0, %v1678
      %v1680 = vpop.f32.mrb[0].mxu0
      %1681 = vmatprep.mubr.bf16.mxu0 0
      %1682 = vmatmul.mubr.bf16.gmra.mrb[0].mxu0 %v1418
      %v1683 = vpop.f32.mrb[0].mxu0
      %v1684 = vadd.f32 0.0, %v1683
      %v1685 = vpop.f32.mrb[0].mxu0
      %v1686 = vpop.f32.mrb[0].mxu0
      %v1687 = vadd.f32 0.0, %v1686
      %v1688 = vpop.f32.mrb[0].mxu0
      %1689 = vmatprep.mubr.bf16.mxu0 0
      %1690 = vmatmul.mubr.bf16.gmra.mrb[0].mxu0 %v1421
      %v1691 = vpop.f32.mrb[0].mxu0
      %v1692 = vadd.f32 0.0, %v1691
      %v1693 = vpop.f32.mrb[0].mxu0
      %v1694 = vpop.f32.mrb[0].mxu0
      %v1695 = vadd.f32 0.0, %v1694
      %v1696 = vpop.f32.mrb[0].mxu0
      %1697 = vmatprep.mubr.bf16.mxu0 0
      %1698 = vmatmul.mubr.bf16.gmra.mrb[0].mxu0 %v1424
      %v1699 = vpop.f32.mrb[0].mxu0
      %v1700 = vadd.f32 0.0, %v1699
      %v1701 = vpop.f32.mrb[0].mxu0
      %v1702 = vpop.f32.mrb[0].mxu0
      %v1703 = vadd.f32 0.0, %v1702
      %v1704 = vpop.f32.mrb[0].mxu0
      %1705 = vmatprep.mubr.bf16.mxu0 0
      %1706 = vmatmul.mubr.bf16.gmra.mrb[0].mxu0 %v1427
      %v1707 = vpop.f32.mrb[0].mxu0
      %v1708 = vadd.f32 0.0, %v1707
      %v1709 = vpop.f32.mrb[0].mxu0
      %v1710 = vpop.f32.mrb[0].mxu0
      %v1711 = vadd.f32 0.0, %v1710
      %v1712 = vpop.f32.mrb[0].mxu0
      %1713 = vmatprep.mubr.bf16.mxu0 0
      %1714 = vmatmul.mubr.bf16.gmra.mrb[0].mxu0 %v1430
      %v1715 = vpop.f32.mrb[0].mxu0
      %v1716 = vadd.f32 0.0, %v1715
      %v1717 = vpop.f32.mrb[0].mxu0
      %v1718 = vpop.f32.mrb[0].mxu0
      %v1719 = vadd.f32 0.0, %v1718
      %v1720 = vpop.f32.mrb[0].mxu0
      %1721 = vmatprep.mubr.bf16.mxu0 0
      %1722 = vmatmul.mubr.bf16.gmra.mrb[0].mxu0 %v1433
      %v1723 = vpop.f32.mrb[0].mxu0
      %v1724 = vadd.f32 0.0, %v1723
      %v1725 = vpop.f32.mrb[0].mxu0
      %v1726 = vpop.f32.mrb[0].mxu0
      %v1727 = vadd.f32 0.0, %v1726
      %v1728 = vpop.f32.mrb[0].mxu0
      %1729 = vmatprep.mubr.bf16.mxu0 0
      %1730 = vmatmul.mubr.bf16.gmra.mrb[0].mxu0 %v1436
      %v1731 = vpop.f32.mrb[0].mxu0
      %v1732 = vadd.f32 0.0, %v1731
      %v1733 = vpop.f32.mrb[0].mxu0
      %v1734 = vpop.f32.mrb[0].mxu0
      %v1735 = vadd.f32 0.0, %v1734
      %v1736 = vpop.f32.mrb[0].mxu0
      %1737 = vmatprep.mubr.bf16.mxu0 0
      %1738 = vmatmul.mubr.bf16.gmra.mrb[0].mxu0 %v1439
      %v1739 = vpop.f32.mrb[0].mxu0
      %v1740 = vadd.f32 0.0, %v1739
      %v1741 = vpop.f32.mrb[0].mxu0
      %v1742 = vpop.f32.mrb[0].mxu0
      %v1743 = vadd.f32 0.0, %v1742
      %v1744 = vpop.f32.mrb[0].mxu0
      %1745 = vmatprep.mubr.bf16.mxu0 0
      %1746 = vmatmul.mubr.bf16.gmra.mrb[0].mxu0 %v1442
      %v1747 = vpop.f32.mrb[0].mxu0
      %v1748 = vadd.f32 0.0, %v1747
      %v1749 = vpop.f32.mrb[0].mxu0
      %v1750 = vpop.f32.mrb[0].mxu0
      %v1751 = vadd.f32 0.0, %v1750
      %v1752 = vpop.f32.mrb[0].mxu0
      %1753 = vmatprep.mubr.bf16.mxu0 0
      %1754 = vmatmul.mubr.bf16.gmra.mrb[0].mxu0 %v1445
      %v1755 = vpop.f32.mrb[0].mxu0
      %v1756 = vadd.f32 0.0, %v1755
      %v1757 = vpop.f32.mrb[0].mxu0
      %v1758 = vpop.f32.mrb[0].mxu0
      %v1759 = vadd.f32 0.0, %v1758
      %v1760 = vpop.f32.mrb[0].mxu0
      %1761 = vmatprep.mubr.bf16.mxu0 0
      %1762 = vmatmul.mubr.bf16.gmra.mrb[0].mxu0 %v1448
      %v1763 = vpop.f32.mrb[0].mxu0
      %v1764 = vadd.f32 0.0, %v1763
      %v1765 = vpop.f32.mrb[0].mxu0
      %v1766 = vpop.f32.mrb[0].mxu0
      %v1767 = vadd.f32 0.0, %v1766
      %v1768 = vpop.f32.mrb[0].mxu0
      %1769 = vmatprep.mubr.bf16.mxu0 0
      %1770 = vmatmul.mubr.bf16.gmra.mrb[0].mxu0 %v1451
      %v1771 = vpop.f32.mrb[0].mxu0
      %v1772 = vadd.f32 0.0, %v1771
      %v1773 = vpop.f32.mrb[0].mxu0
      %v1774 = vpop.f32.mrb[0].mxu0
      %v1775 = vadd.f32 0.0, %v1774
      %v1776 = vpop.f32.mrb[0].mxu0
      %1777 = vmatprep.mubr.bf16.mxu0 0
      %1778 = vmatmul.mubr.bf16.gmra.mrb[0].mxu0 %v1454
      %v1779 = vpop.f32.mrb[0].mxu0
      %v1780 = vadd.f32 0.0, %v1779
      %v1781 = vpop.f32.mrb[0].mxu0
      %v1782 = vpop.f32.mrb[0].mxu0
      %v1783 = vadd.f32 0.0, %v1782
      %v1784 = vpop.f32.mrb[0].mxu0
      %1785 = vmatprep.mubr.bf16.mxu0 0
      %1786 = vmatmul.mubr.bf16.gmra.mrb[0].mxu0 %v1457
      %v1787 = vpop.f32.mrb[0].mxu0
      %v1788 = vadd.f32 0.0, %v1787
      %v1789 = vpop.f32.mrb[0].mxu0
      %v1790 = vpop.f32.mrb[0].mxu0
      %v1791 = vadd.f32 0.0, %v1790
      %v1792 = vpop.f32.mrb[0].mxu0
      %1793 = vmatprep.mubr.bf16.mxu0 0
      %1794 = vmatmul.mubr.bf16.gmra.mrb[0].mxu0 %v1460
      %v1795 = vpop.f32.mrb[0].mxu0
      %v1796 = vadd.f32 0.0, %v1795
      %v1797 = vpop.f32.mrb[0].mxu0
      %v1798 = vpop.f32.mrb[0].mxu0
      %v1799 = vadd.f32 0.0, %v1798
      %v1800 = vpop.f32.mrb[0].mxu0
      %1801 = vmatprep.mubr.bf16.mxu0 0
      %1802 = vmatmul.mubr.bf16.gmra.mrb[0].mxu0 %v1463
      %v1803 = vpop.f32.mrb[0].mxu0
      %v1804 = vadd.f32 0.0, %v1803
      %v1805 = vpop.f32.mrb[0].mxu0
      %v1806 = vpop.f32.mrb[0].mxu0
      %v1807 = vadd.f32 0.0, %v1806
      %v1808 = vpop.f32.mrb[0].mxu0
      %1809 = vmatprep.mubr.bf16.mxu0 0
      %1810 = vmatmul.mubr.bf16.gmra.mrb[0].mxu0 %v1466
      %v1811 = vpop.f32.mrb[0].mxu0
      %v1812 = vadd.f32 0.0, %v1811
      %v1813 = vpop.f32.mrb[0].mxu0
      %v1814 = vpop.f32.mrb[0].mxu0
      %v1815 = vadd.f32 0.0, %v1814
      %v1816 = vpop.f32.mrb[0].mxu0
      %1817 = vmatprep.mubr.bf16.mxu0 0
      %1818 = vmatmul.mubr.bf16.gmra.mrb[0].mxu0 %v1469
      %v1819 = vpop.f32.mrb[0].mxu0
      %v1820 = vadd.f32 0.0, %v1819
      %v1821 = vpop.f32.mrb[0].mxu0
      %v1822 = vpop.f32.mrb[0].mxu0
      %v1823 = vadd.f32 0.0, %v1822
      %v1824 = vpop.f32.mrb[0].mxu0
      %1825 = vmatprep.mubr.bf16.mxu0 0
      %1826 = vmatmul.mubr.bf16.gmra.mrb[0].mxu0 %v1472
      %v1827 = vpop.f32.mrb[0].mxu0
      %v1828 = vadd.f32 0.0, %v1827
      %v1829 = vpop.f32.mrb[0].mxu0
      %v1830 = vpop.f32.mrb[0].mxu0
      %v1831 = vadd.f32 0.0, %v1830
      %v1832 = vpop.f32.mrb[0].mxu0
      %1833 = vmatprep.mubr.bf16.mxu0 0
      %1834 = vmatmul.mubr.bf16.gmra.mrb[0].mxu0 %v1475
      %v1835 = vpop.f32.mrb[0].mxu0
      %v1836 = vadd.f32 0.0, %v1835
      %v1837 = vpop.f32.mrb[0].mxu0
      %v1838 = vpop.f32.mrb[0].mxu0
      %v1839 = vadd.f32 0.0, %v1838
      %v1840 = vpop.f32.mrb[0].mxu0
      %1841 = vmatprep.mubr.bf16.mxu0 0
      %1842 = vmatmul.mubr.bf16.gmra.mrb[0].mxu0 %v1478
      %v1843 = vpop.f32.mrb[0].mxu0
      %v1844 = vadd.f32 0.0, %v1843
      %v1845 = vpop.f32.mrb[0].mxu0
      %v1846 = vpop.f32.mrb[0].mxu0
      %v1847 = vadd.f32 0.0, %v1846
      %v1848 = vpop.f32.mrb[0].mxu0
      %1849 = vmatprep.mubr.bf16.mxu0 0
      %1850 = vmatmul.mubr.bf16.gmra.mrb[0].mxu0 %v1481
      %v1851 = vpop.f32.mrb[0].mxu0
      %v1852 = vadd.f32 0.0, %v1851
      %v1853 = vpop.f32.mrb[0].mxu0
      %v1854 = vpop.f32.mrb[0].mxu0
      %v1855 = vadd.f32 0.0, %v1854
      %v1856 = vpop.f32.mrb[0].mxu0
      %1857 = vmatprep.mubr.bf16.mxu0 0
      %1858 = vmatmul.mubr.bf16.gmra.mrb[0].mxu0 %v1484
      %v1859 = vpop.f32.mrb[0].mxu0
      %v1860 = vadd.f32 0.0, %v1859
      %v1861 = vpop.f32.mrb[0].mxu0
      %v1862 = vpop.f32.mrb[0].mxu0
      %v1863 = vadd.f32 0.0, %v1862
      %v1864 = vpop.f32.mrb[0].mxu0
      %1865 = vmatprep.mubr.bf16.mxu0 0
      %1866 = vmatmul.mubr.bf16.gmra.mrb[0].mxu0 %v1487
      %v1867 = vpop.f32.mrb[0].mxu0
      %v1868 = vadd.f32 0.0, %v1867
      %v1869 = vpop.f32.mrb[0].mxu0
      %v1870 = vpop.f32.mrb[0].mxu0
      %v1871 = vadd.f32 0.0, %v1870
      %v1872 = vpop.f32.mrb[0].mxu0
      %1873 = vmatprep.mubr.bf16.mxu0 0
      %1874 = vmatmul.mubr.bf16.gmra.mrb[0].mxu0 %v1490
      %v1875 = vpop.f32.mrb[0].mxu0
      %v1876 = vadd.f32 0.0, %v1875
      %v1877 = vpop.f32.mrb[0].mxu0
      %v1878 = vpop.f32.mrb[0].mxu0
      %v1879 = vadd.f32 0.0, %v1878
      %v1880 = vpop.f32.mrb[0].mxu0
      %1881 = vmatprep.mubr.bf16.mxu0 0
      %1882 = vmatmul.mubr.bf16.gmra.mrb[0].mxu0 %v1493
      %v1883 = vpop.f32.mrb[0].mxu0
      %v1884 = vadd.f32 0.0, %v1883
      %v1885 = vpop.f32.mrb[0].mxu0
      %v1886 = vpop.f32.mrb[0].mxu0
      %v1887 = vadd.f32 0.0, %v1886
      %v1888 = vpop.f32.mrb[0].mxu0
      %1889 = vmatprep.mubr.bf16.mxu0 0
      %1890 = vmatmul.mubr.bf16.gmra.mrb[0].mxu0 %v1496
      %v1891 = vpop.f32.mrb[0].mxu0
      %v1892 = vadd.f32 0.0, %v1891
      %v1893 = vpop.f32.mrb[0].mxu0
      %v1894 = vpop.f32.mrb[0].mxu0
      %v1895 = vadd.f32 0.0, %v1894
      %v1896 = vpop.f32.mrb[0].mxu0
      %1897 = vmatprep.mubr.bf16.mxu0 0
      %1898 = vmatmul.mubr.bf16.gmra.mrb[0].mxu0 %v1499
      %v1899 = vpop.f32.mrb[0].mxu0
      %v1900 = vadd.f32 0.0, %v1899
      %v1901 = vpop.f32.mrb[0].mxu0
      %v1902 = vpop.f32.mrb[0].mxu0
      %v1903 = vadd.f32 0.0, %v1902
      %v1904 = vpop.f32.mrb[0].mxu0
      %1905 = vmatprep.mubr.bf16.mxu0 0
      %1906 = vmatmul.mubr.bf16.gmra.mrb[0].mxu0 %v1502
      %v1907 = vpop.f32.mrb[0].mxu0
      %v1908 = vadd.f32 0.0, %v1907
      %v1909 = vpop.f32.mrb[0].mxu0
      %v1910 = vpop.f32.mrb[0].mxu0
      %v1911 = vadd.f32 0.0, %v1910
      %v1912 = vpop.f32.mrb[0].mxu0
      %1913 = vmatprep.mubr.bf16.mxu0 0
      %1914 = vmatmul.mubr.bf16.gmra.mrb[0].mxu0 %v1505
      %v1915 = vpop.f32.mrb[0].mxu0
      %v1916 = vadd.f32 0.0, %v1915
      %v1917 = vpop.f32.mrb[0].mxu0
      %v1918 = vpop.f32.mrb[0].mxu0
      %v1919 = vadd.f32 0.0, %v1918
      %v1920 = vpop.f32.mrb[0].mxu0
      %1921 = vmatprep.mubr.bf16.mxu0 0
      %1922 = vmatmul.mubr.bf16.gmra.mrb[0].mxu0 %v1508
      %v1923 = vpop.f32.mrb[0].mxu0
      %v1924 = vadd.f32 0.0, %v1923
      %v1925 = vpop.f32.mrb[0].mxu0
      %v1926 = vpop.f32.mrb[0].mxu0
      %v1927 = vadd.f32 0.0, %v1926
      %v1928 = vpop.f32.mrb[0].mxu0
      %1929 = vmatprep.mubr.bf16.mxu0 0
      %1930 = vmatmul.mubr.bf16.gmra.mrb[0].mxu0 %v1511
      %v1931 = vpop.f32.mrb[0].mxu0
      %v1932 = vadd.f32 0.0, %v1931
      %v1933 = vpop.f32.mrb[0].mxu0
      %v1934 = vpop.f32.mrb[0].mxu0
      %v1935 = vadd.f32 0.0, %v1934
      %v1936 = vpop.f32.mrb[0].mxu0
      %1937 = vmatprep.mubr.bf16.mxu0 0
      %1938 = vmatmul.mubr.bf16.gmra.mrb[0].mxu0 %v1514
      %v1939 = vpop.f32.mrb[0].mxu0
      %v1940 = vadd.f32 0.0, %v1939
      %v1941 = vpop.f32.mrb[0].mxu0
      %v1942 = vpop.f32.mrb[0].mxu0
      %v1943 = vadd.f32 0.0, %v1942
      %v1944 = vpop.f32.mrb[0].mxu0
      %1945 = vmatprep.mubr.bf16.mxu0 0
      %1946 = vmatmul.mubr.bf16.gmra.mrb[0].mxu0 %v1517
      %v1947 = vpop.f32.mrb[0].mxu0
      %v1948 = vadd.f32 0.0, %v1947
      %v1949 = vpop.f32.mrb[0].mxu0
      %v1950 = vpop.f32.mrb[0].mxu0
      %v1951 = vadd.f32 0.0, %v1950
      %v1952 = vpop.f32.mrb[0].mxu0
      %1953 = vmatprep.mubr.bf16.mxu0 0
      %1954 = vmatmul.mubr.bf16.gmra.mrb[0].mxu0 %v1520
      %v1955 = vpop.f32.mrb[0].mxu0
      %v1956 = vadd.f32 0.0, %v1955
      %v1957 = vpop.f32.mrb[0].mxu0
      %v1958 = vpop.f32.mrb[0].mxu0
      %v1959 = vadd.f32 0.0, %v1958
      %v1960 = vpop.f32.mrb[0].mxu0
      %1961 = vmatprep.mubr.bf16.mxu0 0
      %1962 = vmatmul.mubr.bf16.gmra.mrb[0].mxu0 %v1523
      %v1963 = vpop.f32.mrb[0].mxu0
      %v1964 = vadd.f32 0.0, %v1963
      %v1965 = vpop.f32.mrb[0].mxu0
      %v1966 = vpop.f32.mrb[0].mxu0
      %v1967 = vadd.f32 0.0, %v1966
      %v1968 = vpop.f32.mrb[0].mxu0
      %1969 = vmatprep.mubr.bf16.mxu0 0
      %1970 = vmatmul.mubr.bf16.gmra.mrb[0].mxu0 %v1526
      %v1971 = vpop.f32.mrb[0].mxu0
      %v1972 = vadd.f32 0.0, %v1971
      %v1973 = vpop.f32.mrb[0].mxu0
      %v1974 = vpop.f32.mrb[0].mxu0
      %v1975 = vadd.f32 0.0, %v1974
      %v1976 = vpop.f32.mrb[0].mxu0
      %1977 = vmatprep.mubr.bf16.mxu0 0
      %1978 = vmatmul.mubr.bf16.gmra.mrb[0].mxu0 %v1529
      %v1979 = vpop.f32.mrb[0].mxu0
      %v1980 = vadd.f32 0.0, %v1979
      %v1981 = vpop.f32.mrb[0].mxu0
      %v1982 = vpop.f32.mrb[0].mxu0
      %v1983 = vadd.f32 0.0, %v1982
      %v1984 = vpop.f32.mrb[0].mxu0
      %1985 = vmatprep.mubr.bf16.mxu0 0
      %1986 = vmatmul.mubr.bf16.gmra.mrb[0].mxu0 %v1532
      %v1987 = vpop.f32.mrb[0].mxu0
      %v1988 = vadd.f32 0.0, %v1987
      %v1989 = vpop.f32.mrb[0].mxu0
      %v1990 = vpop.f32.mrb[0].mxu0
      %v1991 = vadd.f32 0.0, %v1990
      %v1992 = vpop.f32.mrb[0].mxu0
      %1993 = vmatprep.mubr.bf16.mxu0 0
      %1994 = vmatmul.mubr.bf16.gmra.mrb[0].mxu0 %v1535
      %v1995 = vpop.f32.mrb[0].mxu0
      %v1996 = vadd.f32 0.0, %v1995
      %v1997 = vpop.f32.mrb[0].mxu0
      %v1998 = vpop.f32.mrb[0].mxu0
      %v1999 = vadd.f32 0.0, %v1998
      %v2000 = vpop.f32.mrb[0].mxu0
      %2001 = vmatprep.mubr.bf16.mxu0 0
      %2002 = vmatmul.mubr.bf16.gmra.mrb[0].mxu0 %v1538
      %v2003 = vpop.f32.mrb[0].mxu0
      %v2004 = vadd.f32 0.0, %v2003
      %v2005 = vpop.f32.mrb[0].mxu0
      %v2006 = vpop.f32.mrb[0].mxu0
      %v2007 = vadd.f32 0.0, %v2006
      %v2008 = vpop.f32.mrb[0].mxu0
      %2009 = vmatprep.mubr.bf16.mxu0 0
      %2010 = vmatmul.mubr.bf16.gmra.mrb[0].mxu0 %v1541
      %v2011 = vpop.f32.mrb[0].mxu0
      %v2012 = vadd.f32 0.0, %v2011
      %v2013 = vpop.f32.mrb[0].mxu0
      %v2014 = vpop.f32.mrb[0].mxu0
      %v2015 = vadd.f32 0.0, %v2014
      %v2016 = vpop.f32.mrb[0].mxu0
      %2017 = vmatprep.mubr.bf16.mxu0 0
      %2018 = vmatmul.mubr.bf16.gmra.mrb[0].mxu0 %v1544
      %v2019 = vpop.f32.mrb[0].mxu0
      %v2020 = vadd.f32 0.0, %v2019
      %v2021 = vpop.f32.mrb[0].mxu0
      %v2022 = vpop.f32.mrb[0].mxu0
      %v2023 = vadd.f32 0.0, %v2022
      %v2024 = vpop.f32.mrb[0].mxu0
      %2025 = vmatprep.mubr.bf16.mxu0 0
      %2026 = vmatmul.mubr.bf16.gmra.mrb[0].mxu0 %v1547
      %v2027 = vpop.f32.mrb[0].mxu0
      %v2028 = vadd.f32 0.0, %v2027
      %v2029 = vpop.f32.mrb[0].mxu0
      %v2030 = vpop.f32.mrb[0].mxu0
      %v2031 = vadd.f32 0.0, %v2030
      %v2032 = vpop.f32.mrb[0].mxu0
      %2033 = vmatprep.mubr.bf16.mxu0 0
      %2034 = vmatmul.mubr.bf16.gmra.mrb[0].mxu0 %v1550
      %v2035 = vpop.f32.mrb[0].mxu0
      %v2036 = vadd.f32 0.0, %v2035
      %v2037 = vpop.f32.mrb[0].mxu0
      %v2038 = vpop.f32.mrb[0].mxu0
      %v2039 = vadd.f32 0.0, %v2038
      %v2040 = vpop.f32.mrb[0].mxu0
      %2041 = vmatprep.mubr.bf16.mxu0 0
      %2042 = vmatmul.mubr.bf16.gmra.mrb[0].mxu0 %v1553
      %v2043 = vpop.f32.mrb[0].mxu0
      %v2044 = vadd.f32 0.0, %v2043
      %v2045 = vpop.f32.mrb[0].mxu0
      %v2046 = vpop.f32.mrb[0].mxu0
      %v2047 = vadd.f32 0.0, %v2046
      %v2048 = vpop.f32.mrb[0].mxu0
      %2049 = vmatprep.mubr.bf16.mxu0 0
      %2050 = vmatmul.mubr.bf16.gmra.mrb[0].mxu0 %v1556
      %v2051 = vpop.f32.mrb[0].mxu0
      %v2052 = vadd.f32 0.0, %v2051
      %v2053 = vpop.f32.mrb[0].mxu0
      %v2054 = vpop.f32.mrb[0].mxu0
      %v2055 = vadd.f32 0.0, %v2054
      %v2056 = vpop.f32.mrb[0].mxu0
      %2057 = vmatprep.mubr.bf16.mxu0 0
      %2058 = vmatmul.mubr.bf16.gmra.mrb[0].mxu0 %v1559
      %v2059 = vpop.f32.mrb[0].mxu0
      %v2060 = vadd.f32 0.0, %v2059
      %v2061 = vpop.f32.mrb[0].mxu0
      %v2062 = vpop.f32.mrb[0].mxu0
      %v2063 = vadd.f32 0.0, %v2062
      %v2064 = vpop.f32.mrb[0].mxu0
      %2065 = vmatprep.mubr.bf16.mxu0 0
      %2066 = vmatmul.mubr.bf16.gmra.mrb[0].mxu0 %v1562
      %v2067 = vpop.f32.mrb[0].mxu0
      %v2068 = vadd.f32 0.0, %v2067
      %v2069 = vpop.f32.mrb[0].mxu0
      %v2070 = vpop.f32.mrb[0].mxu0
      %v2071 = vadd.f32 0.0, %v2070
      %v2072 = vpop.f32.mrb[0].mxu0
      %2073 = vmatprep.mubr.bf16.mxu0 0
      %2074 = vmatmul.mubr.bf16.gmra.mrb[0].mxu0 %v1565
      %v2075 = vpop.f32.mrb[0].mxu0
      %v2076 = vadd.f32 0.0, %v2075
      %v2077 = vpop.f32.mrb[0].mxu0
      %v2078 = vpop.f32.mrb[0].mxu0
      %v2079 = vadd.f32 0.0, %v2078
      %v2080 = vpop.f32.mrb[0].mxu0
      %2081 = vmatprep.mubr.bf16.mxu0 0
      %2082 = vmatmul.mubr.bf16.gmra.mrb[0].mxu0 %v1568
      %v2083 = vpop.f32.mrb[0].mxu0
      %v2084 = vadd.f32 0.0, %v2083
      %v2085 = vpop.f32.mrb[0].mxu0
      %v2086 = vpop.f32.mrb[0].mxu0
      %v2087 = vadd.f32 0.0, %v2086
      %v2088 = vpop.f32.mrb[0].mxu0
      %2089 = vmatprep.mubr.bf16.mxu0 0
      %2090 = vmatmul.mubr.bf16.gmra.mrb[0].mxu0 %v1571
      %v2091 = vpop.f32.mrb[0].mxu0
      %v2092 = vadd.f32 0.0, %v2091
      %v2093 = vpop.f32.mrb[0].mxu0
      %v2094 = vpop.f32.mrb[0].mxu0
      %v2095 = vadd.f32 0.0, %v2094
      %v2096 = vpop.f32.mrb[0].mxu0
      %2097 = vmatprep.mubr.bf16.mxu0 0
      %2098 = vmatmul.mubr.bf16.gmra.mrb[0].mxu0 %v1574
      %v2099 = vpop.f32.mrb[0].mxu0
      %v2100 = vadd.f32 0.0, %v2099
      %v2101 = vpop.f32.mrb[0].mxu0
      %v2102 = vpop.f32.mrb[0].mxu0
      %v2103 = vadd.f32 0.0, %v2102
      %v2104 = vpop.f32.mrb[0].mxu0
      %2105 = vmatprep.mubr.bf16.mxu0 0
      %2106 = vmatmul.mubr.bf16.gmra.mrb[0].mxu0 %v1577
      %v2107 = vpop.f32.mrb[0].mxu0
      %v2108 = vadd.f32 0.0, %v2107
      %v2109 = vpop.f32.mrb[0].mxu0
      %v2110 = vpop.f32.mrb[0].mxu0
      %v2111 = vadd.f32 0.0, %v2110
      %v2112 = vpop.f32.mrb[0].mxu0
      %2113 = vmatprep.mubr.bf16.mxu0 0
      %2114 = vmatmul.mubr.bf16.gmra.mrb[0].mxu0 %v1580
      %v2115 = vpop.f32.mrb[0].mxu0
      %v2116 = vadd.f32 0.0, %v2115
      %v2117 = vpop.f32.mrb[0].mxu0
      %v2118 = vpop.f32.mrb[0].mxu0
      %v2119 = vadd.f32 0.0, %v2118
      %v2120 = vpop.f32.mrb[0].mxu0
      %2121 = vmatprep.mubr.bf16.mxu0 0
      %2122 = vmatmul.mubr.bf16.gmra.mrb[0].mxu0 %v1583
      %v2123 = vpop.f32.mrb[0].mxu0
      %v2124 = vadd.f32 0.0, %v2123
      %v2125 = vpop.f32.mrb[0].mxu0
      %v2126 = vpop.f32.mrb[0].mxu0
      %v2127 = vadd.f32 0.0, %v2126
      %v2128 = vpop.f32.mrb[0].mxu0
      %2129 = vdwg.mxu0
      %v2130 = vpack.c.bf16 %v1623, %v1620
      %v2131 = vpack.c.bf16 %v1631, %v1628
      %v2132 = vpack.c.bf16 %v1639, %v1636
      %v2133 = vpack.c.bf16 %v1647, %v1644
      %v2134 = vpack.c.bf16 %v1655, %v1652
      %v2135 = vpack.c.bf16 %v1663, %v1660
      %v2136 = vpack.c.bf16 %v1671, %v1668
      %v2137 = vpack.c.bf16 %v1679, %v1676
      %v2138 = vpack.c.bf16 %v1687, %v1684
      %v2139 = vpack.c.bf16 %v1695, %v1692
      %v2140 = vpack.c.bf16 %v1703, %v1700
      %v2141 = vpack.c.bf16 %v1711, %v1708
      %v2142 = vpack.c.bf16 %v1719, %v1716
      %v2143 = vpack.c.bf16 %v1727, %v1724
      %v2144 = vpack.c.bf16 %v1735, %v1732
      %v2145 = vpack.c.bf16 %v1743, %v1740
      %v2146 = vpack.c.bf16 %v1751, %v1748
      %v2147 = vpack.c.bf16 %v1759, %v1756
      %v2148 = vpack.c.bf16 %v1767, %v1764
      %v2149 = vpack.c.bf16 %v1775, %v1772
      %v2150 = vpack.c.bf16 %v1783, %v1780
      %v2151 = vpack.c.bf16 %v1791, %v1788
      %v2152 = vpack.c.bf16 %v1799, %v1796
      %v2153 = vpack.c.bf16 %v1807, %v1804
      %v2154 = vpack.c.bf16 %v1815, %v1812
      %v2155 = vpack.c.bf16 %v1823, %v1820
      %v2156 = vpack.c.bf16 %v1831, %v1828
      %v2157 = vpack.c.bf16 %v1839, %v1836
      %v2158 = vpack.c.bf16 %v1847, %v1844
      %v2159 = vpack.c.bf16 %v1855, %v1852
      %v2160 = vpack.c.bf16 %v1863, %v1860
      %v2161 = vpack.c.bf16 %v1871, %v1868
      %v2162 = vpack.c.bf16 %v1879, %v1876
      %v2163 = vpack.c.bf16 %v1887, %v1884
      %v2164 = vpack.c.bf16 %v1895, %v1892
      %v2165 = vpack.c.bf16 %v1903, %v1900
      %v2166 = vpack.c.bf16 %v1911, %v1908
      %v2167 = vpack.c.bf16 %v1919, %v1916
      %v2168 = vpack.c.bf16 %v1927, %v1924
      %v2169 = vpack.c.bf16 %v1935, %v1932
      %v2170 = vpack.c.bf16 %v1943, %v1940
      %v2171 = vpack.c.bf16 %v1951, %v1948
      %v2172 = vpack.c.bf16 %v1959, %v1956
      %v2173 = vpack.c.bf16 %v1967, %v1964
      %v2174 = vpack.c.bf16 %v1975, %v1972
      %v2175 = vpack.c.bf16 %v1983, %v1980
      %v2176 = vpack.c.bf16 %v1991, %v1988
      %v2177 = vpack.c.bf16 %v1999, %v1996
      %v2178 = vpack.c.bf16 %v2007, %v2004
      %v2179 = vpack.c.bf16 %v2015, %v2012
      %v2180 = vpack.c.bf16 %v2023, %v2020
      %v2181 = vpack.c.bf16 %v2031, %v2028
      %v2182 = vpack.c.bf16 %v2039, %v2036
      %v2183 = vpack.c.bf16 %v2047, %v2044
      %v2184 = vpack.c.bf16 %v2055, %v2052
      %v2185 = vpack.c.bf16 %v2063, %v2060
      %v2186 = vpack.c.bf16 %v2071, %v2068
      %v2187 = vpack.c.bf16 %v2079, %v2076
      %v2188 = vpack.c.bf16 %v2087, %v2084
      %v2189 = vpack.c.bf16 %v2095, %v2092
      %v2190 = vpack.c.bf16 %v2103, %v2100
      %v2191 = vpack.c.bf16 %v2111, %v2108
      %v2192 = vpack.c.bf16 %v2119, %v2116
      %v2193 = vpack.c.bf16 %v2127, %v2124
      %v2194 = vmul.bf16 %v2130, 1057242884
      %v2195 = vmul.bf16 %v2131, 1057242884
      %v2196 = vmul.bf16 %v2132, 1057242884
      %v2197 = vmul.bf16 %v2133, 1057242884
      %v2198 = vmul.bf16 %v2134, 1056456440
      %v2199 = vmul.bf16 %v2135, 1056456440
      %v2200 = vmul.bf16 %v2136, 1056456440
      %v2201 = vmul.bf16 %v2137, 1056456440
      %v2202 = vadd.bf16 %v2194, %v2198
      %v2203 = vadd.bf16 %v2195, %v2199
      %v2204 = vadd.bf16 %v2196, %v2200
      %v2205 = vadd.bf16 %v2197, %v2201
      %v2206 = vmul.bf16 %v2130, 1023687940
      %v2207 = vmul.bf16 %v2131, 1023687940
      %v2208 = vmul.bf16 %v2132, 1023687940
      %v2209 = vmul.bf16 %v2133, 1023687940
      %v2210 = vmul.bf16 %v2134, 1064845176
      %v2211 = vmul.bf16 %v2135, 1064845176
      %v2212 = vmul.bf16 %v2136, 1064845176
      %v2213 = vmul.bf16 %v2137, 1064845176
      %v2214 = vadd.bf16 %v2206, %v2210
      %v2215 = vadd.bf16 %v2207, %v2211
      %v2216 = vadd.bf16 %v2208, %v2212
      %v2217 = vadd.bf16 %v2209, %v2213
      %v2218 = vmul.bf16 %v2134, 1057767180
      %v2219 = vmul.bf16 %v2135, 1057767180
      %v2220 = vmul.bf16 %v2136, 1057767180
      %v2221 = vmul.bf16 %v2137, 1057767180
      %v2222 = vmul.bf16 %v2138, 1055342311
      %v2223 = vmul.bf16 %v2139, 1055342311
      %v2224 = vmul.bf16 %v2140, 1055342311
      %v2225 = vmul.bf16 %v2141, 1055342311
      %v2226 = vadd.bf16 %v2218, %v2222
      %v2227 = vadd.bf16 %v2219, %v2223
      %v2228 = vadd.bf16 %v2220, %v2224
      %v2229 = vadd.bf16 %v2221, %v2225
      %v2230 = vmul.bf16 %v2134, 1032076676
      %v2231 = vmul.bf16 %v2135, 1032076676
      %v2232 = vmul.bf16 %v2136, 1032076676
      %v2233 = vmul.bf16 %v2137, 1032076676
      %v2234 = vmul.bf16 %v2138, 1064255343
      %v2235 = vmul.bf16 %v2139, 1064255343
      %v2236 = vmul.bf16 %v2140, 1064255343
      %v2237 = vmul.bf16 %v2141, 1064255343
      %v2238 = vadd.bf16 %v2230, %v2234
      %v2239 = vadd.bf16 %v2231, %v2235
      %v2240 = vadd.bf16 %v2232, %v2236
      %v2241 = vadd.bf16 %v2233, %v2237
      %v2242 = vmul.bf16 %v2138, 1058357013
      %v2243 = vmul.bf16 %v2139, 1058357013
      %v2244 = vmul.bf16 %v2140, 1058357013
      %v2245 = vmul.bf16 %v2141, 1058357013
      %v2246 = vmul.bf16 %v2142, 1054293719
      %v2247 = vmul.bf16 %v2143, 1054293719
      %v2248 = vmul.bf16 %v2144, 1054293719
      %v2249 = vmul.bf16 %v2145, 1054293719
      %v2250 = vadd.bf16 %v2242, %v2246
      %v2251 = vadd.bf16 %v2243, %v2247
      %v2252 = vadd.bf16 %v2244, %v2248
      %v2253 = vadd.bf16 %v2245, %v2249
      %v2254 = vmul.bf16 %v2138, 1036402118
      %v2255 = vmul.bf16 %v2139, 1036402118
      %v2256 = vmul.bf16 %v2140, 1036402118
      %v2257 = vmul.bf16 %v2141, 1036402118
      %v2258 = vmul.bf16 %v2142, 1063731047
      %v2259 = vmul.bf16 %v2143, 1063731047
      %v2260 = vmul.bf16 %v2144, 1063731047
      %v2261 = vmul.bf16 %v2145, 1063731047
      %v2262 = vadd.bf16 %v2254, %v2258
      %v2263 = vadd.bf16 %v2255, %v2259
      %v2264 = vadd.bf16 %v2256, %v2260
      %v2265 = vadd.bf16 %v2257, %v2261
      %v2266 = vmul.bf16 %v2142, 1058881309
      %v2267 = vmul.bf16 %v2143, 1058881309
      %v2268 = vmul.bf16 %v2144, 1058881309
      %v2269 = vmul.bf16 %v2145, 1058881309
      %v2270 = vmul.bf16 %v2146, 1053179590
      %v2271 = vmul.bf16 %v2147, 1053179590
      %v2272 = vmul.bf16 %v2148, 1053179590
      %v2273 = vmul.bf16 %v2149, 1053179590
      %v2274 = vadd.bf16 %v2266, %v2270
      %v2275 = vadd.bf16 %v2267, %v2271
      %v2276 = vadd.bf16 %v2268, %v2272
      %v2277 = vadd.bf16 %v2269, %v2273
      %v2278 = vmul.bf16 %v2142, 1040465412
      %v2279 = vmul.bf16 %v2143, 1040465412
      %v2280 = vmul.bf16 %v2144, 1040465412
      %v2281 = vmul.bf16 %v2145, 1040465412
      %v2282 = vmul.bf16 %v2146, 1063206751
      %v2283 = vmul.bf16 %v2147, 1063206751
      %v2284 = vmul.bf16 %v2148, 1063206751
      %v2285 = vmul.bf16 %v2149, 1063206751
      %v2286 = vadd.bf16 %v2278, %v2282
      %v2287 = vadd.bf16 %v2279, %v2283
      %v2288 = vadd.bf16 %v2280, %v2284
      %v2289 = vadd.bf16 %v2281, %v2285
      %v2290 = vmul.bf16 %v2146, 1059405605
      %v2291 = vmul.bf16 %v2147, 1059405605
      %v2292 = vmul.bf16 %v2148, 1059405605
      %v2293 = vmul.bf16 %v2149, 1059405605
      %v2294 = vmul.bf16 %v2150, 1052130998
      %v2295 = vmul.bf16 %v2151, 1052130998
      %v2296 = vmul.bf16 %v2152, 1052130998
      %v2297 = vmul.bf16 %v2153, 1052130998
      %v2298 = vadd.bf16 %v2290, %v2294
      %v2299 = vadd.bf16 %v2291, %v2295
      %v2300 = vadd.bf16 %v2292, %v2296
      %v2301 = vadd.bf16 %v2293, %v2297
      %v2302 = vmul.bf16 %v2146, 1042628133
      %v2303 = vmul.bf16 %v2147, 1042628133
      %v2304 = vmul.bf16 %v2148, 1042628133
      %v2305 = vmul.bf16 %v2149, 1042628133
      %v2306 = vmul.bf16 %v2150, 1062682455
      %v2307 = vmul.bf16 %v2151, 1062682455
      %v2308 = vmul.bf16 %v2152, 1062682455
      %v2309 = vmul.bf16 %v2153, 1062682455
      %v2310 = vadd.bf16 %v2302, %v2306
      %v2311 = vadd.bf16 %v2303, %v2307
      %v2312 = vadd.bf16 %v2304, %v2308
      %v2313 = vadd.bf16 %v2305, %v2309
      %v2314 = vmul.bf16 %v2150, 1059929901
      %v2315 = vmul.bf16 %v2151, 1059929901
      %v2316 = vmul.bf16 %v2152, 1059929901
      %v2317 = vmul.bf16 %v2153, 1059929901
      %v2318 = vmul.bf16 %v2154, 1051016869
      %v2319 = vmul.bf16 %v2155, 1051016869
      %v2320 = vmul.bf16 %v2156, 1051016869
      %v2321 = vmul.bf16 %v2157, 1051016869
      %v2322 = vadd.bf16 %v2314, %v2318
      %v2323 = vadd.bf16 %v2315, %v2319
      %v2324 = vadd.bf16 %v2316, %v2320
      %v2325 = vadd.bf16 %v2317, %v2321
      %v2326 = vmul.bf16 %v2150, 1044790854
      %v2327 = vmul.bf16 %v2151, 1044790854
      %v2328 = vmul.bf16 %v2152, 1044790854
      %v2329 = vmul.bf16 %v2153, 1044790854
      %v2330 = vmul.bf16 %v2154, 1062092622
      %v2331 = vmul.bf16 %v2155, 1062092622
      %v2332 = vmul.bf16 %v2156, 1062092622
      %v2333 = vmul.bf16 %v2157, 1062092622
      %v2334 = vadd.bf16 %v2326, %v2330
      %v2335 = vadd.bf16 %v2327, %v2331
      %v2336 = vadd.bf16 %v2328, %v2332
      %v2337 = vadd.bf16 %v2329, %v2333
      %v2338 = vmul.bf16 %v2154, 1060519734
      %v2339 = vmul.bf16 %v2155, 1060519734
      %v2340 = vmul.bf16 %v2156, 1060519734
      %v2341 = vmul.bf16 %v2157, 1060519734
      %v2342 = vmul.bf16 %v2158, 1049968277
      %v2343 = vmul.bf16 %v2159, 1049968277
      %v2344 = vmul.bf16 %v2160, 1049968277
      %v2345 = vmul.bf16 %v2161, 1049968277
      %v2346 = vadd.bf16 %v2338, %v2342
      %v2347 = vadd.bf16 %v2339, %v2343
      %v2348 = vadd.bf16 %v2340, %v2344
      %v2349 = vadd.bf16 %v2341, %v2345
      %v2350 = vmul.bf16 %v2154, 1046953575
      %v2351 = vmul.bf16 %v2155, 1046953575
      %v2352 = vmul.bf16 %v2156, 1046953575
      %v2353 = vmul.bf16 %v2157, 1046953575
      %v2354 = vmul.bf16 %v2158, 1061568326
      %v2355 = vmul.bf16 %v2159, 1061568326
      %v2356 = vmul.bf16 %v2160, 1061568326
      %v2357 = vmul.bf16 %v2161, 1061568326
      %v2358 = vadd.bf16 %v2350, %v2354
      %v2359 = vadd.bf16 %v2351, %v2355
      %v2360 = vadd.bf16 %v2352, %v2356
      %v2361 = vadd.bf16 %v2353, %v2357
      %v2362 = vmul.bf16 %v2158, 1061044030
      %v2363 = vmul.bf16 %v2159, 1061044030
      %v2364 = vmul.bf16 %v2160, 1061044030
      %v2365 = vmul.bf16 %v2161, 1061044030
      %v2366 = vmul.bf16 %v2162, 1048854148
      %v2367 = vmul.bf16 %v2163, 1048854148
      %v2368 = vmul.bf16 %v2164, 1048854148
      %v2369 = vmul.bf16 %v2165, 1048854148
      %v2370 = vadd.bf16 %v2362, %v2366
      %v2371 = vadd.bf16 %v2363, %v2367
      %v2372 = vadd.bf16 %v2364, %v2368
      %v2373 = vadd.bf16 %v2365, %v2369
      %v2374 = vmul.bf16 %v2158, 1048854148
      %v2375 = vmul.bf16 %v2159, 1048854148
      %v2376 = vmul.bf16 %v2160, 1048854148
      %v2377 = vmul.bf16 %v2161, 1048854148
      %v2378 = vmul.bf16 %v2162, 1061044030
      %v2379 = vmul.bf16 %v2163, 1061044030
      %v2380 = vmul.bf16 %v2164, 1061044030
      %v2381 = vmul.bf16 %v2165, 1061044030
      %v2382 = vadd.bf16 %v2374, %v2378
      %v2383 = vadd.bf16 %v2375, %v2379
      %v2384 = vadd.bf16 %v2376, %v2380
      %v2385 = vadd.bf16 %v2377, %v2381
      %v2386 = vmul.bf16 %v2162, 1061568326
      %v2387 = vmul.bf16 %v2163, 1061568326
      %v2388 = vmul.bf16 %v2164, 1061568326
      %v2389 = vmul.bf16 %v2165, 1061568326
      %v2390 = vmul.bf16 %v2166, 1046953575
      %v2391 = vmul.bf16 %v2167, 1046953575
      %v2392 = vmul.bf16 %v2168, 1046953575
      %v2393 = vmul.bf16 %v2169, 1046953575
      %v2394 = vadd.bf16 %v2386, %v2390
      %v2395 = vadd.bf16 %v2387, %v2391
      %v2396 = vadd.bf16 %v2388, %v2392
      %v2397 = vadd.bf16 %v2389, %v2393
      %v2398 = vmul.bf16 %v2162, 1049968277
      %v2399 = vmul.bf16 %v2163, 1049968277
      %v2400 = vmul.bf16 %v2164, 1049968277
      %v2401 = vmul.bf16 %v2165, 1049968277
      %v2402 = vmul.bf16 %v2166, 1060519734
      %v2403 = vmul.bf16 %v2167, 1060519734
      %v2404 = vmul.bf16 %v2168, 1060519734
      %v2405 = vmul.bf16 %v2169, 1060519734
      %v2406 = vadd.bf16 %v2398, %v2402
      %v2407 = vadd.bf16 %v2399, %v2403
      %v2408 = vadd.bf16 %v2400, %v2404
      %v2409 = vadd.bf16 %v2401, %v2405
      %v2410 = vmul.bf16 %v2166, 1062092622
      %v2411 = vmul.bf16 %v2167, 1062092622
      %v2412 = vmul.bf16 %v2168, 1062092622
      %v2413 = vmul.bf16 %v2169, 1062092622
      %v2414 = vmul.bf16 %v2170, 1044790854
      %v2415 = vmul.bf16 %v2171, 1044790854
      %v2416 = vmul.bf16 %v2172, 1044790854
      %v2417 = vmul.bf16 %v2173, 1044790854
      %v2418 = vadd.bf16 %v2410, %v2414
      %v2419 = vadd.bf16 %v2411, %v2415
      %v2420 = vadd.bf16 %v2412, %v2416
      %v2421 = vadd.bf16 %v2413, %v2417
      %v2422 = vmul.bf16 %v2166, 1051016869
      %v2423 = vmul.bf16 %v2167, 1051016869
      %v2424 = vmul.bf16 %v2168, 1051016869
      %v2425 = vmul.bf16 %v2169, 1051016869
      %v2426 = vmul.bf16 %v2170, 1059929901
      %v2427 = vmul.bf16 %v2171, 1059929901
      %v2428 = vmul.bf16 %v2172, 1059929901
      %v2429 = vmul.bf16 %v2173, 1059929901
      %v2430 = vadd.bf16 %v2422, %v2426
      %v2431 = vadd.bf16 %v2423, %v2427
      %v2432 = vadd.bf16 %v2424, %v2428
      %v2433 = vadd.bf16 %v2425, %v2429
      %v2434 = vmul.bf16 %v2170, 1062682455
      %v2435 = vmul.bf16 %v2171, 1062682455
      %v2436 = vmul.bf16 %v2172, 1062682455
      %v2437 = vmul.bf16 %v2173, 1062682455
      %v2438 = vmul.bf16 %v2174, 1042628133
      %v2439 = vmul.bf16 %v2175, 1042628133
      %v2440 = vmul.bf16 %v2176, 1042628133
      %v2441 = vmul.bf16 %v2177, 1042628133
      %v2442 = vadd.bf16 %v2434, %v2438
      %v2443 = vadd.bf16 %v2435, %v2439
      %v2444 = vadd.bf16 %v2436, %v2440
      %v2445 = vadd.bf16 %v2437, %v2441
      %v2446 = vmul.bf16 %v2170, 1052130998
      %v2447 = vmul.bf16 %v2171, 1052130998
      %v2448 = vmul.bf16 %v2172, 1052130998
      %v2449 = vmul.bf16 %v2173, 1052130998
      %v2450 = vmul.bf16 %v2174, 1059405605
      %v2451 = vmul.bf16 %v2175, 1059405605
      %v2452 = vmul.bf16 %v2176, 1059405605
      %v2453 = vmul.bf16 %v2177, 1059405605
      %v2454 = vadd.bf16 %v2446, %v2450
      %v2455 = vadd.bf16 %v2447, %v2451
      %v2456 = vadd.bf16 %v2448, %v2452
      %v2457 = vadd.bf16 %v2449, %v2453
      %v2458 = vmul.bf16 %v2174, 1063206751
      %v2459 = vmul.bf16 %v2175, 1063206751
      %v2460 = vmul.bf16 %v2176, 1063206751
      %v2461 = vmul.bf16 %v2177, 1063206751
      %v2462 = vmul.bf16 %v2178, 1040465412
      %v2463 = vmul.bf16 %v2179, 1040465412
      %v2464 = vmul.bf16 %v2180, 1040465412
      %v2465 = vmul.bf16 %v2181, 1040465412
      %v2466 = vadd.bf16 %v2458, %v2462
      %v2467 = vadd.bf16 %v2459, %v2463
      %v2468 = vadd.bf16 %v2460, %v2464
      %v2469 = vadd.bf16 %v2461, %v2465
      %v2470 = vmul.bf16 %v2174, 1053179590
      %v2471 = vmul.bf16 %v2175, 1053179590
      %v2472 = vmul.bf16 %v2176, 1053179590
      %v2473 = vmul.bf16 %v2177, 1053179590
      %v2474 = vmul.bf16 %v2178, 1058881309
      %v2475 = vmul.bf16 %v2179, 1058881309
      %v2476 = vmul.bf16 %v2180, 1058881309
      %v2477 = vmul.bf16 %v2181, 1058881309
      %v2478 = vadd.bf16 %v2470, %v2474
      %v2479 = vadd.bf16 %v2471, %v2475
      %v2480 = vadd.bf16 %v2472, %v2476
      %v2481 = vadd.bf16 %v2473, %v2477
      %v2482 = vmul.bf16 %v2178, 1063731047
      %v2483 = vmul.bf16 %v2179, 1063731047
      %v2484 = vmul.bf16 %v2180, 1063731047
      %v2485 = vmul.bf16 %v2181, 1063731047
      %v2486 = vmul.bf16 %v2182, 1036402118
      %v2487 = vmul.bf16 %v2183, 1036402118
      %v2488 = vmul.bf16 %v2184, 1036402118
      %v2489 = vmul.bf16 %v2185, 1036402118
      %v2490 = vadd.bf16 %v2482, %v2486
      %v2491 = vadd.bf16 %v2483, %v2487
      %v2492 = vadd.bf16 %v2484, %v2488
      %v2493 = vadd.bf16 %v2485, %v2489
      %v2494 = vmul.bf16 %v2178, 1054293719
      %v2495 = vmul.bf16 %v2179, 1054293719
      %v2496 = vmul.bf16 %v2180, 1054293719
      %v2497 = vmul.bf16 %v2181, 1054293719
      %v2498 = vmul.bf16 %v2182, 1058357013
      %v2499 = vmul.bf16 %v2183, 1058357013
      %v2500 = vmul.bf16 %v2184, 1058357013
      %v2501 = vmul.bf16 %v2185, 1058357013
      %v2502 = vadd.bf16 %v2494, %v2498
      %v2503 = vadd.bf16 %v2495, %v2499
      %v2504 = vadd.bf16 %v2496, %v2500
      %v2505 = vadd.bf16 %v2497, %v2501
      %v2506 = vmul.bf16 %v2182, 1064255343
      %v2507 = vmul.bf16 %v2183, 1064255343
      %v2508 = vmul.bf16 %v2184, 1064255343
      %v2509 = vmul.bf16 %v2185, 1064255343
      %v2510 = vmul.bf16 %v2186, 1032076676
      %v2511 = vmul.bf16 %v2187, 1032076676
      %v2512 = vmul.bf16 %v2188, 1032076676
      %v2513 = vmul.bf16 %v2189, 1032076676
      %v2514 = vadd.bf16 %v2506, %v2510
      %v2515 = vadd.bf16 %v2507, %v2511
      %v2516 = vadd.bf16 %v2508, %v2512
      %v2517 = vadd.bf16 %v2509, %v2513
      %v2518 = vmul.bf16 %v2182, 1055342311
      %v2519 = vmul.bf16 %v2183, 1055342311
      %v2520 = vmul.bf16 %v2184, 1055342311
      %v2521 = vmul.bf16 %v2185, 1055342311
      %v2522 = vmul.bf16 %v2186, 1057767180
      %v2523 = vmul.bf16 %v2187, 1057767180
      %v2524 = vmul.bf16 %v2188, 1057767180
      %v2525 = vmul.bf16 %v2189, 1057767180
      %v2526 = vadd.bf16 %v2518, %v2522
      %v2527 = vadd.bf16 %v2519, %v2523
      %v2528 = vadd.bf16 %v2520, %v2524
      %v2529 = vadd.bf16 %v2521, %v2525
      %v2530 = vmul.bf16 %v2186, 1064845176
      %v2531 = vmul.bf16 %v2187, 1064845176
      %v2532 = vmul.bf16 %v2188, 1064845176
      %v2533 = vmul.bf16 %v2189, 1064845176
      %v2534 = vmul.bf16 %v2190, 1023687940
      %v2535 = vmul.bf16 %v2191, 1023687940
      %v2536 = vmul.bf16 %v2192, 1023687940
      %v2537 = vmul.bf16 %v2193, 1023687940
      %v2538 = vadd.bf16 %v2530, %v2534
      %v2539 = vadd.bf16 %v2531, %v2535
      %v2540 = vadd.bf16 %v2532, %v2536
      %v2541 = vadd.bf16 %v2533, %v2537
      %v2542 = vmul.bf16 %v2186, 1056456440
      %v2543 = vmul.bf16 %v2187, 1056456440
      %v2544 = vmul.bf16 %v2188, 1056456440
      %v2545 = vmul.bf16 %v2189, 1056456440
      %v2546 = vmul.bf16 %v2190, 1057242884
      %v2547 = vmul.bf16 %v2191, 1057242884
      %v2548 = vmul.bf16 %v2192, 1057242884
      %v2549 = vmul.bf16 %v2193, 1057242884
      %v2550 = vadd.bf16 %v2542, %v2546
      %v2551 = vadd.bf16 %v2543, %v2547
      %v2552 = vadd.bf16 %v2544, %v2548
      %v2553 = vadd.bf16 %v2545, %v2549
      %v2554 = vmul.bf16 %v2186, 0
      %v2555 = vmul.bf16 %v2187, 0
      %v2556 = vmul.bf16 %v2188, 0
      %v2557 = vmul.bf16 %v2189, 0
      %v2558 = vadd.bf16 %v2554, %v2190
      %v2559 = vadd.bf16 %v2555, %v2191
      %v2560 = vadd.bf16 %v2556, %v2192
      %v2561 = vadd.bf16 %v2557, %v2193
      %2566 = vrot.lane.b32.xlu0 %v2202, 32
      %v2567 = vpop.permute.xlu0 %2566
      %2568 = vrot.lane.b32.xlu0 %v2203, 32
      %v2569 = vpop.permute.xlu0 %2568
      %2570 = vrot.lane.b32.xlu0 %v2204, 32
      %v2571 = vpop.permute.xlu0 %2570
      %2572 = vrot.lane.b32.xlu0 %v2205, 32
      %v2573 = vpop.permute.xlu0 %2572
      %2578 = vrot.lane.b32.xlu0 %v2214, 64
      %v2579 = vpop.permute.xlu0 %2578
      %2580 = vrot.lane.b32.xlu0 %v2215, 64
      %v2581 = vpop.permute.xlu0 %2580
      %2582 = vrot.lane.b32.xlu0 %v2216, 64
      %v2583 = vpop.permute.xlu0 %2582
      %2584 = vrot.lane.b32.xlu0 %v2217, 64
      %v2585 = vpop.permute.xlu0 %2584
      %2590 = vrot.lane.b32.xlu0 %v2226, 96
      %v2591 = vpop.permute.xlu0 %2590
      %2592 = vrot.lane.b32.xlu0 %v2227, 96
      %v2593 = vpop.permute.xlu0 %2592
      %2594 = vrot.lane.b32.xlu0 %v2228, 96
      %v2595 = vpop.permute.xlu0 %2594
      %2596 = vrot.lane.b32.xlu0 %v2229, 96
      %v2597 = vpop.permute.xlu0 %2596
      %2602 = vrot.lane.b32.xlu0 %v2250, 32
      %v2603 = vpop.permute.xlu0 %2602
      %2604 = vrot.lane.b32.xlu0 %v2251, 32
      %v2605 = vpop.permute.xlu0 %2604
      %2606 = vrot.lane.b32.xlu0 %v2252, 32
      %v2607 = vpop.permute.xlu0 %2606
      %2608 = vrot.lane.b32.xlu0 %v2253, 32
      %v2609 = vpop.permute.xlu0 %2608
      %2614 = vrot.lane.b32.xlu0 %v2262, 64
      %v2615 = vpop.permute.xlu0 %2614
      %2616 = vrot.lane.b32.xlu0 %v2263, 64
      %v2617 = vpop.permute.xlu0 %2616
      %2618 = vrot.lane.b32.xlu0 %v2264, 64
      %v2619 = vpop.permute.xlu0 %2618
      %2620 = vrot.lane.b32.xlu0 %v2265, 64
      %v2621 = vpop.permute.xlu0 %2620
      %2626 = vrot.lane.b32.xlu0 %v2274, 96
      %v2627 = vpop.permute.xlu0 %2626
      %2628 = vrot.lane.b32.xlu0 %v2275, 96
      %v2629 = vpop.permute.xlu0 %2628
      %2630 = vrot.lane.b32.xlu0 %v2276, 96
      %v2631 = vpop.permute.xlu0 %2630
      %2632 = vrot.lane.b32.xlu0 %v2277, 96
      %v2633 = vpop.permute.xlu0 %2632
      %2638 = vrot.lane.b32.xlu0 %v2298, 32
      %v2639 = vpop.permute.xlu0 %2638
      %2640 = vrot.lane.b32.xlu0 %v2299, 32
      %v2641 = vpop.permute.xlu0 %2640
      %2642 = vrot.lane.b32.xlu0 %v2300, 32
      %v2643 = vpop.permute.xlu0 %2642
      %2644 = vrot.lane.b32.xlu0 %v2301, 32
      %v2645 = vpop.permute.xlu0 %2644
      %2650 = vrot.lane.b32.xlu0 %v2310, 64
      %v2651 = vpop.permute.xlu0 %2650
      %2652 = vrot.lane.b32.xlu0 %v2311, 64
      %v2653 = vpop.permute.xlu0 %2652
      %2654 = vrot.lane.b32.xlu0 %v2312, 64
      %v2655 = vpop.permute.xlu0 %2654
      %2656 = vrot.lane.b32.xlu0 %v2313, 64
      %v2657 = vpop.permute.xlu0 %2656
      %2662 = vrot.lane.b32.xlu0 %v2322, 96
      %v2663 = vpop.permute.xlu0 %2662
      %2664 = vrot.lane.b32.xlu0 %v2323, 96
      %v2665 = vpop.permute.xlu0 %2664
      %2666 = vrot.lane.b32.xlu0 %v2324, 96
      %v2667 = vpop.permute.xlu0 %2666
      %2668 = vrot.lane.b32.xlu0 %v2325, 96
      %v2669 = vpop.permute.xlu0 %2668
      %2674 = vrot.lane.b32.xlu0 %v2346, 32
      %v2675 = vpop.permute.xlu0 %2674
      %2676 = vrot.lane.b32.xlu0 %v2347, 32
      %v2677 = vpop.permute.xlu0 %2676
      %2678 = vrot.lane.b32.xlu0 %v2348, 32
      %v2679 = vpop.permute.xlu0 %2678
      %2680 = vrot.lane.b32.xlu0 %v2349, 32
      %v2681 = vpop.permute.xlu0 %2680
      %2686 = vrot.lane.b32.xlu0 %v2358, 64
      %v2687 = vpop.permute.xlu0 %2686
      %2688 = vrot.lane.b32.xlu0 %v2359, 64
      %v2689 = vpop.permute.xlu0 %2688
      %2690 = vrot.lane.b32.xlu0 %v2360, 64
      %v2691 = vpop.permute.xlu0 %2690
      %2692 = vrot.lane.b32.xlu0 %v2361, 64
      %v2693 = vpop.permute.xlu0 %2692
      %2698 = vrot.lane.b32.xlu0 %v2370, 96
      %v2699 = vpop.permute.xlu0 %2698
      %2700 = vrot.lane.b32.xlu0 %v2371, 96
      %v2701 = vpop.permute.xlu0 %2700
      %2702 = vrot.lane.b32.xlu0 %v2372, 96
      %v2703 = vpop.permute.xlu0 %2702
      %2704 = vrot.lane.b32.xlu0 %v2373, 96
      %v2705 = vpop.permute.xlu0 %2704
      %v2708 = vsel %vm789, %v2130, %v2567
      %v2711 = vsel %vm789, %v2131, %v2569
      %v2714 = vsel %vm789, %v2132, %v2571
      %v2717 = vsel %vm789, %v2133, %v2573
      %v2719 = vsel %vm795, %v2708, %v2579
      %v2721 = vsel %vm795, %v2711, %v2581
      %v2723 = vsel %vm795, %v2714, %v2583
      %v2725 = vsel %vm795, %v2717, %v2585
      %v2727 = vsel %vm801, %v2719, %v2591
      %v2729 = vsel %vm801, %v2721, %v2593
      %v2731 = vsel %vm801, %v2723, %v2595
      %v2733 = vsel %vm801, %v2725, %v2597
      %v2736 = vsel %vm789, %v2238, %v2603
      %v2739 = vsel %vm789, %v2239, %v2605
      %v2742 = vsel %vm789, %v2240, %v2607
      %v2745 = vsel %vm789, %v2241, %v2609
      %v2747 = vsel %vm795, %v2736, %v2615
      %v2749 = vsel %vm795, %v2739, %v2617
      %v2751 = vsel %vm795, %v2742, %v2619
      %v2753 = vsel %vm795, %v2745, %v2621
      %v2755 = vsel %vm801, %v2747, %v2627
      %v2757 = vsel %vm801, %v2749, %v2629
      %v2759 = vsel %vm801, %v2751, %v2631
      %v2761 = vsel %vm801, %v2753, %v2633
      %v2764 = vsel %vm789, %v2286, %v2639
      %v2767 = vsel %vm789, %v2287, %v2641
      %v2770 = vsel %vm789, %v2288, %v2643
      %v2773 = vsel %vm789, %v2289, %v2645
      %v2775 = vsel %vm795, %v2764, %v2651
      %v2777 = vsel %vm795, %v2767, %v2653
      %v2779 = vsel %vm795, %v2770, %v2655
      %v2781 = vsel %vm795, %v2773, %v2657
      %v2783 = vsel %vm801, %v2775, %v2663
      %v2785 = vsel %vm801, %v2777, %v2665
      %v2787 = vsel %vm801, %v2779, %v2667
      %v2789 = vsel %vm801, %v2781, %v2669
      %v2792 = vsel %vm789, %v2334, %v2675
      %v2795 = vsel %vm789, %v2335, %v2677
      %v2798 = vsel %vm789, %v2336, %v2679
      %v2801 = vsel %vm789, %v2337, %v2681
      %v2803 = vsel %vm795, %v2792, %v2687
      %v2805 = vsel %vm795, %v2795, %v2689
      %v2807 = vsel %vm795, %v2798, %v2691
      %v2809 = vsel %vm795, %v2801, %v2693
      %v2811 = vsel %vm801, %v2803, %v2699
      %v2813 = vsel %vm801, %v2805, %v2701
      %v2815 = vsel %vm801, %v2807, %v2703
      %v2817 = vsel %vm801, %v2809, %v2705
      %2822 = vrot.lane.b32.xlu0 %v2394, 32
      %v2823 = vpop.permute.xlu0 %2822
      %2824 = vrot.lane.b32.xlu0 %v2395, 32
      %v2825 = vpop.permute.xlu0 %2824
      %2826 = vrot.lane.b32.xlu0 %v2396, 32
      %v2827 = vpop.permute.xlu0 %2826
      %2828 = vrot.lane.b32.xlu0 %v2397, 32
      %v2829 = vpop.permute.xlu0 %2828
      %2834 = vrot.lane.b32.xlu0 %v2406, 64
      %v2835 = vpop.permute.xlu0 %2834
      %2836 = vrot.lane.b32.xlu0 %v2407, 64
      %v2837 = vpop.permute.xlu0 %2836
      %2838 = vrot.lane.b32.xlu0 %v2408, 64
      %v2839 = vpop.permute.xlu0 %2838
      %2840 = vrot.lane.b32.xlu0 %v2409, 64
      %v2841 = vpop.permute.xlu0 %2840
      %2846 = vrot.lane.b32.xlu0 %v2418, 96
      %v2847 = vpop.permute.xlu0 %2846
      %2848 = vrot.lane.b32.xlu0 %v2419, 96
      %v2849 = vpop.permute.xlu0 %2848
      %2850 = vrot.lane.b32.xlu0 %v2420, 96
      %v2851 = vpop.permute.xlu0 %2850
      %2852 = vrot.lane.b32.xlu0 %v2421, 96
      %v2853 = vpop.permute.xlu0 %2852
      %2858 = vrot.lane.b32.xlu0 %v2442, 32
      %v2859 = vpop.permute.xlu0 %2858
      %2860 = vrot.lane.b32.xlu0 %v2443, 32
      %v2861 = vpop.permute.xlu0 %2860
      %2862 = vrot.lane.b32.xlu0 %v2444, 32
      %v2863 = vpop.permute.xlu0 %2862
      %2864 = vrot.lane.b32.xlu0 %v2445, 32
      %v2865 = vpop.permute.xlu0 %2864
      %2870 = vrot.lane.b32.xlu0 %v2454, 64
      %v2871 = vpop.permute.xlu0 %2870
      %2872 = vrot.lane.b32.xlu0 %v2455, 64
      %v2873 = vpop.permute.xlu0 %2872
      %2874 = vrot.lane.b32.xlu0 %v2456, 64
      %v2875 = vpop.permute.xlu0 %2874
      %2876 = vrot.lane.b32.xlu0 %v2457, 64
      %v2877 = vpop.permute.xlu0 %2876
      %2882 = vrot.lane.b32.xlu0 %v2466, 96
      %v2883 = vpop.permute.xlu0 %2882
      %2884 = vrot.lane.b32.xlu0 %v2467, 96
      %v2885 = vpop.permute.xlu0 %2884
      %2886 = vrot.lane.b32.xlu0 %v2468, 96
      %v2887 = vpop.permute.xlu0 %2886
      %2888 = vrot.lane.b32.xlu0 %v2469, 96
      %v2889 = vpop.permute.xlu0 %2888
      %2894 = vrot.lane.b32.xlu0 %v2490, 32
      %v2895 = vpop.permute.xlu0 %2894
      %2896 = vrot.lane.b32.xlu0 %v2491, 32
      %v2897 = vpop.permute.xlu0 %2896
      %2898 = vrot.lane.b32.xlu0 %v2492, 32
      %v2899 = vpop.permute.xlu0 %2898
      %2900 = vrot.lane.b32.xlu0 %v2493, 32
      %v2901 = vpop.permute.xlu0 %2900
      %2906 = vrot.lane.b32.xlu0 %v2502, 64
      %v2907 = vpop.permute.xlu0 %2906
      %2908 = vrot.lane.b32.xlu0 %v2503, 64
      %v2909 = vpop.permute.xlu0 %2908
      %2910 = vrot.lane.b32.xlu0 %v2504, 64
      %v2911 = vpop.permute.xlu0 %2910
      %2912 = vrot.lane.b32.xlu0 %v2505, 64
      %v2913 = vpop.permute.xlu0 %2912
      %2918 = vrot.lane.b32.xlu0 %v2514, 96
      %v2919 = vpop.permute.xlu0 %2918
      %2920 = vrot.lane.b32.xlu0 %v2515, 96
      %v2921 = vpop.permute.xlu0 %2920
      %2922 = vrot.lane.b32.xlu0 %v2516, 96
      %v2923 = vpop.permute.xlu0 %2922
      %2924 = vrot.lane.b32.xlu0 %v2517, 96
      %v2925 = vpop.permute.xlu0 %2924
      %2930 = vrot.lane.b32.xlu0 %v2538, 32
      %v2931 = vpop.permute.xlu0 %2930
      %2932 = vrot.lane.b32.xlu0 %v2539, 32
      %v2933 = vpop.permute.xlu0 %2932
      %2934 = vrot.lane.b32.xlu0 %v2540, 32
      %v2935 = vpop.permute.xlu0 %2934
      %2936 = vrot.lane.b32.xlu0 %v2541, 32
      %v2937 = vpop.permute.xlu0 %2936
      %2942 = vrot.lane.b32.xlu0 %v2550, 64
      %v2943 = vpop.permute.xlu0 %2942
      %2944 = vrot.lane.b32.xlu0 %v2551, 64
      %v2945 = vpop.permute.xlu0 %2944
      %2946 = vrot.lane.b32.xlu0 %v2552, 64
      %v2947 = vpop.permute.xlu0 %2946
      %2948 = vrot.lane.b32.xlu0 %v2553, 64
      %v2949 = vpop.permute.xlu0 %2948
      %2954 = vrot.lane.b32.xlu0 %v2558, 96
      %v2955 = vpop.permute.xlu0 %2954
      %2956 = vrot.lane.b32.xlu0 %v2559, 96
      %v2957 = vpop.permute.xlu0 %2956
      %2958 = vrot.lane.b32.xlu0 %v2560, 96
      %v2959 = vpop.permute.xlu0 %2958
      %2960 = vrot.lane.b32.xlu0 %v2561, 96
      %v2961 = vpop.permute.xlu0 %2960
      %v2964 = vsel %vm789, %v2382, %v2823
      %v2967 = vsel %vm789, %v2383, %v2825
      %v2970 = vsel %vm789, %v2384, %v2827
      %v2973 = vsel %vm789, %v2385, %v2829
      %v2975 = vsel %vm795, %v2964, %v2835
      %v2977 = vsel %vm795, %v2967, %v2837
      %v2979 = vsel %vm795, %v2970, %v2839
      %v2981 = vsel %vm795, %v2973, %v2841
      %v2983 = vsel %vm801, %v2975, %v2847
      %v2985 = vsel %vm801, %v2977, %v2849
      %v2987 = vsel %vm801, %v2979, %v2851
      %v2989 = vsel %vm801, %v2981, %v2853
      %v2992 = vsel %vm789, %v2430, %v2859
      %v2995 = vsel %vm789, %v2431, %v2861
      %v2998 = vsel %vm789, %v2432, %v2863
      %v3001 = vsel %vm789, %v2433, %v2865
      %v3003 = vsel %vm795, %v2992, %v2871
      %v3005 = vsel %vm795, %v2995, %v2873
      %v3007 = vsel %vm795, %v2998, %v2875
      %v3009 = vsel %vm795, %v3001, %v2877
      %v3011 = vsel %vm801, %v3003, %v2883
      %v3013 = vsel %vm801, %v3005, %v2885
      %v3015 = vsel %vm801, %v3007, %v2887
      %v3017 = vsel %vm801, %v3009, %v2889
      %v3020 = vsel %vm789, %v2478, %v2895
      %v3023 = vsel %vm789, %v2479, %v2897
      %v3026 = vsel %vm789, %v2480, %v2899
      %v3029 = vsel %vm789, %v2481, %v2901
      %v3031 = vsel %vm795, %v3020, %v2907
      %v3033 = vsel %vm795, %v3023, %v2909
      %v3035 = vsel %vm795, %v3026, %v2911
      %v3037 = vsel %vm795, %v3029, %v2913
      %v3039 = vsel %vm801, %v3031, %v2919
      %v3041 = vsel %vm801, %v3033, %v2921
      %v3043 = vsel %vm801, %v3035, %v2923
      %v3045 = vsel %vm801, %v3037, %v2925
      %v3048 = vsel %vm789, %v2526, %v2931
      %v3051 = vsel %vm789, %v2527, %v2933
      %v3054 = vsel %vm789, %v2528, %v2935
      %v3057 = vsel %vm789, %v2529, %v2937
      %v3059 = vsel %vm795, %v3048, %v2943
      %v3061 = vsel %vm795, %v3051, %v2945
      %v3063 = vsel %vm795, %v3054, %v2947
      %v3065 = vsel %vm795, %v3057, %v2949
      %v3067 = vsel %vm801, %v3059, %v2955
      %v3069 = vsel %vm801, %v3061, %v2957
      %v3071 = vsel %vm801, %v3063, %v2959
      %v3073 = vsel %vm801, %v3065, %v2961
      %3106 = vrot.lane.b32.xlu0 %v2727, 33
      %v3107 = vpop.permute.xlu0 %3106
      %3108 = vrot.lane.b32.xlu0 %v2755, 33
      %v3109 = vpop.permute.xlu0 %3108
      %3110 = vrot.lane.b32.xlu0 %v2783, 33
      %v3111 = vpop.permute.xlu0 %3110
      %3112 = vrot.lane.b32.xlu0 %v2811, 33
      %v3113 = vpop.permute.xlu0 %3112
      %3114 = vrot.lane.b32.xlu0 %v2983, 33
      %v3115 = vpop.permute.xlu0 %3114
      %3116 = vrot.lane.b32.xlu0 %v3011, 33
      %v3117 = vpop.permute.xlu0 %3116
      %3118 = vrot.lane.b32.xlu0 %v3039, 33
      %v3119 = vpop.permute.xlu0 %3118
      %3120 = vrot.lane.b32.xlu0 %v3067, 33
      %v3121 = vpop.permute.xlu0 %3120
      %3122 = vrot.lane.b32.xlu0 %v2729, 33
      %v3123 = vpop.permute.xlu0 %3122
      %3124 = vrot.lane.b32.xlu0 %v2757, 33
      %v3125 = vpop.permute.xlu0 %3124
      %3126 = vrot.lane.b32.xlu0 %v2785, 33
      %v3127 = vpop.permute.xlu0 %3126
      %3128 = vrot.lane.b32.xlu0 %v2813, 33
      %v3129 = vpop.permute.xlu0 %3128
      %3130 = vrot.lane.b32.xlu0 %v2985, 33
      %v3131 = vpop.permute.xlu0 %3130
      %3132 = vrot.lane.b32.xlu0 %v3013, 33
      %v3133 = vpop.permute.xlu0 %3132
      %3134 = vrot.lane.b32.xlu0 %v3041, 33
      %v3135 = vpop.permute.xlu0 %3134
      %3136 = vrot.lane.b32.xlu0 %v3069, 33
      %v3137 = vpop.permute.xlu0 %3136
      %3138 = vrot.lane.b32.xlu0 %v2731, 33
      %v3139 = vpop.permute.xlu0 %3138
      %3140 = vrot.lane.b32.xlu0 %v2759, 33
      %v3141 = vpop.permute.xlu0 %3140
      %3142 = vrot.lane.b32.xlu0 %v2787, 33
      %v3143 = vpop.permute.xlu0 %3142
      %3144 = vrot.lane.b32.xlu0 %v2815, 33
      %v3145 = vpop.permute.xlu0 %3144
      %3146 = vrot.lane.b32.xlu0 %v2987, 33
      %v3147 = vpop.permute.xlu0 %3146
      %3148 = vrot.lane.b32.xlu0 %v3015, 33
      %v3149 = vpop.permute.xlu0 %3148
      %3150 = vrot.lane.b32.xlu0 %v3043, 33
      %v3151 = vpop.permute.xlu0 %3150
      %3152 = vrot.lane.b32.xlu0 %v3071, 33
      %v3153 = vpop.permute.xlu0 %3152
      %3154 = vrot.lane.b32.xlu0 %v2733, 33
      %v3155 = vpop.permute.xlu0 %3154
      %3156 = vrot.lane.b32.xlu0 %v2761, 33
      %v3157 = vpop.permute.xlu0 %3156
      %3158 = vrot.lane.b32.xlu0 %v2789, 33
      %v3159 = vpop.permute.xlu0 %3158
      %3160 = vrot.lane.b32.xlu0 %v2817, 33
      %v3161 = vpop.permute.xlu0 %3160
      %3162 = vrot.lane.b32.xlu0 %v2989, 33
      %v3163 = vpop.permute.xlu0 %3162
      %3164 = vrot.lane.b32.xlu0 %v3017, 33
      %v3165 = vpop.permute.xlu0 %3164
      %3166 = vrot.lane.b32.xlu0 %v3045, 33
      %v3167 = vpop.permute.xlu0 %3166
      %3168 = vrot.lane.b32.xlu0 %v3073, 33
      %v3169 = vpop.permute.xlu0 %3168
      %vm3170 = vcmask 269312
      %v3171 = vsel %vm3170, %v3107, %v3109
      %v3172 = vsel %vm3170, %v3109, %v3111
      %v3173 = vsel %vm3170, %v3111, %v3113
      %v3174 = vsel %vm3170, %v3113, %v3115
      %v3175 = vsel %vm3170, %v3115, %v3117
      %v3176 = vsel %vm3170, %v3117, %v3119
      %v3177 = vsel %vm3170, %v3119, %v3121
      %v3178 = vsel %vm3170, %v3123, %v3125
      %v3179 = vsel %vm3170, %v3125, %v3127
      %v3180 = vsel %vm3170, %v3127, %v3129
      %v3181 = vsel %vm3170, %v3129, %v3131
      %v3182 = vsel %vm3170, %v3131, %v3133
      %v3183 = vsel %vm3170, %v3133, %v3135
      %v3184 = vsel %vm3170, %v3135, %v3137
      %v3185 = vsel %vm3170, %v3139, %v3141
      %v3186 = vsel %vm3170, %v3141, %v3143
      %v3187 = vsel %vm3170, %v3143, %v3145
      %v3188 = vsel %vm3170, %v3145, %v3147
      %v3189 = vsel %vm3170, %v3147, %v3149
      %v3190 = vsel %vm3170, %v3149, %v3151
      %v3191 = vsel %vm3170, %v3151, %v3153
      %v3192 = vsel %vm3170, %v3155, %v3157
      %v3193 = vsel %vm3170, %v3157, %v3159
      %v3194 = vsel %vm3170, %v3159, %v3161
      %v3195 = vsel %vm3170, %v3161, %v3163
      %v3196 = vsel %vm3170, %v3163, %v3165
      %v3197 = vsel %vm3170, %v3165, %v3167
      %v3198 = vsel %vm3170, %v3167, %v3169
      %vm3227 = vcmask 269312
      %v3229 = vsel %vm3227, 0, %v3107
      %v3232 = vsel %vm3227, 0, %v3123
      %v3235 = vsel %vm3227, 0, %v3139
      %v3238 = vsel %vm3227, 0, %v3155
      %v3241 = vsel %vm3227, %v3121, 0
      %v3244 = vsel %vm3227, %v3137, 0
      %v3247 = vsel %vm3227, %v3153, 0
      %v3250 = vsel %vm3227, %v3169, 0
      %v3252 = vadd.s32 %v396, 256
      %v3253 = vadd.s32 %v396, 384
      %v3254 = vadd.s32 %v396, 512
      %v3255 = vadd.s32 %v396, 640
      %v3256 = vadd.s32 %v396, 768
      %v3257 = vadd.s32 %v396, 896
      %vm3258 = vcmp.lt.s32.totalorder %v396, 0
      %v3259 = vsub.s32 0, %v396
      %v3260 = vsel %vm3258, %v3259, %v396
      %v3261 = vshrl.u32 %v3260, 5
      %v3262 = vand.u32 %v3260, 31
      %v3263 = vsub.s32 0, %v3262
      %v3264 = vsel %vm3258, %v3263, %v3262
      %vm3265 = vcmp.lt.s32.totalorder %v838, 0
      %v3266 = vsub.s32 0, %v838
      %v3267 = vsel %vm3265, %v3266, %v838
      %v3268 = vshrl.u32 %v3267, 5
      %v3269 = vand.u32 %v3267, 31
      %v3270 = vsub.s32 0, %v3269
      %v3271 = vsel %vm3265, %v3270, %v3269
      %vm3272 = vcmp.lt.s32.totalorder %v3252, 0
      %v3273 = vsub.s32 0, %v3252
      %v3274 = vsel %vm3272, %v3273, %v3252
      %v3275 = vshrl.u32 %v3274, 5
      %v3276 = vand.u32 %v3274, 31
      %v3277 = vsub.s32 0, %v3276
      %v3278 = vsel %vm3272, %v3277, %v3276
      %vm3279 = vcmp.lt.s32.totalorder %v3253, 0
      %v3280 = vsub.s32 0, %v3253
      %v3281 = vsel %vm3279, %v3280, %v3253
      %v3282 = vshrl.u32 %v3281, 5
      %v3283 = vand.u32 %v3281, 31
      %v3284 = vsub.s32 0, %v3283
      %v3285 = vsel %vm3279, %v3284, %v3283
      %vm3286 = vcmp.lt.s32.totalorder %v3254, 0
      %v3287 = vsub.s32 0, %v3254
      %v3288 = vsel %vm3286, %v3287, %v3254
      %v3289 = vshrl.u32 %v3288, 5
      %v3290 = vand.u32 %v3288, 31
      %v3291 = vsub.s32 0, %v3290
      %v3292 = vsel %vm3286, %v3291, %v3290
      %vm3293 = vcmp.lt.s32.totalorder %v3255, 0
      %v3294 = vsub.s32 0, %v3255
      %v3295 = vsel %vm3293, %v3294, %v3255
      %v3296 = vshrl.u32 %v3295, 5
      %v3297 = vand.u32 %v3295, 31
      %v3298 = vsub.s32 0, %v3297
      %v3299 = vsel %vm3293, %v3298, %v3297
      %vm3300 = vcmp.lt.s32.totalorder %v3256, 0
      %v3301 = vsub.s32 0, %v3256
      %v3302 = vsel %vm3300, %v3301, %v3256
      %v3303 = vshrl.u32 %v3302, 5
      %v3304 = vand.u32 %v3302, 31
      %v3305 = vsub.s32 0, %v3304
      %v3306 = vsel %vm3300, %v3305, %v3304
      %vm3307 = vcmp.lt.s32.totalorder %v3257, 0
      %v3308 = vsub.s32 0, %v3257
      %v3309 = vsel %vm3307, %v3308, %v3257
      %v3310 = vshrl.u32 %v3309, 5
      %v3311 = vand.u32 %v3309, 31
      %v3312 = vsub.s32 0, %v3311
      %v3313 = vsel %vm3307, %v3312, %v3311
      %vm3314 = vcmp.ne.s32.totalorder %v3264, 0
      %vm3315 = vcmp.ne.s32.totalorder %v3271, 0
      %vm3316 = vcmp.ne.s32.totalorder %v3278, 0
      %vm3317 = vcmp.ne.s32.totalorder %v3285, 0
      %vm3318 = vcmp.ne.s32.totalorder %v3292, 0
      %vm3319 = vcmp.ne.s32.totalorder %v3299, 0
      %vm3320 = vcmp.ne.s32.totalorder %v3306, 0
      %vm3321 = vcmp.ne.s32.totalorder %v3313, 0
      %vm3322 = vcmp.lt.s32.totalorder %v3264, 0
      %vm3323 = vcmp.lt.s32.totalorder %v3271, 0
      %vm3324 = vcmp.lt.s32.totalorder %v3278, 0
      %vm3325 = vcmp.lt.s32.totalorder %v3285, 0
      %vm3326 = vcmp.lt.s32.totalorder %v3292, 0
      %vm3327 = vcmp.lt.s32.totalorder %v3299, 0
      %vm3328 = vcmp.lt.s32.totalorder %v3306, 0
      %vm3329 = vcmp.lt.s32.totalorder %v3313, 0
      %vm3330 = vmand %vm3322, %vm3314
      %vm3331 = vmand %vm3323, %vm3315
      %vm3332 = vmand %vm3324, %vm3316
      %vm3333 = vmand %vm3325, %vm3317
      %vm3334 = vmand %vm3326, %vm3318
      %vm3335 = vmand %vm3327, %vm3319
      %vm3336 = vmand %vm3328, %vm3320
      %vm3337 = vmand %vm3329, %vm3321
      %v3338 = vadd.s32 %v3264, 32
      %v3339 = vadd.s32 %v3271, 32
      %v3340 = vadd.s32 %v3278, 32
      %v3341 = vadd.s32 %v3285, 32
      %v3342 = vadd.s32 %v3292, 32
      %v3343 = vadd.s32 %v3299, 32
      %v3344 = vadd.s32 %v3306, 32
      %v3345 = vadd.s32 %v3313, 32
      %v3346 = vsel %vm3330, %v3338, %v3264
      %v3347 = vsel %vm3331, %v3339, %v3271
      %v3348 = vsel %vm3332, %v3340, %v3278
      %v3349 = vsel %vm3333, %v3341, %v3285
      %v3350 = vsel %vm3334, %v3342, %v3292
      %v3351 = vsel %vm3335, %v3343, %v3299
      %v3352 = vsel %vm3336, %v3344, %v3306
      %v3353 = vsel %vm3337, %v3345, %v3313
      %vm3354 = vcmp.gt.s32.totalorder %v3346, 0
      %vm3355 = vcmp.gt.s32.totalorder %v3347, 0
      %vm3356 = vcmp.gt.s32.totalorder %v3348, 0
      %vm3357 = vcmp.gt.s32.totalorder %v3349, 0
      %vm3358 = vcmp.gt.s32.totalorder %v3350, 0
      %vm3359 = vcmp.gt.s32.totalorder %v3351, 0
      %vm3360 = vcmp.gt.s32.totalorder %v3352, 0
      %vm3361 = vcmp.gt.s32.totalorder %v3353, 0
      %vm3362 = vcmp.lt.s32.totalorder %v3346, 31
      %vm3363 = vcmp.lt.s32.totalorder %v3347, 31
      %vm3364 = vcmp.lt.s32.totalorder %v3348, 31
      %vm3365 = vcmp.lt.s32.totalorder %v3349, 31
      %vm3366 = vcmp.lt.s32.totalorder %v3350, 31
      %vm3367 = vcmp.lt.s32.totalorder %v3351, 31
      %vm3368 = vcmp.lt.s32.totalorder %v3352, 31
      %vm3369 = vcmp.lt.s32.totalorder %v3353, 31
      %v3370 = vsel %vm3354, 1, 0
      %v3371 = vsel %vm3355, 1, 0
      %v3372 = vsel %vm3356, 1, 0
      %v3373 = vsel %vm3357, 1, 0
      %v3374 = vsel %vm3358, 1, 0
      %v3375 = vsel %vm3359, 1, 0
      %v3376 = vsel %vm3360, 1, 0
      %v3377 = vsel %vm3361, 1, 0
      %vm3378 = vcmp.eq.s32.totalorder %v3370, 1
      %vm3379 = vcmp.eq.s32.totalorder %v3371, 1
      %vm3380 = vcmp.eq.s32.totalorder %v3372, 1
      %vm3381 = vcmp.eq.s32.totalorder %v3373, 1
      %vm3382 = vcmp.eq.s32.totalorder %v3374, 1
      %vm3383 = vcmp.eq.s32.totalorder %v3375, 1
      %vm3384 = vcmp.eq.s32.totalorder %v3376, 1
      %vm3385 = vcmp.eq.s32.totalorder %v3377, 1
      %vm3386 = vmpackc.low %vm3379, %vm3378
      %vm3387 = vmpackc.low %vm3381, %vm3380
      %vm3388 = vmpackc.low %vm3383, %vm3382
      %vm3389 = vmpackc.low %vm3385, %vm3384
      %v3390 = vsel %vm3386, 65537, 0
      %v3391 = vsel %vm3387, 65537, 0
      %v3392 = vsel %vm3388, 65537, 0
      %v3393 = vsel %vm3389, 65537, 0
      %v3394 = vlaneseq
      %v3395 = vshrl.u32 %v3394, 7
      %v3396 = vsub.s32 0, %v3395
      %v3397 = vrot.slane %v3390, %v3396
      %v3398 = vlaneseq
      %v3399 = vshrl.u32 %v3398, 7
      %v3400 = vsub.s32 4, %v3399
      %v3401 = vrot.slane %v3390, %v3400
      %v3402 = vlaneseq
      %v3403 = vshrl.u32 %v3402, 7
      %v3404 = vsub.s32 0, %v3403
      %v3405 = vrot.slane %v3391, %v3404
      %v3406 = vlaneseq
      %v3407 = vshrl.u32 %v3406, 7
      %v3408 = vsub.s32 4, %v3407
      %v3409 = vrot.slane %v3391, %v3408
      %v3410 = vlaneseq
      %v3411 = vshrl.u32 %v3410, 7
      %v3412 = vsub.s32 0, %v3411
      %v3413 = vrot.slane %v3392, %v3412
      %v3414 = vlaneseq
      %v3415 = vshrl.u32 %v3414, 7
      %v3416 = vsub.s32 4, %v3415
      %v3417 = vrot.slane %v3392, %v3416
      %v3418 = vlaneseq
      %v3419 = vshrl.u32 %v3418, 7
      %v3420 = vsub.s32 0, %v3419
      %v3421 = vrot.slane %v3393, %v3420
      %v3422 = vlaneseq
      %v3423 = vshrl.u32 %v3422, 7
      %v3424 = vsub.s32 4, %v3423
      %v3425 = vrot.slane %v3393, %v3424
      %vm3426 = vcmp.ne.s16.totalorder %v3397, 0
      %vm3427 = vcmp.ne.s16.totalorder %v3401, 0
      %vm3428 = vcmp.ne.s16.totalorder %v3405, 0
      %vm3429 = vcmp.ne.s16.totalorder %v3409, 0
      %vm3430 = vcmp.ne.s16.totalorder %v3413, 0
      %vm3431 = vcmp.ne.s16.totalorder %v3417, 0
      %vm3432 = vcmp.ne.s16.totalorder %v3421, 0
      %vm3433 = vcmp.ne.s16.totalorder %v3425, 0
      %v3434 = vsel %vm3426, %v3229, 0
      %v3435 = vsel %vm3427, %v3171, 0
      %v3436 = vsel %vm3428, %v3172, 0
      %v3437 = vsel %vm3429, %v3173, 0
      %v3438 = vsel %vm3430, %v3174, 0
      %v3439 = vsel %vm3431, %v3175, 0
      %v3440 = vsel %vm3432, %v3176, 0
      %v3441 = vsel %vm3433, %v3177, 0
      %v3442 = vsel %vm3426, %v3232, 0
      %v3443 = vsel %vm3427, %v3178, 0
      %v3444 = vsel %vm3428, %v3179, 0
      %v3445 = vsel %vm3429, %v3180, 0
      %v3446 = vsel %vm3430, %v3181, 0
      %v3447 = vsel %vm3431, %v3182, 0
      %v3448 = vsel %vm3432, %v3183, 0
      %v3449 = vsel %vm3433, %v3184, 0
      %v3450 = vsel %vm3426, %v3235, 0
      %v3451 = vsel %vm3427, %v3185, 0
      %v3452 = vsel %vm3428, %v3186, 0
      %v3453 = vsel %vm3429, %v3187, 0
      %v3454 = vsel %vm3430, %v3188, 0
      %v3455 = vsel %vm3431, %v3189, 0
      %v3456 = vsel %vm3432, %v3190, 0
      %v3457 = vsel %vm3433, %v3191, 0
      %v3458 = vsel %vm3426, %v3238, 0
      %v3459 = vsel %vm3427, %v3192, 0
      %v3460 = vsel %vm3428, %v3193, 0
      %v3461 = vsel %vm3429, %v3194, 0
      %v3462 = vsel %vm3430, %v3195, 0
      %v3463 = vsel %vm3431, %v3196, 0
      %v3464 = vsel %vm3432, %v3197, 0
      %v3465 = vsel %vm3433, %v3198, 0
      %v3466 = vsel %vm3362, 1, 0
      %v3467 = vsel %vm3363, 1, 0
      %v3468 = vsel %vm3364, 1, 0
      %v3469 = vsel %vm3365, 1, 0
      %v3470 = vsel %vm3366, 1, 0
      %v3471 = vsel %vm3367, 1, 0
      %v3472 = vsel %vm3368, 1, 0
      %v3473 = vsel %vm3369, 1, 0
      %vm3474 = vcmp.eq.s32.totalorder %v3466, 1
      %vm3475 = vcmp.eq.s32.totalorder %v3467, 1
      %vm3476 = vcmp.eq.s32.totalorder %v3468, 1
      %vm3477 = vcmp.eq.s32.totalorder %v3469, 1
      %vm3478 = vcmp.eq.s32.totalorder %v3470, 1
      %vm3479 = vcmp.eq.s32.totalorder %v3471, 1
      %vm3480 = vcmp.eq.s32.totalorder %v3472, 1
      %vm3481 = vcmp.eq.s32.totalorder %v3473, 1
      %vm3482 = vmpackc.low %vm3475, %vm3474
      %vm3483 = vmpackc.low %vm3477, %vm3476
      %vm3484 = vmpackc.low %vm3479, %vm3478
      %vm3485 = vmpackc.low %vm3481, %vm3480
      %v3486 = vsel %vm3482, 65537, 0
      %v3487 = vsel %vm3483, 65537, 0
      %v3488 = vsel %vm3484, 65537, 0
      %v3489 = vsel %vm3485, 65537, 0
      %v3490 = vlaneseq
      %v3491 = vshrl.u32 %v3490, 7
      %v3492 = vsub.s32 0, %v3491
      %v3493 = vrot.slane %v3486, %v3492
      %v3494 = vlaneseq
      %v3495 = vshrl.u32 %v3494, 7
      %v3496 = vsub.s32 4, %v3495
      %v3497 = vrot.slane %v3486, %v3496
      %v3498 = vlaneseq
      %v3499 = vshrl.u32 %v3498, 7
      %v3500 = vsub.s32 0, %v3499
      %v3501 = vrot.slane %v3487, %v3500
      %v3502 = vlaneseq
      %v3503 = vshrl.u32 %v3502, 7
      %v3504 = vsub.s32 4, %v3503
      %v3505 = vrot.slane %v3487, %v3504
      %v3506 = vlaneseq
      %v3507 = vshrl.u32 %v3506, 7
      %v3508 = vsub.s32 0, %v3507
      %v3509 = vrot.slane %v3488, %v3508
      %v3510 = vlaneseq
      %v3511 = vshrl.u32 %v3510, 7
      %v3512 = vsub.s32 4, %v3511
      %v3513 = vrot.slane %v3488, %v3512
      %v3514 = vlaneseq
      %v3515 = vshrl.u32 %v3514, 7
      %v3516 = vsub.s32 0, %v3515
      %v3517 = vrot.slane %v3489, %v3516
      %v3518 = vlaneseq
      %v3519 = vshrl.u32 %v3518, 7
      %v3520 = vsub.s32 4, %v3519
      %v3521 = vrot.slane %v3489, %v3520
      %3522 = vrot.lane.b32.xlu0 %v3493, 2
      %v3523 = vpop.permute.xlu0 %3522
      %3524 = vrot.lane.b32.xlu0 %v3497, 2
      %v3525 = vpop.permute.xlu0 %3524
      %3526 = vrot.lane.b32.xlu0 %v3501, 2
      %v3527 = vpop.permute.xlu0 %3526
      %3528 = vrot.lane.b32.xlu0 %v3505, 2
      %v3529 = vpop.permute.xlu0 %3528
      %3530 = vrot.lane.b32.xlu0 %v3509, 2
      %v3531 = vpop.permute.xlu0 %3530
      %3532 = vrot.lane.b32.xlu0 %v3513, 2
      %v3533 = vpop.permute.xlu0 %3532
      %3534 = vrot.lane.b32.xlu0 %v3517, 2
      %v3535 = vpop.permute.xlu0 %3534
      %3536 = vrot.lane.b32.xlu0 %v3521, 2
      %v3537 = vpop.permute.xlu0 %3536
      %v3538 = vsel %vm903, %v3523, %v3525
      %v3539 = vsel %vm903, %v3525, %v3527
      %v3540 = vsel %vm903, %v3527, %v3529
      %v3541 = vsel %vm903, %v3529, %v3531
      %v3542 = vsel %vm903, %v3531, %v3533
      %v3543 = vsel %vm903, %v3533, %v3535
      %v3544 = vsel %vm903, %v3535, %v3537
      %vm3545 = vcmp.ne.s16.totalorder %v3523, 0
      %vm3546 = vcmp.ne.s16.totalorder %v3538, 0
      %vm3547 = vcmp.ne.s16.totalorder %v3539, 0
      %vm3548 = vcmp.ne.s16.totalorder %v3540, 0
      %vm3549 = vcmp.ne.s16.totalorder %v3541, 0
      %vm3550 = vcmp.ne.s16.totalorder %v3542, 0
      %vm3551 = vcmp.ne.s16.totalorder %v3543, 0
      %vm3552 = vcmp.ne.s16.totalorder %v3544, 0
      %vm3553 = vcmp.ne.s16.totalorder %v3537, 0
      %v3554 = vsel %vm3545, %v3229, 0
      %v3555 = vsel %vm3546, %v3171, 0
      %v3556 = vsel %vm3547, %v3172, 0
      %v3557 = vsel %vm3548, %v3173, 0
      %v3558 = vsel %vm3549, %v3174, 0
      %v3559 = vsel %vm3550, %v3175, 0
      %v3560 = vsel %vm3551, %v3176, 0
      %v3561 = vsel %vm3552, %v3177, 0
      %v3562 = vsel %vm3553, %v3241, 0
      %v3563 = vsel %vm3545, %v3232, 0
      %v3564 = vsel %vm3546, %v3178, 0
      %v3565 = vsel %vm3547, %v3179, 0
      %v3566 = vsel %vm3548, %v3180, 0
      %v3567 = vsel %vm3549, %v3181, 0
      %v3568 = vsel %vm3550, %v3182, 0
      %v3569 = vsel %vm3551, %v3183, 0
      %v3570 = vsel %vm3552, %v3184, 0
      %v3571 = vsel %vm3553, %v3244, 0
      %v3572 = vsel %vm3545, %v3235, 0
      %v3573 = vsel %vm3546, %v3185, 0
      %v3574 = vsel %vm3547, %v3186, 0
      %v3575 = vsel %vm3548, %v3187, 0
      %v3576 = vsel %vm3549, %v3188, 0
      %v3577 = vsel %vm3550, %v3189, 0
      %v3578 = vsel %vm3551, %v3190, 0
      %v3579 = vsel %vm3552, %v3191, 0
      %v3580 = vsel %vm3553, %v3247, 0
      %v3581 = vsel %vm3545, %v3238, 0
      %v3582 = vsel %vm3546, %v3192, 0
      %v3583 = vsel %vm3547, %v3193, 0
      %v3584 = vsel %vm3548, %v3194, 0
      %v3585 = vsel %vm3549, %v3195, 0
      %v3586 = vsel %vm3550, %v3196, 0
      %v3587 = vsel %vm3551, %v3197, 0
      %v3588 = vsel %vm3552, %v3198, 0
      %v3589 = vsel %vm3553, %v3250, 0
      %3590 = vrot.lane.b32.xlu0 %v3397, 32
      %v3591 = vpop.permute.xlu0 %3590
      %3592 = vrot.lane.b32.xlu0 %v3401, 32
      %v3593 = vpop.permute.xlu0 %3592
      %3594 = vrot.lane.b32.xlu0 %v3405, 32
      %v3595 = vpop.permute.xlu0 %3594
      %3596 = vrot.lane.b32.xlu0 %v3409, 32
      %v3597 = vpop.permute.xlu0 %3596
      %3598 = vrot.lane.b32.xlu0 %v3413, 32
      %v3599 = vpop.permute.xlu0 %3598
      %3600 = vrot.lane.b32.xlu0 %v3417, 32
      %v3601 = vpop.permute.xlu0 %3600
      %3602 = vrot.lane.b32.xlu0 %v3421, 32
      %v3603 = vpop.permute.xlu0 %3602
      %3604 = vrot.lane.b32.xlu0 %v3425, 32
      %v3605 = vpop.permute.xlu0 %3604
      %v3606 = vsel %vm939, %v3591, %v3593
      %v3607 = vsel %vm939, %v3593, %v3595
      %v3608 = vsel %vm939, %v3595, %v3597
      %v3609 = vsel %vm939, %v3597, %v3599
      %v3610 = vsel %vm939, %v3599, %v3601
      %v3611 = vsel %vm939, %v3601, %v3603
      %v3612 = vsel %vm939, %v3603, %v3605
      %vm3613 = vcmp.ne.s16.totalorder %v3591, 0
      %vm3614 = vcmp.ne.s16.totalorder %v3606, 0
      %vm3615 = vcmp.ne.s16.totalorder %v3607, 0
      %vm3616 = vcmp.ne.s16.totalorder %v3608, 0
      %vm3617 = vcmp.ne.s16.totalorder %v3609, 0
      %vm3618 = vcmp.ne.s16.totalorder %v3610, 0
      %vm3619 = vcmp.ne.s16.totalorder %v3611, 0
      %vm3620 = vcmp.ne.s16.totalorder %v3612, 0
      %vm3621 = vcmp.ne.s16.totalorder %v3605, 0
      %v3622 = vsel %vm3613, %v3229, 0
      %v3623 = vsel %vm3614, %v3171, 0
      %v3624 = vsel %vm3615, %v3172, 0
      %v3625 = vsel %vm3616, %v3173, 0
      %v3626 = vsel %vm3617, %v3174, 0
      %v3627 = vsel %vm3618, %v3175, 0
      %v3628 = vsel %vm3619, %v3176, 0
      %v3629 = vsel %vm3620, %v3177, 0
      %v3630 = vsel %vm3621, %v3241, 0
      %v3631 = vsel %vm3613, %v3232, 0
      %v3632 = vsel %vm3614, %v3178, 0
      %v3633 = vsel %vm3615, %v3179, 0
      %v3634 = vsel %vm3616, %v3180, 0
      %v3635 = vsel %vm3617, %v3181, 0
      %v3636 = vsel %vm3618, %v3182, 0
      %v3637 = vsel %vm3619, %v3183, 0
      %v3638 = vsel %vm3620, %v3184, 0
      %v3639 = vsel %vm3621, %v3244, 0
      %v3640 = vsel %vm3613, %v3235, 0
      %v3641 = vsel %vm3614, %v3185, 0
      %v3642 = vsel %vm3615, %v3186, 0
      %v3643 = vsel %vm3616, %v3187, 0
      %v3644 = vsel %vm3617, %v3188, 0
      %v3645 = vsel %vm3618, %v3189, 0
      %v3646 = vsel %vm3619, %v3190, 0
      %v3647 = vsel %vm3620, %v3191, 0
      %v3648 = vsel %vm3621, %v3247, 0
      %v3649 = vsel %vm3613, %v3238, 0
      %v3650 = vsel %vm3614, %v3192, 0
      %v3651 = vsel %vm3615, %v3193, 0
      %v3652 = vsel %vm3616, %v3194, 0
      %v3653 = vsel %vm3617, %v3195, 0
      %v3654 = vsel %vm3618, %v3196, 0
      %v3655 = vsel %vm3619, %v3197, 0
      %v3656 = vsel %vm3620, %v3198, 0
      %v3657 = vsel %vm3621, %v3250, 0
      %3658 = vrot.lane.b32.xlu0 %v3493, 34
      %v3659 = vpop.permute.xlu0 %3658
      %3660 = vrot.lane.b32.xlu0 %v3497, 34
      %v3661 = vpop.permute.xlu0 %3660
      %3662 = vrot.lane.b32.xlu0 %v3501, 34
      %v3663 = vpop.permute.xlu0 %3662
      %3664 = vrot.lane.b32.xlu0 %v3505, 34
      %v3665 = vpop.permute.xlu0 %3664
      %3666 = vrot.lane.b32.xlu0 %v3509, 34
      %v3667 = vpop.permute.xlu0 %3666
      %3668 = vrot.lane.b32.xlu0 %v3513, 34
      %v3669 = vpop.permute.xlu0 %3668
      %3670 = vrot.lane.b32.xlu0 %v3517, 34
      %v3671 = vpop.permute.xlu0 %3670
      %3672 = vrot.lane.b32.xlu0 %v3521, 34
      %v3673 = vpop.permute.xlu0 %3672
      %v3674 = vsel %vm951, %v3659, %v3661
      %v3675 = vsel %vm951, %v3661, %v3663
      %v3676 = vsel %vm951, %v3663, %v3665
      %v3677 = vsel %vm951, %v3665, %v3667
      %v3678 = vsel %vm951, %v3667, %v3669
      %v3679 = vsel %vm951, %v3669, %v3671
      %v3680 = vsel %vm951, %v3671, %v3673
      %vm3681 = vcmp.ne.s16.totalorder %v3659, 0
      %vm3682 = vcmp.ne.s16.totalorder %v3674, 0
      %vm3683 = vcmp.ne.s16.totalorder %v3675, 0
      %vm3684 = vcmp.ne.s16.totalorder %v3676, 0
      %vm3685 = vcmp.ne.s16.totalorder %v3677, 0
      %vm3686 = vcmp.ne.s16.totalorder %v3678, 0
      %vm3687 = vcmp.ne.s16.totalorder %v3679, 0
      %vm3688 = vcmp.ne.s16.totalorder %v3680, 0
      %vm3689 = vcmp.ne.s16.totalorder %v3673, 0
      %v3690 = vsel %vm3681, %v3229, 0
      %v3691 = vsel %vm3682, %v3171, 0
      %v3692 = vsel %vm3683, %v3172, 0
      %v3693 = vsel %vm3684, %v3173, 0
      %v3694 = vsel %vm3685, %v3174, 0
      %v3695 = vsel %vm3686, %v3175, 0
      %v3696 = vsel %vm3687, %v3176, 0
      %v3697 = vsel %vm3688, %v3177, 0
      %v3698 = vsel %vm3689, %v3241, 0
      %v3699 = vsel %vm3681, %v3232, 0
      %v3700 = vsel %vm3682, %v3178, 0
      %v3701 = vsel %vm3683, %v3179, 0
      %v3702 = vsel %vm3684, %v3180, 0
      %v3703 = vsel %vm3685, %v3181, 0
      %v3704 = vsel %vm3686, %v3182, 0
      %v3705 = vsel %vm3687, %v3183, 0
      %v3706 = vsel %vm3688, %v3184, 0
      %v3707 = vsel %vm3689, %v3244, 0
      %v3708 = vsel %vm3681, %v3235, 0
      %v3709 = vsel %vm3682, %v3185, 0
      %v3710 = vsel %vm3683, %v3186, 0
      %v3711 = vsel %vm3684, %v3187, 0
      %v3712 = vsel %vm3685, %v3188, 0
      %v3713 = vsel %vm3686, %v3189, 0
      %v3714 = vsel %vm3687, %v3190, 0
      %v3715 = vsel %vm3688, %v3191, 0
      %v3716 = vsel %vm3689, %v3247, 0
      %v3717 = vsel %vm3681, %v3238, 0
      %v3718 = vsel %vm3682, %v3192, 0
      %v3719 = vsel %vm3683, %v3193, 0
      %v3720 = vsel %vm3684, %v3194, 0
      %v3721 = vsel %vm3685, %v3195, 0
      %v3722 = vsel %vm3686, %v3196, 0
      %v3723 = vsel %vm3687, %v3197, 0
      %v3724 = vsel %vm3688, %v3198, 0
      %v3725 = vsel %vm3689, %v3250, 0
      %3726 = vrot.lane.b32.xlu0 %v3397, 64
      %v3727 = vpop.permute.xlu0 %3726
      %3728 = vrot.lane.b32.xlu0 %v3401, 64
      %v3729 = vpop.permute.xlu0 %3728
      %3730 = vrot.lane.b32.xlu0 %v3405, 64
      %v3731 = vpop.permute.xlu0 %3730
      %3732 = vrot.lane.b32.xlu0 %v3409, 64
      %v3733 = vpop.permute.xlu0 %3732
      %3734 = vrot.lane.b32.xlu0 %v3413, 64
      %v3735 = vpop.permute.xlu0 %3734
      %3736 = vrot.lane.b32.xlu0 %v3417, 64
      %v3737 = vpop.permute.xlu0 %3736
      %3738 = vrot.lane.b32.xlu0 %v3421, 64
      %v3739 = vpop.permute.xlu0 %3738
      %3740 = vrot.lane.b32.xlu0 %v3425, 64
      %v3741 = vpop.permute.xlu0 %3740
      %vm3742 = vcmask 523264
      %v3743 = vsel %vm3742, %v3727, %v3729
      %v3744 = vsel %vm3742, %v3729, %v3731
      %v3745 = vsel %vm3742, %v3731, %v3733
      %v3746 = vsel %vm3742, %v3733, %v3735
      %v3747 = vsel %vm3742, %v3735, %v3737
      %v3748 = vsel %vm3742, %v3737, %v3739
      %v3749 = vsel %vm3742, %v3739, %v3741
      %vm3750 = vcmp.ne.s16.totalorder %v3727, 0
      %vm3751 = vcmp.ne.s16.totalorder %v3743, 0
      %vm3752 = vcmp.ne.s16.totalorder %v3744, 0
      %vm3753 = vcmp.ne.s16.totalorder %v3745, 0
      %vm3754 = vcmp.ne.s16.totalorder %v3746, 0
      %vm3755 = vcmp.ne.s16.totalorder %v3747, 0
      %vm3756 = vcmp.ne.s16.totalorder %v3748, 0
      %vm3757 = vcmp.ne.s16.totalorder %v3749, 0
      %vm3758 = vcmp.ne.s16.totalorder %v3741, 0
      %v3759 = vsel %vm3750, %v3229, 0
      %v3760 = vsel %vm3751, %v3171, 0
      %v3761 = vsel %vm3752, %v3172, 0
      %v3762 = vsel %vm3753, %v3173, 0
      %v3763 = vsel %vm3754, %v3174, 0
      %v3764 = vsel %vm3755, %v3175, 0
      %v3765 = vsel %vm3756, %v3176, 0
      %v3766 = vsel %vm3757, %v3177, 0
      %v3767 = vsel %vm3758, %v3241, 0
      %v3768 = vsel %vm3750, %v3232, 0
      %v3769 = vsel %vm3751, %v3178, 0
      %v3770 = vsel %vm3752, %v3179, 0
      %v3771 = vsel %vm3753, %v3180, 0
      %v3772 = vsel %vm3754, %v3181, 0
      %v3773 = vsel %vm3755, %v3182, 0
      %v3774 = vsel %vm3756, %v3183, 0
      %v3775 = vsel %vm3757, %v3184, 0
      %v3776 = vsel %vm3758, %v3244, 0
      %v3777 = vsel %vm3750, %v3235, 0
      %v3778 = vsel %vm3751, %v3185, 0
      %v3779 = vsel %vm3752, %v3186, 0
      %v3780 = vsel %vm3753, %v3187, 0
      %v3781 = vsel %vm3754, %v3188, 0
      %v3782 = vsel %vm3755, %v3189, 0
      %v3783 = vsel %vm3756, %v3190, 0
      %v3784 = vsel %vm3757, %v3191, 0
      %v3785 = vsel %vm3758, %v3247, 0
      %v3786 = vsel %vm3750, %v3238, 0
      %v3787 = vsel %vm3751, %v3192, 0
      %v3788 = vsel %vm3752, %v3193, 0
      %v3789 = vsel %vm3753, %v3194, 0
      %v3790 = vsel %vm3754, %v3195, 0
      %v3791 = vsel %vm3755, %v3196, 0
      %v3792 = vsel %vm3756, %v3197, 0
      %v3793 = vsel %vm3757, %v3198, 0
      %v3794 = vsel %vm3758, %v3250, 0
      %3795 = vrot.lane.b32.xlu0 %v3493, 66
      %v3796 = vpop.permute.xlu0 %3795
      %3797 = vrot.lane.b32.xlu0 %v3497, 66
      %v3798 = vpop.permute.xlu0 %3797
      %3799 = vrot.lane.b32.xlu0 %v3501, 66
      %v3800 = vpop.permute.xlu0 %3799
      %3801 = vrot.lane.b32.xlu0 %v3505, 66
      %v3802 = vpop.permute.xlu0 %3801
      %3803 = vrot.lane.b32.xlu0 %v3509, 66
      %v3804 = vpop.permute.xlu0 %3803
      %3805 = vrot.lane.b32.xlu0 %v3513, 66
      %v3806 = vpop.permute.xlu0 %3805
      %3807 = vrot.lane.b32.xlu0 %v3517, 66
      %v3808 = vpop.permute.xlu0 %3807
      %3809 = vrot.lane.b32.xlu0 %v3521, 66
      %v3810 = vpop.permute.xlu0 %3809
      %vm3811 = vcmask 539648
      %v3812 = vsel %vm3811, %v3796, %v3798
      %v3813 = vsel %vm3811, %v3798, %v3800
      %v3814 = vsel %vm3811, %v3800, %v3802
      %v3815 = vsel %vm3811, %v3802, %v3804
      %v3816 = vsel %vm3811, %v3804, %v3806
      %v3817 = vsel %vm3811, %v3806, %v3808
      %v3818 = vsel %vm3811, %v3808, %v3810
      %vm3819 = vcmp.ne.s16.totalorder %v3796, 0
      %vm3820 = vcmp.ne.s16.totalorder %v3812, 0
      %vm3821 = vcmp.ne.s16.totalorder %v3813, 0
      %vm3822 = vcmp.ne.s16.totalorder %v3814, 0
      %vm3823 = vcmp.ne.s16.totalorder %v3815, 0
      %vm3824 = vcmp.ne.s16.totalorder %v3816, 0
      %vm3825 = vcmp.ne.s16.totalorder %v3817, 0
      %vm3826 = vcmp.ne.s16.totalorder %v3818, 0
      %vm3827 = vcmp.ne.s16.totalorder %v3810, 0
      %v3828 = vsel %vm3819, %v3229, 0
      %v3829 = vsel %vm3820, %v3171, 0
      %v3830 = vsel %vm3821, %v3172, 0
      %v3831 = vsel %vm3822, %v3173, 0
      %v3832 = vsel %vm3823, %v3174, 0
      %v3833 = vsel %vm3824, %v3175, 0
      %v3834 = vsel %vm3825, %v3176, 0
      %v3835 = vsel %vm3826, %v3177, 0
      %v3836 = vsel %vm3827, %v3241, 0
      %v3837 = vsel %vm3819, %v3232, 0
      %v3838 = vsel %vm3820, %v3178, 0
      %v3839 = vsel %vm3821, %v3179, 0
      %v3840 = vsel %vm3822, %v3180, 0
      %v3841 = vsel %vm3823, %v3181, 0
      %v3842 = vsel %vm3824, %v3182, 0
      %v3843 = vsel %vm3825, %v3183, 0
      %v3844 = vsel %vm3826, %v3184, 0
      %v3845 = vsel %vm3827, %v3244, 0
      %v3846 = vsel %vm3819, %v3235, 0
      %v3847 = vsel %vm3820, %v3185, 0
      %v3848 = vsel %vm3821, %v3186, 0
      %v3849 = vsel %vm3822, %v3187, 0
      %v3850 = vsel %vm3823, %v3188, 0
      %v3851 = vsel %vm3824, %v3189, 0
      %v3852 = vsel %vm3825, %v3190, 0
      %v3853 = vsel %vm3826, %v3191, 0
      %v3854 = vsel %vm3827, %v3247, 0
      %v3855 = vsel %vm3819, %v3238, 0
      %v3856 = vsel %vm3820, %v3192, 0
      %v3857 = vsel %vm3821, %v3193, 0
      %v3858 = vsel %vm3822, %v3194, 0
      %v3859 = vsel %vm3823, %v3195, 0
      %v3860 = vsel %vm3824, %v3196, 0
      %v3861 = vsel %vm3825, %v3197, 0
      %v3862 = vsel %vm3826, %v3198, 0
      %v3863 = vsel %vm3827, %v3250, 0
      %3872 = vrot.lane.b32.xlu0 %v3229, 127
      %v3873 = vpop.permute.xlu0 %3872
      %3874 = vrot.lane.b32.xlu0 %v3171, 127
      %v3875 = vpop.permute.xlu0 %3874
      %3876 = vrot.lane.b32.xlu0 %v3172, 127
      %v3877 = vpop.permute.xlu0 %3876
      %3878 = vrot.lane.b32.xlu0 %v3173, 127
      %v3879 = vpop.permute.xlu0 %3878
      %3880 = vrot.lane.b32.xlu0 %v3174, 127
      %v3881 = vpop.permute.xlu0 %3880
      %3882 = vrot.lane.b32.xlu0 %v3175, 127
      %v3883 = vpop.permute.xlu0 %3882
      %3884 = vrot.lane.b32.xlu0 %v3176, 127
      %v3885 = vpop.permute.xlu0 %3884
      %3886 = vrot.lane.b32.xlu0 %v3177, 127
      %v3887 = vpop.permute.xlu0 %3886
      %3888 = vrot.lane.b32.xlu0 %v3241, 127
      %v3889 = vpop.permute.xlu0 %3888
      %3890 = vrot.lane.b32.xlu0 %v3232, 127
      %v3891 = vpop.permute.xlu0 %3890
      %3892 = vrot.lane.b32.xlu0 %v3178, 127
      %v3893 = vpop.permute.xlu0 %3892
      %3894 = vrot.lane.b32.xlu0 %v3179, 127
      %v3895 = vpop.permute.xlu0 %3894
      %3896 = vrot.lane.b32.xlu0 %v3180, 127
      %v3897 = vpop.permute.xlu0 %3896
      %3898 = vrot.lane.b32.xlu0 %v3181, 127
      %v3899 = vpop.permute.xlu0 %3898
      %3900 = vrot.lane.b32.xlu0 %v3182, 127
      %v3901 = vpop.permute.xlu0 %3900
      %3902 = vrot.lane.b32.xlu0 %v3183, 127
      %v3903 = vpop.permute.xlu0 %3902
      %3904 = vrot.lane.b32.xlu0 %v3184, 127
      %v3905 = vpop.permute.xlu0 %3904
      %3906 = vrot.lane.b32.xlu0 %v3244, 127
      %v3907 = vpop.permute.xlu0 %3906
      %3908 = vrot.lane.b32.xlu0 %v3235, 127
      %v3909 = vpop.permute.xlu0 %3908
      %3910 = vrot.lane.b32.xlu0 %v3185, 127
      %v3911 = vpop.permute.xlu0 %3910
      %3912 = vrot.lane.b32.xlu0 %v3186, 127
      %v3913 = vpop.permute.xlu0 %3912
      %3914 = vrot.lane.b32.xlu0 %v3187, 127
      %v3915 = vpop.permute.xlu0 %3914
      %3916 = vrot.lane.b32.xlu0 %v3188, 127
      %v3917 = vpop.permute.xlu0 %3916
      %3918 = vrot.lane.b32.xlu0 %v3189, 127
      %v3919 = vpop.permute.xlu0 %3918
      %3920 = vrot.lane.b32.xlu0 %v3190, 127
      %v3921 = vpop.permute.xlu0 %3920
      %3922 = vrot.lane.b32.xlu0 %v3191, 127
      %v3923 = vpop.permute.xlu0 %3922
      %3924 = vrot.lane.b32.xlu0 %v3247, 127
      %v3925 = vpop.permute.xlu0 %3924
      %3926 = vrot.lane.b32.xlu0 %v3238, 127
      %v3927 = vpop.permute.xlu0 %3926
      %3928 = vrot.lane.b32.xlu0 %v3192, 127
      %v3929 = vpop.permute.xlu0 %3928
      %3930 = vrot.lane.b32.xlu0 %v3193, 127
      %v3931 = vpop.permute.xlu0 %3930
      %3932 = vrot.lane.b32.xlu0 %v3194, 127
      %v3933 = vpop.permute.xlu0 %3932
      %3934 = vrot.lane.b32.xlu0 %v3195, 127
      %v3935 = vpop.permute.xlu0 %3934
      %3936 = vrot.lane.b32.xlu0 %v3196, 127
      %v3937 = vpop.permute.xlu0 %3936
      %3938 = vrot.lane.b32.xlu0 %v3197, 127
      %v3939 = vpop.permute.xlu0 %3938
      %3940 = vrot.lane.b32.xlu0 %v3198, 127
      %v3941 = vpop.permute.xlu0 %3940
      %3942 = vrot.lane.b32.xlu0 %v3250, 127
      %v3943 = vpop.permute.xlu0 %3942
      %v3944 = vsel %vm967, %v3873, %v3875
      %v3945 = vsel %vm967, %v3875, %v3877
      %v3946 = vsel %vm967, %v3877, %v3879
      %v3947 = vsel %vm967, %v3879, %v3881
      %v3948 = vsel %vm967, %v3881, %v3883
      %v3949 = vsel %vm967, %v3883, %v3885
      %v3950 = vsel %vm967, %v3885, %v3887
      %v3951 = vsel %vm967, %v3887, %v3889
      %v3952 = vsel %vm967, %v3891, %v3893
      %v3953 = vsel %vm967, %v3893, %v3895
      %v3954 = vsel %vm967, %v3895, %v3897
      %v3955 = vsel %vm967, %v3897, %v3899
      %v3956 = vsel %vm967, %v3899, %v3901
      %v3957 = vsel %vm967, %v3901, %v3903
      %v3958 = vsel %vm967, %v3903, %v3905
      %v3959 = vsel %vm967, %v3905, %v3907
      %v3960 = vsel %vm967, %v3909, %v3911
      %v3961 = vsel %vm967, %v3911, %v3913
      %v3962 = vsel %vm967, %v3913, %v3915
      %v3963 = vsel %vm967, %v3915, %v3917
      %v3964 = vsel %vm967, %v3917, %v3919
      %v3965 = vsel %vm967, %v3919, %v3921
      %v3966 = vsel %vm967, %v3921, %v3923
      %v3967 = vsel %vm967, %v3923, %v3925
      %v3968 = vsel %vm967, %v3927, %v3929
      %v3969 = vsel %vm967, %v3929, %v3931
      %v3970 = vsel %vm967, %v3931, %v3933
      %v3971 = vsel %vm967, %v3933, %v3935
      %v3972 = vsel %vm967, %v3935, %v3937
      %v3973 = vsel %vm967, %v3937, %v3939
      %v3974 = vsel %vm967, %v3939, %v3941
      %v3975 = vsel %vm967, %v3941, %v3943
      %4044 = vrot.lane.b32.xlu0 %v3554, 126
      %v4045 = vpop.permute.xlu0 %4044
      %4046 = vrot.lane.b32.xlu0 %v3555, 126
      %v4047 = vpop.permute.xlu0 %4046
      %4048 = vrot.lane.b32.xlu0 %v3556, 126
      %v4049 = vpop.permute.xlu0 %4048
      %4050 = vrot.lane.b32.xlu0 %v3557, 126
      %v4051 = vpop.permute.xlu0 %4050
      %4052 = vrot.lane.b32.xlu0 %v3558, 126
      %v4053 = vpop.permute.xlu0 %4052
      %4054 = vrot.lane.b32.xlu0 %v3559, 126
      %v4055 = vpop.permute.xlu0 %4054
      %4056 = vrot.lane.b32.xlu0 %v3560, 126
      %v4057 = vpop.permute.xlu0 %4056
      %4058 = vrot.lane.b32.xlu0 %v3561, 126
      %v4059 = vpop.permute.xlu0 %4058
      %4060 = vrot.lane.b32.xlu0 %v3562, 126
      %v4061 = vpop.permute.xlu0 %4060
      %4062 = vrot.lane.b32.xlu0 %v3563, 126
      %v4063 = vpop.permute.xlu0 %4062
      %4064 = vrot.lane.b32.xlu0 %v3564, 126
      %v4065 = vpop.permute.xlu0 %4064
      %4066 = vrot.lane.b32.xlu0 %v3565, 126
      %v4067 = vpop.permute.xlu0 %4066
      %4068 = vrot.lane.b32.xlu0 %v3566, 126
      %v4069 = vpop.permute.xlu0 %4068
      %4070 = vrot.lane.b32.xlu0 %v3567, 126
      %v4071 = vpop.permute.xlu0 %4070
      %4072 = vrot.lane.b32.xlu0 %v3568, 126
      %v4073 = vpop.permute.xlu0 %4072
      %4074 = vrot.lane.b32.xlu0 %v3569, 126
      %v4075 = vpop.permute.xlu0 %4074
      %4076 = vrot.lane.b32.xlu0 %v3570, 126
      %v4077 = vpop.permute.xlu0 %4076
      %4078 = vrot.lane.b32.xlu0 %v3571, 126
      %v4079 = vpop.permute.xlu0 %4078
      %4080 = vrot.lane.b32.xlu0 %v3572, 126
      %v4081 = vpop.permute.xlu0 %4080
      %4082 = vrot.lane.b32.xlu0 %v3573, 126
      %v4083 = vpop.permute.xlu0 %4082
      %4084 = vrot.lane.b32.xlu0 %v3574, 126
      %v4085 = vpop.permute.xlu0 %4084
      %4086 = vrot.lane.b32.xlu0 %v3575, 126
      %v4087 = vpop.permute.xlu0 %4086
      %4088 = vrot.lane.b32.xlu0 %v3576, 126
      %v4089 = vpop.permute.xlu0 %4088
      %4090 = vrot.lane.b32.xlu0 %v3577, 126
      %v4091 = vpop.permute.xlu0 %4090
      %4092 = vrot.lane.b32.xlu0 %v3578, 126
      %v4093 = vpop.permute.xlu0 %4092
      %4094 = vrot.lane.b32.xlu0 %v3579, 126
      %v4095 = vpop.permute.xlu0 %4094
      %4096 = vrot.lane.b32.xlu0 %v3580, 126
      %v4097 = vpop.permute.xlu0 %4096
      %4098 = vrot.lane.b32.xlu0 %v3581, 126
      %v4099 = vpop.permute.xlu0 %4098
      %4100 = vrot.lane.b32.xlu0 %v3582, 126
      %v4101 = vpop.permute.xlu0 %4100
      %4102 = vrot.lane.b32.xlu0 %v3583, 126
      %v4103 = vpop.permute.xlu0 %4102
      %4104 = vrot.lane.b32.xlu0 %v3584, 126
      %v4105 = vpop.permute.xlu0 %4104
      %4106 = vrot.lane.b32.xlu0 %v3585, 126
      %v4107 = vpop.permute.xlu0 %4106
      %4108 = vrot.lane.b32.xlu0 %v3586, 126
      %v4109 = vpop.permute.xlu0 %4108
      %4110 = vrot.lane.b32.xlu0 %v3587, 126
      %v4111 = vpop.permute.xlu0 %4110
      %4112 = vrot.lane.b32.xlu0 %v3588, 126
      %v4113 = vpop.permute.xlu0 %4112
      %4114 = vrot.lane.b32.xlu0 %v3589, 126
      %v4115 = vpop.permute.xlu0 %4114
      %v4116 = vsel %vm981, %v4045, %v4047
      %v4117 = vsel %vm981, %v4047, %v4049
      %v4118 = vsel %vm981, %v4049, %v4051
      %v4119 = vsel %vm981, %v4051, %v4053
      %v4120 = vsel %vm981, %v4053, %v4055
      %v4121 = vsel %vm981, %v4055, %v4057
      %v4122 = vsel %vm981, %v4057, %v4059
      %v4123 = vsel %vm981, %v4059, %v4061
      %v4124 = vsel %vm981, %v4063, %v4065
      %v4125 = vsel %vm981, %v4065, %v4067
      %v4126 = vsel %vm981, %v4067, %v4069
      %v4127 = vsel %vm981, %v4069, %v4071
      %v4128 = vsel %vm981, %v4071, %v4073
      %v4129 = vsel %vm981, %v4073, %v4075
      %v4130 = vsel %vm981, %v4075, %v4077
      %v4131 = vsel %vm981, %v4077, %v4079
      %v4132 = vsel %vm981, %v4081, %v4083
      %v4133 = vsel %vm981, %v4083, %v4085
      %v4134 = vsel %vm981, %v4085, %v4087
      %v4135 = vsel %vm981, %v4087, %v4089
      %v4136 = vsel %vm981, %v4089, %v4091
      %v4137 = vsel %vm981, %v4091, %v4093
      %v4138 = vsel %vm981, %v4093, %v4095
      %v4139 = vsel %vm981, %v4095, %v4097
      %v4140 = vsel %vm981, %v4099, %v4101
      %v4141 = vsel %vm981, %v4101, %v4103
      %v4142 = vsel %vm981, %v4103, %v4105
      %v4143 = vsel %vm981, %v4105, %v4107
      %v4144 = vsel %vm981, %v4107, %v4109
      %v4145 = vsel %vm981, %v4109, %v4111
      %v4146 = vsel %vm981, %v4111, %v4113
      %v4147 = vsel %vm981, %v4113, %v4115
      %4216 = vrot.lane.b32.xlu0 %v3622, 96
      %v4217 = vpop.permute.xlu0 %4216
      %4218 = vrot.lane.b32.xlu0 %v3623, 96
      %v4219 = vpop.permute.xlu0 %4218
      %4220 = vrot.lane.b32.xlu0 %v3624, 96
      %v4221 = vpop.permute.xlu0 %4220
      %4222 = vrot.lane.b32.xlu0 %v3625, 96
      %v4223 = vpop.permute.xlu0 %4222
      %4224 = vrot.lane.b32.xlu0 %v3626, 96
      %v4225 = vpop.permute.xlu0 %4224
      %4226 = vrot.lane.b32.xlu0 %v3627, 96
      %v4227 = vpop.permute.xlu0 %4226
      %4228 = vrot.lane.b32.xlu0 %v3628, 96
      %v4229 = vpop.permute.xlu0 %4228
      %4230 = vrot.lane.b32.xlu0 %v3629, 96
      %v4231 = vpop.permute.xlu0 %4230
      %4232 = vrot.lane.b32.xlu0 %v3630, 96
      %v4233 = vpop.permute.xlu0 %4232
      %4234 = vrot.lane.b32.xlu0 %v3631, 96
      %v4235 = vpop.permute.xlu0 %4234
      %4236 = vrot.lane.b32.xlu0 %v3632, 96
      %v4237 = vpop.permute.xlu0 %4236
      %4238 = vrot.lane.b32.xlu0 %v3633, 96
      %v4239 = vpop.permute.xlu0 %4238
      %4240 = vrot.lane.b32.xlu0 %v3634, 96
      %v4241 = vpop.permute.xlu0 %4240
      %4242 = vrot.lane.b32.xlu0 %v3635, 96
      %v4243 = vpop.permute.xlu0 %4242
      %4244 = vrot.lane.b32.xlu0 %v3636, 96
      %v4245 = vpop.permute.xlu0 %4244
      %4246 = vrot.lane.b32.xlu0 %v3637, 96
      %v4247 = vpop.permute.xlu0 %4246
      %4248 = vrot.lane.b32.xlu0 %v3638, 96
      %v4249 = vpop.permute.xlu0 %4248
      %4250 = vrot.lane.b32.xlu0 %v3639, 96
      %v4251 = vpop.permute.xlu0 %4250
      %4252 = vrot.lane.b32.xlu0 %v3640, 96
      %v4253 = vpop.permute.xlu0 %4252
      %4254 = vrot.lane.b32.xlu0 %v3641, 96
      %v4255 = vpop.permute.xlu0 %4254
      %4256 = vrot.lane.b32.xlu0 %v3642, 96
      %v4257 = vpop.permute.xlu0 %4256
      %4258 = vrot.lane.b32.xlu0 %v3643, 96
      %v4259 = vpop.permute.xlu0 %4258
      %4260 = vrot.lane.b32.xlu0 %v3644, 96
      %v4261 = vpop.permute.xlu0 %4260
      %4262 = vrot.lane.b32.xlu0 %v3645, 96
      %v4263 = vpop.permute.xlu0 %4262
      %4264 = vrot.lane.b32.xlu0 %v3646, 96
      %v4265 = vpop.permute.xlu0 %4264
      %4266 = vrot.lane.b32.xlu0 %v3647, 96
      %v4267 = vpop.permute.xlu0 %4266
      %4268 = vrot.lane.b32.xlu0 %v3648, 96
      %v4269 = vpop.permute.xlu0 %4268
      %4270 = vrot.lane.b32.xlu0 %v3649, 96
      %v4271 = vpop.permute.xlu0 %4270
      %4272 = vrot.lane.b32.xlu0 %v3650, 96
      %v4273 = vpop.permute.xlu0 %4272
      %4274 = vrot.lane.b32.xlu0 %v3651, 96
      %v4275 = vpop.permute.xlu0 %4274
      %4276 = vrot.lane.b32.xlu0 %v3652, 96
      %v4277 = vpop.permute.xlu0 %4276
      %4278 = vrot.lane.b32.xlu0 %v3653, 96
      %v4279 = vpop.permute.xlu0 %4278
      %4280 = vrot.lane.b32.xlu0 %v3654, 96
      %v4281 = vpop.permute.xlu0 %4280
      %4282 = vrot.lane.b32.xlu0 %v3655, 96
      %v4283 = vpop.permute.xlu0 %4282
      %4284 = vrot.lane.b32.xlu0 %v3656, 96
      %v4285 = vpop.permute.xlu0 %4284
      %4286 = vrot.lane.b32.xlu0 %v3657, 96
      %v4287 = vpop.permute.xlu0 %4286
      %v4288 = vsel %vm1034, %v4217, %v4219
      %v4289 = vsel %vm1034, %v4219, %v4221
      %v4290 = vsel %vm1034, %v4221, %v4223
      %v4291 = vsel %vm1034, %v4223, %v4225
      %v4292 = vsel %vm1034, %v4225, %v4227
      %v4293 = vsel %vm1034, %v4227, %v4229
      %v4294 = vsel %vm1034, %v4229, %v4231
      %v4295 = vsel %vm1034, %v4231, %v4233
      %v4296 = vsel %vm1034, %v4235, %v4237
      %v4297 = vsel %vm1034, %v4237, %v4239
      %v4298 = vsel %vm1034, %v4239, %v4241
      %v4299 = vsel %vm1034, %v4241, %v4243
      %v4300 = vsel %vm1034, %v4243, %v4245
      %v4301 = vsel %vm1034, %v4245, %v4247
      %v4302 = vsel %vm1034, %v4247, %v4249
      %v4303 = vsel %vm1034, %v4249, %v4251
      %v4304 = vsel %vm1034, %v4253, %v4255
      %v4305 = vsel %vm1034, %v4255, %v4257
      %v4306 = vsel %vm1034, %v4257, %v4259
      %v4307 = vsel %vm1034, %v4259, %v4261
      %v4308 = vsel %vm1034, %v4261, %v4263
      %v4309 = vsel %vm1034, %v4263, %v4265
      %v4310 = vsel %vm1034, %v4265, %v4267
      %v4311 = vsel %vm1034, %v4267, %v4269
      %v4312 = vsel %vm1034, %v4271, %v4273
      %v4313 = vsel %vm1034, %v4273, %v4275
      %v4314 = vsel %vm1034, %v4275, %v4277
      %v4315 = vsel %vm1034, %v4277, %v4279
      %v4316 = vsel %vm1034, %v4279, %v4281
      %v4317 = vsel %vm1034, %v4281, %v4283
      %v4318 = vsel %vm1034, %v4283, %v4285
      %v4319 = vsel %vm1034, %v4285, %v4287
      %4352 = vrot.lane.b32.xlu0 %v3229, 95
      %v4353 = vpop.permute.xlu0 %4352
      %4354 = vrot.lane.b32.xlu0 %v3171, 95
      %v4355 = vpop.permute.xlu0 %4354
      %4356 = vrot.lane.b32.xlu0 %v3172, 95
      %v4357 = vpop.permute.xlu0 %4356
      %4358 = vrot.lane.b32.xlu0 %v3173, 95
      %v4359 = vpop.permute.xlu0 %4358
      %4360 = vrot.lane.b32.xlu0 %v3174, 95
      %v4361 = vpop.permute.xlu0 %4360
      %4362 = vrot.lane.b32.xlu0 %v3175, 95
      %v4363 = vpop.permute.xlu0 %4362
      %4364 = vrot.lane.b32.xlu0 %v3176, 95
      %v4365 = vpop.permute.xlu0 %4364
      %4366 = vrot.lane.b32.xlu0 %v3177, 95
      %v4367 = vpop.permute.xlu0 %4366
      %4368 = vrot.lane.b32.xlu0 %v3241, 95
      %v4369 = vpop.permute.xlu0 %4368
      %4370 = vrot.lane.b32.xlu0 %v3232, 95
      %v4371 = vpop.permute.xlu0 %4370
      %4372 = vrot.lane.b32.xlu0 %v3178, 95
      %v4373 = vpop.permute.xlu0 %4372
      %4374 = vrot.lane.b32.xlu0 %v3179, 95
      %v4375 = vpop.permute.xlu0 %4374
      %4376 = vrot.lane.b32.xlu0 %v3180, 95
      %v4377 = vpop.permute.xlu0 %4376
      %4378 = vrot.lane.b32.xlu0 %v3181, 95
      %v4379 = vpop.permute.xlu0 %4378
      %4380 = vrot.lane.b32.xlu0 %v3182, 95
      %v4381 = vpop.permute.xlu0 %4380
      %4382 = vrot.lane.b32.xlu0 %v3183, 95
      %v4383 = vpop.permute.xlu0 %4382
      %4384 = vrot.lane.b32.xlu0 %v3184, 95
      %v4385 = vpop.permute.xlu0 %4384
      %4386 = vrot.lane.b32.xlu0 %v3244, 95
      %v4387 = vpop.permute.xlu0 %4386
      %4388 = vrot.lane.b32.xlu0 %v3235, 95
      %v4389 = vpop.permute.xlu0 %4388
      %4390 = vrot.lane.b32.xlu0 %v3185, 95
      %v4391 = vpop.permute.xlu0 %4390
      %4392 = vrot.lane.b32.xlu0 %v3186, 95
      %v4393 = vpop.permute.xlu0 %4392
      %4394 = vrot.lane.b32.xlu0 %v3187, 95
      %v4395 = vpop.permute.xlu0 %4394
      %4396 = vrot.lane.b32.xlu0 %v3188, 95
      %v4397 = vpop.permute.xlu0 %4396
      %4398 = vrot.lane.b32.xlu0 %v3189, 95
      %v4399 = vpop.permute.xlu0 %4398
      %4400 = vrot.lane.b32.xlu0 %v3190, 95
      %v4401 = vpop.permute.xlu0 %4400
      %4402 = vrot.lane.b32.xlu0 %v3191, 95
      %v4403 = vpop.permute.xlu0 %4402
      %4404 = vrot.lane.b32.xlu0 %v3247, 95
      %v4405 = vpop.permute.xlu0 %4404
      %4406 = vrot.lane.b32.xlu0 %v3238, 95
      %v4407 = vpop.permute.xlu0 %4406
      %4408 = vrot.lane.b32.xlu0 %v3192, 95
      %v4409 = vpop.permute.xlu0 %4408
      %4410 = vrot.lane.b32.xlu0 %v3193, 95
      %v4411 = vpop.permute.xlu0 %4410
      %4412 = vrot.lane.b32.xlu0 %v3194, 95
      %v4413 = vpop.permute.xlu0 %4412
      %4414 = vrot.lane.b32.xlu0 %v3195, 95
      %v4415 = vpop.permute.xlu0 %4414
      %4416 = vrot.lane.b32.xlu0 %v3196, 95
      %v4417 = vpop.permute.xlu0 %4416
      %4418 = vrot.lane.b32.xlu0 %v3197, 95
      %v4419 = vpop.permute.xlu0 %4418
      %4420 = vrot.lane.b32.xlu0 %v3198, 95
      %v4421 = vpop.permute.xlu0 %4420
      %4422 = vrot.lane.b32.xlu0 %v3250, 95
      %v4423 = vpop.permute.xlu0 %4422
      %v4424 = vsel %vm1045, %v4353, %v4355
      %v4425 = vsel %vm1045, %v4355, %v4357
      %v4426 = vsel %vm1045, %v4357, %v4359
      %v4427 = vsel %vm1045, %v4359, %v4361
      %v4428 = vsel %vm1045, %v4361, %v4363
      %v4429 = vsel %vm1045, %v4363, %v4365
      %v4430 = vsel %vm1045, %v4365, %v4367
      %v4431 = vsel %vm1045, %v4367, %v4369
      %v4432 = vsel %vm1045, %v4371, %v4373
      %v4433 = vsel %vm1045, %v4373, %v4375
      %v4434 = vsel %vm1045, %v4375, %v4377
      %v4435 = vsel %vm1045, %v4377, %v4379
      %v4436 = vsel %vm1045, %v4379, %v4381
      %v4437 = vsel %vm1045, %v4381, %v4383
      %v4438 = vsel %vm1045, %v4383, %v4385
      %v4439 = vsel %vm1045, %v4385, %v4387
      %v4440 = vsel %vm1045, %v4389, %v4391
      %v4441 = vsel %vm1045, %v4391, %v4393
      %v4442 = vsel %vm1045, %v4393, %v4395
      %v4443 = vsel %vm1045, %v4395, %v4397
      %v4444 = vsel %vm1045, %v4397, %v4399
      %v4445 = vsel %vm1045, %v4399, %v4401
      %v4446 = vsel %vm1045, %v4401, %v4403
      %v4447 = vsel %vm1045, %v4403, %v4405
      %v4448 = vsel %vm1045, %v4407, %v4409
      %v4449 = vsel %vm1045, %v4409, %v4411
      %v4450 = vsel %vm1045, %v4411, %v4413
      %v4451 = vsel %vm1045, %v4413, %v4415
      %v4452 = vsel %vm1045, %v4415, %v4417
      %v4453 = vsel %vm1045, %v4417, %v4419
      %v4454 = vsel %vm1045, %v4419, %v4421
      %v4455 = vsel %vm1045, %v4421, %v4423
      %4524 = vrot.lane.b32.xlu0 %v3690, 94
      %v4525 = vpop.permute.xlu0 %4524
      %4526 = vrot.lane.b32.xlu0 %v3691, 94
      %v4527 = vpop.permute.xlu0 %4526
      %4528 = vrot.lane.b32.xlu0 %v3692, 94
      %v4529 = vpop.permute.xlu0 %4528
      %4530 = vrot.lane.b32.xlu0 %v3693, 94
      %v4531 = vpop.permute.xlu0 %4530
      %4532 = vrot.lane.b32.xlu0 %v3694, 94
      %v4533 = vpop.permute.xlu0 %4532
      %4534 = vrot.lane.b32.xlu0 %v3695, 94
      %v4535 = vpop.permute.xlu0 %4534
      %4536 = vrot.lane.b32.xlu0 %v3696, 94
      %v4537 = vpop.permute.xlu0 %4536
      %4538 = vrot.lane.b32.xlu0 %v3697, 94
      %v4539 = vpop.permute.xlu0 %4538
      %4540 = vrot.lane.b32.xlu0 %v3698, 94
      %v4541 = vpop.permute.xlu0 %4540
      %4542 = vrot.lane.b32.xlu0 %v3699, 94
      %v4543 = vpop.permute.xlu0 %4542
      %4544 = vrot.lane.b32.xlu0 %v3700, 94
      %v4545 = vpop.permute.xlu0 %4544
      %4546 = vrot.lane.b32.xlu0 %v3701, 94
      %v4547 = vpop.permute.xlu0 %4546
      %4548 = vrot.lane.b32.xlu0 %v3702, 94
      %v4549 = vpop.permute.xlu0 %4548
      %4550 = vrot.lane.b32.xlu0 %v3703, 94
      %v4551 = vpop.permute.xlu0 %4550
      %4552 = vrot.lane.b32.xlu0 %v3704, 94
      %v4553 = vpop.permute.xlu0 %4552
      %4554 = vrot.lane.b32.xlu0 %v3705, 94
      %v4555 = vpop.permute.xlu0 %4554
      %4556 = vrot.lane.b32.xlu0 %v3706, 94
      %v4557 = vpop.permute.xlu0 %4556
      %4558 = vrot.lane.b32.xlu0 %v3707, 94
      %v4559 = vpop.permute.xlu0 %4558
      %4560 = vrot.lane.b32.xlu0 %v3708, 94
      %v4561 = vpop.permute.xlu0 %4560
      %4562 = vrot.lane.b32.xlu0 %v3709, 94
      %v4563 = vpop.permute.xlu0 %4562
      %4564 = vrot.lane.b32.xlu0 %v3710, 94
      %v4565 = vpop.permute.xlu0 %4564
      %4566 = vrot.lane.b32.xlu0 %v3711, 94
      %v4567 = vpop.permute.xlu0 %4566
      %4568 = vrot.lane.b32.xlu0 %v3712, 94
      %v4569 = vpop.permute.xlu0 %4568
      %4570 = vrot.lane.b32.xlu0 %v3713, 94
      %v4571 = vpop.permute.xlu0 %4570
      %4572 = vrot.lane.b32.xlu0 %v3714, 94
      %v4573 = vpop.permute.xlu0 %4572
      %4574 = vrot.lane.b32.xlu0 %v3715, 94
      %v4575 = vpop.permute.xlu0 %4574
      %4576 = vrot.lane.b32.xlu0 %v3716, 94
      %v4577 = vpop.permute.xlu0 %4576
      %4578 = vrot.lane.b32.xlu0 %v3717, 94
      %v4579 = vpop.permute.xlu0 %4578
      %4580 = vrot.lane.b32.xlu0 %v3718, 94
      %v4581 = vpop.permute.xlu0 %4580
      %4582 = vrot.lane.b32.xlu0 %v3719, 94
      %v4583 = vpop.permute.xlu0 %4582
      %4584 = vrot.lane.b32.xlu0 %v3720, 94
      %v4585 = vpop.permute.xlu0 %4584
      %4586 = vrot.lane.b32.xlu0 %v3721, 94
      %v4587 = vpop.permute.xlu0 %4586
      %4588 = vrot.lane.b32.xlu0 %v3722, 94
      %v4589 = vpop.permute.xlu0 %4588
      %4590 = vrot.lane.b32.xlu0 %v3723, 94
      %v4591 = vpop.permute.xlu0 %4590
      %4592 = vrot.lane.b32.xlu0 %v3724, 94
      %v4593 = vpop.permute.xlu0 %4592
      %4594 = vrot.lane.b32.xlu0 %v3725, 94
      %v4595 = vpop.permute.xlu0 %4594
      %v4596 = vsel %vm1059, %v4525, %v4527
      %v4597 = vsel %vm1059, %v4527, %v4529
      %v4598 = vsel %vm1059, %v4529, %v4531
      %v4599 = vsel %vm1059, %v4531, %v4533
      %v4600 = vsel %vm1059, %v4533, %v4535
      %v4601 = vsel %vm1059, %v4535, %v4537
      %v4602 = vsel %vm1059, %v4537, %v4539
      %v4603 = vsel %vm1059, %v4539, %v4541
      %v4604 = vsel %vm1059, %v4543, %v4545
      %v4605 = vsel %vm1059, %v4545, %v4547
      %v4606 = vsel %vm1059, %v4547, %v4549
      %v4607 = vsel %vm1059, %v4549, %v4551
      %v4608 = vsel %vm1059, %v4551, %v4553
      %v4609 = vsel %vm1059, %v4553, %v4555
      %v4610 = vsel %vm1059, %v4555, %v4557
      %v4611 = vsel %vm1059, %v4557, %v4559
      %v4612 = vsel %vm1059, %v4561, %v4563
      %v4613 = vsel %vm1059, %v4563, %v4565
      %v4614 = vsel %vm1059, %v4565, %v4567
      %v4615 = vsel %vm1059, %v4567, %v4569
      %v4616 = vsel %vm1059, %v4569, %v4571
      %v4617 = vsel %vm1059, %v4571, %v4573
      %v4618 = vsel %vm1059, %v4573, %v4575
      %v4619 = vsel %vm1059, %v4575, %v4577
      %v4620 = vsel %vm1059, %v4579, %v4581
      %v4621 = vsel %vm1059, %v4581, %v4583
      %v4622 = vsel %vm1059, %v4583, %v4585
      %v4623 = vsel %vm1059, %v4585, %v4587
      %v4624 = vsel %vm1059, %v4587, %v4589
      %v4625 = vsel %vm1059, %v4589, %v4591
      %v4626 = vsel %vm1059, %v4591, %v4593
      %v4627 = vsel %vm1059, %v4593, %v4595
      %4696 = vrot.lane.b32.xlu0 %v3759, 64
      %v4697 = vpop.permute.xlu0 %4696
      %4698 = vrot.lane.b32.xlu0 %v3760, 64
      %v4699 = vpop.permute.xlu0 %4698
      %4700 = vrot.lane.b32.xlu0 %v3761, 64
      %v4701 = vpop.permute.xlu0 %4700
      %4702 = vrot.lane.b32.xlu0 %v3762, 64
      %v4703 = vpop.permute.xlu0 %4702
      %4704 = vrot.lane.b32.xlu0 %v3763, 64
      %v4705 = vpop.permute.xlu0 %4704
      %4706 = vrot.lane.b32.xlu0 %v3764, 64
      %v4707 = vpop.permute.xlu0 %4706
      %4708 = vrot.lane.b32.xlu0 %v3765, 64
      %v4709 = vpop.permute.xlu0 %4708
      %4710 = vrot.lane.b32.xlu0 %v3766, 64
      %v4711 = vpop.permute.xlu0 %4710
      %4712 = vrot.lane.b32.xlu0 %v3767, 64
      %v4713 = vpop.permute.xlu0 %4712
      %4714 = vrot.lane.b32.xlu0 %v3768, 64
      %v4715 = vpop.permute.xlu0 %4714
      %4716 = vrot.lane.b32.xlu0 %v3769, 64
      %v4717 = vpop.permute.xlu0 %4716
      %4718 = vrot.lane.b32.xlu0 %v3770, 64
      %v4719 = vpop.permute.xlu0 %4718
      %4720 = vrot.lane.b32.xlu0 %v3771, 64
      %v4721 = vpop.permute.xlu0 %4720
      %4722 = vrot.lane.b32.xlu0 %v3772, 64
      %v4723 = vpop.permute.xlu0 %4722
      %4724 = vrot.lane.b32.xlu0 %v3773, 64
      %v4725 = vpop.permute.xlu0 %4724
      %4726 = vrot.lane.b32.xlu0 %v3774, 64
      %v4727 = vpop.permute.xlu0 %4726
      %4728 = vrot.lane.b32.xlu0 %v3775, 64
      %v4729 = vpop.permute.xlu0 %4728
      %4730 = vrot.lane.b32.xlu0 %v3776, 64
      %v4731 = vpop.permute.xlu0 %4730
      %4732 = vrot.lane.b32.xlu0 %v3777, 64
      %v4733 = vpop.permute.xlu0 %4732
      %4734 = vrot.lane.b32.xlu0 %v3778, 64
      %v4735 = vpop.permute.xlu0 %4734
      %4736 = vrot.lane.b32.xlu0 %v3779, 64
      %v4737 = vpop.permute.xlu0 %4736
      %4738 = vrot.lane.b32.xlu0 %v3780, 64
      %v4739 = vpop.permute.xlu0 %4738
      %4740 = vrot.lane.b32.xlu0 %v3781, 64
      %v4741 = vpop.permute.xlu0 %4740
      %4742 = vrot.lane.b32.xlu0 %v3782, 64
      %v4743 = vpop.permute.xlu0 %4742
      %4744 = vrot.lane.b32.xlu0 %v3783, 64
      %v4745 = vpop.permute.xlu0 %4744
      %4746 = vrot.lane.b32.xlu0 %v3784, 64
      %v4747 = vpop.permute.xlu0 %4746
      %4748 = vrot.lane.b32.xlu0 %v3785, 64
      %v4749 = vpop.permute.xlu0 %4748
      %4750 = vrot.lane.b32.xlu0 %v3786, 64
      %v4751 = vpop.permute.xlu0 %4750
      %4752 = vrot.lane.b32.xlu0 %v3787, 64
      %v4753 = vpop.permute.xlu0 %4752
      %4754 = vrot.lane.b32.xlu0 %v3788, 64
      %v4755 = vpop.permute.xlu0 %4754
      %4756 = vrot.lane.b32.xlu0 %v3789, 64
      %v4757 = vpop.permute.xlu0 %4756
      %4758 = vrot.lane.b32.xlu0 %v3790, 64
      %v4759 = vpop.permute.xlu0 %4758
      %4760 = vrot.lane.b32.xlu0 %v3791, 64
      %v4761 = vpop.permute.xlu0 %4760
      %4762 = vrot.lane.b32.xlu0 %v3792, 64
      %v4763 = vpop.permute.xlu0 %4762
      %4764 = vrot.lane.b32.xlu0 %v3793, 64
      %v4765 = vpop.permute.xlu0 %4764
      %4766 = vrot.lane.b32.xlu0 %v3794, 64
      %v4767 = vpop.permute.xlu0 %4766
      %v4768 = vsel %vm3742, %v4697, %v4699
      %v4769 = vsel %vm3742, %v4699, %v4701
      %v4770 = vsel %vm3742, %v4701, %v4703
      %v4771 = vsel %vm3742, %v4703, %v4705
      %v4772 = vsel %vm3742, %v4705, %v4707
      %v4773 = vsel %vm3742, %v4707, %v4709
      %v4774 = vsel %vm3742, %v4709, %v4711
      %v4775 = vsel %vm3742, %v4711, %v4713
      %v4776 = vsel %vm3742, %v4715, %v4717
      %v4777 = vsel %vm3742, %v4717, %v4719
      %v4778 = vsel %vm3742, %v4719, %v4721
      %v4779 = vsel %vm3742, %v4721, %v4723
      %v4780 = vsel %vm3742, %v4723, %v4725
      %v4781 = vsel %vm3742, %v4725, %v4727
      %v4782 = vsel %vm3742, %v4727, %v4729
      %v4783 = vsel %vm3742, %v4729, %v4731
      %v4784 = vsel %vm3742, %v4733, %v4735
      %v4785 = vsel %vm3742, %v4735, %v4737
      %v4786 = vsel %vm3742, %v4737, %v4739
      %v4787 = vsel %vm3742, %v4739, %v4741
      %v4788 = vsel %vm3742, %v4741, %v4743
      %v4789 = vsel %vm3742, %v4743, %v4745
      %v4790 = vsel %vm3742, %v4745, %v4747
      %v4791 = vsel %vm3742, %v4747, %v4749
      %v4792 = vsel %vm3742, %v4751, %v4753
      %v4793 = vsel %vm3742, %v4753, %v4755
      %v4794 = vsel %vm3742, %v4755, %v4757
      %v4795 = vsel %vm3742, %v4757, %v4759
      %v4796 = vsel %vm3742, %v4759, %v4761
      %v4797 = vsel %vm3742, %v4761, %v4763
      %v4798 = vsel %vm3742, %v4763, %v4765
      %v4799 = vsel %vm3742, %v4765, %v4767
      %4832 = vrot.lane.b32.xlu0 %v3229, 63
      %v4833 = vpop.permute.xlu0 %4832
      %4834 = vrot.lane.b32.xlu0 %v3171, 63
      %v4835 = vpop.permute.xlu0 %4834
      %4836 = vrot.lane.b32.xlu0 %v3172, 63
      %v4837 = vpop.permute.xlu0 %4836
      %4838 = vrot.lane.b32.xlu0 %v3173, 63
      %v4839 = vpop.permute.xlu0 %4838
      %4840 = vrot.lane.b32.xlu0 %v3174, 63
      %v4841 = vpop.permute.xlu0 %4840
      %4842 = vrot.lane.b32.xlu0 %v3175, 63
      %v4843 = vpop.permute.xlu0 %4842
      %4844 = vrot.lane.b32.xlu0 %v3176, 63
      %v4845 = vpop.permute.xlu0 %4844
      %4846 = vrot.lane.b32.xlu0 %v3177, 63
      %v4847 = vpop.permute.xlu0 %4846
      %4848 = vrot.lane.b32.xlu0 %v3241, 63
      %v4849 = vpop.permute.xlu0 %4848
      %4850 = vrot.lane.b32.xlu0 %v3232, 63
      %v4851 = vpop.permute.xlu0 %4850
      %4852 = vrot.lane.b32.xlu0 %v3178, 63
      %v4853 = vpop.permute.xlu0 %4852
      %4854 = vrot.lane.b32.xlu0 %v3179, 63
      %v4855 = vpop.permute.xlu0 %4854
      %4856 = vrot.lane.b32.xlu0 %v3180, 63
      %v4857 = vpop.permute.xlu0 %4856
      %4858 = vrot.lane.b32.xlu0 %v3181, 63
      %v4859 = vpop.permute.xlu0 %4858
      %4860 = vrot.lane.b32.xlu0 %v3182, 63
      %v4861 = vpop.permute.xlu0 %4860
      %4862 = vrot.lane.b32.xlu0 %v3183, 63
      %v4863 = vpop.permute.xlu0 %4862
      %4864 = vrot.lane.b32.xlu0 %v3184, 63
      %v4865 = vpop.permute.xlu0 %4864
      %4866 = vrot.lane.b32.xlu0 %v3244, 63
      %v4867 = vpop.permute.xlu0 %4866
      %4868 = vrot.lane.b32.xlu0 %v3235, 63
      %v4869 = vpop.permute.xlu0 %4868
      %4870 = vrot.lane.b32.xlu0 %v3185, 63
      %v4871 = vpop.permute.xlu0 %4870
      %4872 = vrot.lane.b32.xlu0 %v3186, 63
      %v4873 = vpop.permute.xlu0 %4872
      %4874 = vrot.lane.b32.xlu0 %v3187, 63
      %v4875 = vpop.permute.xlu0 %4874
      %4876 = vrot.lane.b32.xlu0 %v3188, 63
      %v4877 = vpop.permute.xlu0 %4876
      %4878 = vrot.lane.b32.xlu0 %v3189, 63
      %v4879 = vpop.permute.xlu0 %4878
      %4880 = vrot.lane.b32.xlu0 %v3190, 63
      %v4881 = vpop.permute.xlu0 %4880
      %4882 = vrot.lane.b32.xlu0 %v3191, 63
      %v4883 = vpop.permute.xlu0 %4882
      %4884 = vrot.lane.b32.xlu0 %v3247, 63
      %v4885 = vpop.permute.xlu0 %4884
      %4886 = vrot.lane.b32.xlu0 %v3238, 63
      %v4887 = vpop.permute.xlu0 %4886
      %4888 = vrot.lane.b32.xlu0 %v3192, 63
      %v4889 = vpop.permute.xlu0 %4888
      %4890 = vrot.lane.b32.xlu0 %v3193, 63
      %v4891 = vpop.permute.xlu0 %4890
      %4892 = vrot.lane.b32.xlu0 %v3194, 63
      %v4893 = vpop.permute.xlu0 %4892
      %4894 = vrot.lane.b32.xlu0 %v3195, 63
      %v4895 = vpop.permute.xlu0 %4894
      %4896 = vrot.lane.b32.xlu0 %v3196, 63
      %v4897 = vpop.permute.xlu0 %4896
      %4898 = vrot.lane.b32.xlu0 %v3197, 63
      %v4899 = vpop.permute.xlu0 %4898
      %4900 = vrot.lane.b32.xlu0 %v3198, 63
      %v4901 = vpop.permute.xlu0 %4900
      %4902 = vrot.lane.b32.xlu0 %v3250, 63
      %v4903 = vpop.permute.xlu0 %4902
      %vm4904 = vcmask 515072
      %v4905 = vsel %vm4904, %v4833, %v4835
      %v4906 = vsel %vm4904, %v4835, %v4837
      %v4907 = vsel %vm4904, %v4837, %v4839
      %v4908 = vsel %vm4904, %v4839, %v4841
      %v4909 = vsel %vm4904, %v4841, %v4843
      %v4910 = vsel %vm4904, %v4843, %v4845
      %v4911 = vsel %vm4904, %v4845, %v4847
      %v4912 = vsel %vm4904, %v4847, %v4849
      %v4913 = vsel %vm4904, %v4851, %v4853
      %v4914 = vsel %vm4904, %v4853, %v4855
      %v4915 = vsel %vm4904, %v4855, %v4857
      %v4916 = vsel %vm4904, %v4857, %v4859
      %v4917 = vsel %vm4904, %v4859, %v4861
      %v4918 = vsel %vm4904, %v4861, %v4863
      %v4919 = vsel %vm4904, %v4863, %v4865
      %v4920 = vsel %vm4904, %v4865, %v4867
      %v4921 = vsel %vm4904, %v4869, %v4871
      %v4922 = vsel %vm4904, %v4871, %v4873
      %v4923 = vsel %vm4904, %v4873, %v4875
      %v4924 = vsel %vm4904, %v4875, %v4877
      %v4925 = vsel %vm4904, %v4877, %v4879
      %v4926 = vsel %vm4904, %v4879, %v4881
      %v4927 = vsel %vm4904, %v4881, %v4883
      %v4928 = vsel %vm4904, %v4883, %v4885
      %v4929 = vsel %vm4904, %v4887, %v4889
      %v4930 = vsel %vm4904, %v4889, %v4891
      %v4931 = vsel %vm4904, %v4891, %v4893
      %v4932 = vsel %vm4904, %v4893, %v4895
      %v4933 = vsel %vm4904, %v4895, %v4897
      %v4934 = vsel %vm4904, %v4897, %v4899
      %v4935 = vsel %vm4904, %v4899, %v4901
      %v4936 = vsel %vm4904, %v4901, %v4903
      %5005 = vrot.lane.b32.xlu0 %v3828, 62
      %v5006 = vpop.permute.xlu0 %5005
      %5007 = vrot.lane.b32.xlu0 %v3829, 62
      %v5008 = vpop.permute.xlu0 %5007
      %5009 = vrot.lane.b32.xlu0 %v3830, 62
      %v5010 = vpop.permute.xlu0 %5009
      %5011 = vrot.lane.b32.xlu0 %v3831, 62
      %v5012 = vpop.permute.xlu0 %5011
      %5013 = vrot.lane.b32.xlu0 %v3832, 62
      %v5014 = vpop.permute.xlu0 %5013
      %5015 = vrot.lane.b32.xlu0 %v3833, 62
      %v5016 = vpop.permute.xlu0 %5015
      %5017 = vrot.lane.b32.xlu0 %v3834, 62
      %v5018 = vpop.permute.xlu0 %5017
      %5019 = vrot.lane.b32.xlu0 %v3835, 62
      %v5020 = vpop.permute.xlu0 %5019
      %5021 = vrot.lane.b32.xlu0 %v3836, 62
      %v5022 = vpop.permute.xlu0 %5021
      %5023 = vrot.lane.b32.xlu0 %v3837, 62
      %v5024 = vpop.permute.xlu0 %5023
      %5025 = vrot.lane.b32.xlu0 %v3838, 62
      %v5026 = vpop.permute.xlu0 %5025
      %5027 = vrot.lane.b32.xlu0 %v3839, 62
      %v5028 = vpop.permute.xlu0 %5027
      %5029 = vrot.lane.b32.xlu0 %v3840, 62
      %v5030 = vpop.permute.xlu0 %5029
      %5031 = vrot.lane.b32.xlu0 %v3841, 62
      %v5032 = vpop.permute.xlu0 %5031
      %5033 = vrot.lane.b32.xlu0 %v3842, 62
      %v5034 = vpop.permute.xlu0 %5033
      %5035 = vrot.lane.b32.xlu0 %v3843, 62
      %v5036 = vpop.permute.xlu0 %5035
      %5037 = vrot.lane.b32.xlu0 %v3844, 62
      %v5038 = vpop.permute.xlu0 %5037
      %5039 = vrot.lane.b32.xlu0 %v3845, 62
      %v5040 = vpop.permute.xlu0 %5039
      %5041 = vrot.lane.b32.xlu0 %v3846, 62
      %v5042 = vpop.permute.xlu0 %5041
      %5043 = vrot.lane.b32.xlu0 %v3847, 62
      %v5044 = vpop.permute.xlu0 %5043
      %5045 = vrot.lane.b32.xlu0 %v3848, 62
      %v5046 = vpop.permute.xlu0 %5045
      %5047 = vrot.lane.b32.xlu0 %v3849, 62
      %v5048 = vpop.permute.xlu0 %5047
      %5049 = vrot.lane.b32.xlu0 %v3850, 62
      %v5050 = vpop.permute.xlu0 %5049
      %5051 = vrot.lane.b32.xlu0 %v3851, 62
      %v5052 = vpop.permute.xlu0 %5051
      %5053 = vrot.lane.b32.xlu0 %v3852, 62
      %v5054 = vpop.permute.xlu0 %5053
      %5055 = vrot.lane.b32.xlu0 %v3853, 62
      %v5056 = vpop.permute.xlu0 %5055
      %5057 = vrot.lane.b32.xlu0 %v3854, 62
      %v5058 = vpop.permute.xlu0 %5057
      %5059 = vrot.lane.b32.xlu0 %v3855, 62
      %v5060 = vpop.permute.xlu0 %5059
      %5061 = vrot.lane.b32.xlu0 %v3856, 62
      %v5062 = vpop.permute.xlu0 %5061
      %5063 = vrot.lane.b32.xlu0 %v3857, 62
      %v5064 = vpop.permute.xlu0 %5063
      %5065 = vrot.lane.b32.xlu0 %v3858, 62
      %v5066 = vpop.permute.xlu0 %5065
      %5067 = vrot.lane.b32.xlu0 %v3859, 62
      %v5068 = vpop.permute.xlu0 %5067
      %5069 = vrot.lane.b32.xlu0 %v3860, 62
      %v5070 = vpop.permute.xlu0 %5069
      %5071 = vrot.lane.b32.xlu0 %v3861, 62
      %v5072 = vpop.permute.xlu0 %5071
      %5073 = vrot.lane.b32.xlu0 %v3862, 62
      %v5074 = vpop.permute.xlu0 %5073
      %5075 = vrot.lane.b32.xlu0 %v3863, 62
      %v5076 = vpop.permute.xlu0 %5075
      %vm5077 = vcmask 506880
      %v5078 = vsel %vm5077, %v5006, %v5008
      %v5079 = vsel %vm5077, %v5008, %v5010
      %v5080 = vsel %vm5077, %v5010, %v5012
      %v5081 = vsel %vm5077, %v5012, %v5014
      %v5082 = vsel %vm5077, %v5014, %v5016
      %v5083 = vsel %vm5077, %v5016, %v5018
      %v5084 = vsel %vm5077, %v5018, %v5020
      %v5085 = vsel %vm5077, %v5020, %v5022
      %v5086 = vsel %vm5077, %v5024, %v5026
      %v5087 = vsel %vm5077, %v5026, %v5028
      %v5088 = vsel %vm5077, %v5028, %v5030
      %v5089 = vsel %vm5077, %v5030, %v5032
      %v5090 = vsel %vm5077, %v5032, %v5034
      %v5091 = vsel %vm5077, %v5034, %v5036
      %v5092 = vsel %vm5077, %v5036, %v5038
      %v5093 = vsel %vm5077, %v5038, %v5040
      %v5094 = vsel %vm5077, %v5042, %v5044
      %v5095 = vsel %vm5077, %v5044, %v5046
      %v5096 = vsel %vm5077, %v5046, %v5048
      %v5097 = vsel %vm5077, %v5048, %v5050
      %v5098 = vsel %vm5077, %v5050, %v5052
      %v5099 = vsel %vm5077, %v5052, %v5054
      %v5100 = vsel %vm5077, %v5054, %v5056
      %v5101 = vsel %vm5077, %v5056, %v5058
      %v5102 = vsel %vm5077, %v5060, %v5062
      %v5103 = vsel %vm5077, %v5062, %v5064
      %v5104 = vsel %vm5077, %v5064, %v5066
      %v5105 = vsel %vm5077, %v5066, %v5068
      %v5106 = vsel %vm5077, %v5068, %v5070
      %v5107 = vsel %vm5077, %v5070, %v5072
      %v5108 = vsel %vm5077, %v5072, %v5074
      %v5109 = vsel %vm5077, %v5074, %v5076
      %v5142 = vld [vmem:[%s7] sm:$0x1f]
      %v5143 = vld [vmem:[#allocation2] sm:$0x1]
      %5145 = vset.pattern.permute.xlu0 0
      %5146 = vperm.xlu0 %5145, %v5143
      %v5147 = vpop.permute.xlu0 %5146
      %v5149 = vlaneseq
      %v5150 = vshrl.u32 %v5149, 7
      %v5151 = vsub.s32 0, %v5150
      %v5152 = vrot.slane %v5147, %v5151
      %v5154 = vcombine.high %v5142, %v5142
      %v5156 = vunpack.c.l.s4 1966171168
      %v5157 = vunpack.c.0.s8 %v5156
      %v5158 = vlaneseq
      %v5159 = vshrl.u32 %v5158, 7
      %v5160 = vsub.s32 %v5157, %v5159
      %v5161 = vrot.slane %v5142, %v5160
      %v5163 = vunpack.c.l.s4 1966171168
      %v5164 = vunpack.c.0.s8 %v5163
      %v5165 = vlaneseq
      %v5166 = vshrl.u32 %v5165, 7
      %v5167 = vsub.s32 %v5164, %v5166
      %v5168 = vrot.slane %v5154, %v5167
      %v5169 = vcombine.high %v5161, %v5161
      %v5171 = vunpack.c.l.s4 1966171168
      %v5172 = vunpack.c.0.s8 %v5171
      %v5173 = vlaneseq
      %v5174 = vshrl.u32 %v5173, 7
      %v5175 = vsub.s32 %v5172, %v5174
      %v5176 = vrot.slane %v5161, %v5175
      %v5178 = vunpack.c.l.s4 1966171168
      %v5179 = vunpack.c.0.s8 %v5178
      %v5180 = vlaneseq
      %v5181 = vshrl.u32 %v5180, 7
      %v5182 = vsub.s32 %v5179, %v5181
      %v5183 = vrot.slane %v5168, %v5182
      %v5185 = vunpack.c.l.s4 1966171168
      %v5186 = vunpack.c.0.s8 %v5185
      %v5187 = vlaneseq
      %v5188 = vshrl.u32 %v5187, 7
      %v5189 = vsub.s32 %v5186, %v5188
      %v5190 = vrot.slane %v5169, %v5189
      %v5191 = vcombine.high %v5176, %v5176
      %v5192 = vcombine.high %v5190, %v5190
      %v5198 = vsel %vm795, %v5183, 0
      %5200 = vmatprep.subr.bf16.mxu0 %v3435
      %5201 = vmatpush1.bf16.msra.mxu0 %v3434
      %5202 = vmatprep.subr.bf16.mxu0 %v3443
      %5203 = vmatpush1.bf16.msra.mxu0 %v3442
      %5204 = vmatprep.subr.bf16.mxu0 %v3451
      %5205 = vmatpush1.bf16.msra.mxu0 %v3450
      %5206 = vmatprep.subr.bf16.mxu0 %v3459
      %5207 = vmatpush1.bf16.msra.mxu0 %v3458
      %5208 = vmatprep.subr.bf16.mxu0 %v3945
      %5209 = vmatpush1.bf16.msra.mxu0 %v3944
      %5210 = vmatprep.subr.bf16.mxu0 %v3953
      %5211 = vmatpush1.bf16.msra.mxu0 %v3952
      %5212 = vmatprep.subr.bf16.mxu0 %v3961
      %5213 = vmatpush1.bf16.msra.mxu0 %v3960
      %5214 = vmatprep.subr.bf16.mxu0 %v3969
      %5215 = vmatpush1.bf16.msra.mxu0 %v3968
      %5216 = vmatprep.subr.bf16.mxu0 %v4117
      %5217 = vmatpush1.bf16.msra.mxu0 %v4116
      %5218 = vmatprep.subr.bf16.mxu0 %v4125
      %5219 = vmatpush1.bf16.msra.mxu0 %v4124
      %5220 = vmatprep.subr.bf16.mxu0 %v4133
      %5221 = vmatpush1.bf16.msra.mxu0 %v4132
      %5222 = vmatprep.subr.bf16.mxu0 %v4141
      %5223 = vmatpush1.bf16.msra.mxu0 %v4140
      %5224 = vmatprep.subr.bf16.mxu0 %v4289
      %5225 = vmatpush1.bf16.msra.mxu0 %v4288
      %5226 = vmatprep.subr.bf16.mxu0 %v4297
      %5227 = vmatpush1.bf16.msra.mxu0 %v4296
      %5228 = vmatprep.subr.bf16.mxu0 %v4305
      %5229 = vmatpush1.bf16.msra.mxu0 %v4304
      %5230 = vmatprep.subr.bf16.mxu0 %v4313
      %5231 = vmatpush1.bf16.msra.mxu0 %v4312
      %5232 = vmatprep.mubr.bf16.mxu0 %v5190
      %5233 = vmatmul.mubr.bf16.gmra.mrb[0].mxu0 %v5176
      %v5234 = vpop.f32.mrb[0].mxu0
      %v5235 = vadd.f32 %v5152, %v5234
      %v5236 = vpop.f32.mrb[0].mxu0
      %v5237 = vadd.f32 %v5152, %v5236
      %v5238 = vpop.f32.mrb[0].mxu0
      %v5239 = vpop.f32.mrb[0].mxu0
      %5240 = vdwg.mxu0
      %5241 = vmatprep.subr.bf16.mxu0 %v4425
      %5242 = vmatpush1.bf16.msra.mxu0 %v4424
      %5243 = vmatprep.subr.bf16.mxu0 %v4433
      %5244 = vmatpush1.bf16.msra.mxu0 %v4432
      %5245 = vmatprep.subr.bf16.mxu0 %v4441
      %5246 = vmatpush1.bf16.msra.mxu0 %v4440
      %5247 = vmatprep.subr.bf16.mxu0 %v4449
      %5248 = vmatpush1.bf16.msra.mxu0 %v4448
      %5249 = vmatprep.subr.bf16.mxu0 %v4597
      %5250 = vmatpush1.bf16.msra.mxu0 %v4596
      %5251 = vmatprep.subr.bf16.mxu0 %v4605
      %5252 = vmatpush1.bf16.msra.mxu0 %v4604
      %5253 = vmatprep.subr.bf16.mxu0 %v4613
      %5254 = vmatpush1.bf16.msra.mxu0 %v4612
      %5255 = vmatprep.subr.bf16.mxu0 %v4621
      %5256 = vmatpush1.bf16.msra.mxu0 %v4620
      %5257 = vmatprep.subr.bf16.mxu0 %v4769
      %5258 = vmatpush1.bf16.msra.mxu0 %v4768
      %5259 = vmatprep.subr.bf16.mxu0 %v4777
      %5260 = vmatpush1.bf16.msra.mxu0 %v4776
      %5261 = vmatprep.subr.bf16.mxu0 %v4785
      %5262 = vmatpush1.bf16.msra.mxu0 %v4784
      %5263 = vmatprep.subr.bf16.mxu0 %v4793
      %5264 = vmatpush1.bf16.msra.mxu0 %v4792
      %5265 = vmatprep.subr.bf16.mxu0 %v4906
      %5266 = vmatpush1.bf16.msra.mxu0 %v4905
      %5267 = vmatprep.subr.bf16.mxu0 %v4914
      %5268 = vmatpush1.bf16.msra.mxu0 %v4913
      %5269 = vmatprep.subr.bf16.mxu0 %v4922
      %5270 = vmatpush1.bf16.msra.mxu0 %v4921
      %5271 = vmatprep.subr.bf16.mxu0 %v4930
      %5272 = vmatpush1.bf16.msra.mxu0 %v4929
      %5273 = vmatprep.mubr.bf16.mxu0 %v5192
      %5274 = vmatmul.mubr.bf16.gmra.mrb[0].mxu0 %v5191
      %v5275 = vpop.f32.mrb[0].mxu0
      %v5276 = vadd.f32 %v5235, %v5275
      %v5277 = vpop.f32.mrb[0].mxu0
      %v5278 = vadd.f32 %v5237, %v5277
      %v5279 = vpop.f32.mrb[0].mxu0
      %v5280 = vpop.f32.mrb[0].mxu0
      %5281 = vdwg.mxu0
      %5282 = vmatprep.subr.bf16.mxu0 %v5079
      %5283 = vmatpush1.bf16.msra.mxu0 %v5078
      %5284 = vmatprep.subr.bf16.mxu0 %v5087
      %5285 = vmatpush1.bf16.msra.mxu0 %v5086
      %5286 = vmatprep.subr.bf16.mxu0 %v5095
      %5287 = vmatpush1.bf16.msra.mxu0 %v5094
      %5288 = vmatprep.subr.bf16.mxu0 %v5103
      %5289 = vmatpush1.bf16.msra.mxu0 %v5102
      %5290 = vmatprep.subr.bf16.mxu0 0
      %5291 = vmatpush1.bf16.msra.mxu0 0
      %5292 = vmatprep.subr.bf16.mxu0 0
      %5293 = vmatpush1.bf16.msra.mxu0 0
      %5294 = vmatprep.subr.bf16.mxu0 0
      %5295 = vmatpush1.bf16.msra.mxu0 0
      %5296 = vmatprep.subr.bf16.mxu0 0
      %5297 = vmatpush1.bf16.msra.mxu0 0
      %5298 = vmatprep.subr.bf16.mxu0 0
      %5299 = vmatpush1.bf16.msra.mxu0 0
      %5300 = vmatprep.subr.bf16.mxu0 0
      %5301 = vmatpush1.bf16.msra.mxu0 0
      %5302 = vmatprep.subr.bf16.mxu0 0
      %5303 = vmatpush1.bf16.msra.mxu0 0
      %5304 = vmatprep.subr.bf16.mxu0 0
      %5305 = vmatpush1.bf16.msra.mxu0 0
      %5306 = vmatprep.subr.bf16.mxu0 0
      %5307 = vmatpush1.bf16.msra.mxu0 0
      %5308 = vmatprep.subr.bf16.mxu0 0
      %5309 = vmatpush1.bf16.msra.mxu0 0
      %5310 = vmatprep.subr.bf16.mxu0 0
      %5311 = vmatpush1.bf16.msra.mxu0 0
      %5312 = vmatprep.subr.bf16.mxu0 0
      %5313 = vmatpush1.bf16.msra.mxu0 0
      %5314 = vmatprep.mubr.bf16.mxu0 0
      %5315 = vmatmul.mubr.bf16.gmra.mrb[0].mxu0 %v5198
      %v5316 = vpop.f32.mrb[0].mxu0
      %v5317 = vadd.f32 %v5276, %v5316
      %v5318 = vpop.f32.mrb[0].mxu0
      %v5319 = vadd.f32 %v5278, %v5318
      %v5320 = vpop.f32.mrb[0].mxu0
      %v5321 = vpop.f32.mrb[0].mxu0
      %5322 = vdwg.mxu0
      %5323 = vmatprep.subr.bf16.mxu0 %v3437
      %5324 = vmatpush1.bf16.msra.mxu0 %v3436
      %5325 = vmatprep.subr.bf16.mxu0 %v3445
      %5326 = vmatpush1.bf16.msra.mxu0 %v3444
      %5327 = vmatprep.subr.bf16.mxu0 %v3453
      %5328 = vmatpush1.bf16.msra.mxu0 %v3452
      %5329 = vmatprep.subr.bf16.mxu0 %v3461
      %5330 = vmatpush1.bf16.msra.mxu0 %v3460
      %5331 = vmatprep.subr.bf16.mxu0 %v3947
      %5332 = vmatpush1.bf16.msra.mxu0 %v3946
      %5333 = vmatprep.subr.bf16.mxu0 %v3955
      %5334 = vmatpush1.bf16.msra.mxu0 %v3954
      %5335 = vmatprep.subr.bf16.mxu0 %v3963
      %5336 = vmatpush1.bf16.msra.mxu0 %v3962
      %5337 = vmatprep.subr.bf16.mxu0 %v3971
      %5338 = vmatpush1.bf16.msra.mxu0 %v3970
      %5339 = vmatprep.subr.bf16.mxu0 %v4119
      %5340 = vmatpush1.bf16.msra.mxu0 %v4118
      %5341 = vmatprep.subr.bf16.mxu0 %v4127
      %5342 = vmatpush1.bf16.msra.mxu0 %v4126
      %5343 = vmatprep.subr.bf16.mxu0 %v4135
      %5344 = vmatpush1.bf16.msra.mxu0 %v4134
      %5345 = vmatprep.subr.bf16.mxu0 %v4143
      %5346 = vmatpush1.bf16.msra.mxu0 %v4142
      %5347 = vmatprep.subr.bf16.mxu0 %v4291
      %5348 = vmatpush1.bf16.msra.mxu0 %v4290
      %5349 = vmatprep.subr.bf16.mxu0 %v4299
      %5350 = vmatpush1.bf16.msra.mxu0 %v4298
      %5351 = vmatprep.subr.bf16.mxu0 %v4307
      %5352 = vmatpush1.bf16.msra.mxu0 %v4306
      %5353 = vmatprep.subr.bf16.mxu0 %v4315
      %5354 = vmatpush1.bf16.msra.mxu0 %v4314
      %5355 = vmatprep.mubr.bf16.mxu0 %v5190
      %5356 = vmatmul.mubr.bf16.gmra.mrb[0].mxu0 %v5176
      %v5357 = vpop.f32.mrb[0].mxu0
      %v5358 = vadd.f32 %v5152, %v5357
      %v5359 = vpop.f32.mrb[0].mxu0
      %v5360 = vadd.f32 %v5152, %v5359
      %v5361 = vpop.f32.mrb[0].mxu0
      %v5362 = vpop.f32.mrb[0].mxu0
      %5363 = vdwg.mxu0
      %5364 = vmatprep.subr.bf16.mxu0 %v4427
      %5365 = vmatpush1.bf16.msra.mxu0 %v4426
      %5366 = vmatprep.subr.bf16.mxu0 %v4435
      %5367 = vmatpush1.bf16.msra.mxu0 %v4434
      %5368 = vmatprep.subr.bf16.mxu0 %v4443
      %5369 = vmatpush1.bf16.msra.mxu0 %v4442
      %5370 = vmatprep.subr.bf16.mxu0 %v4451
      %5371 = vmatpush1.bf16.msra.mxu0 %v4450
      %5372 = vmatprep.subr.bf16.mxu0 %v4599
      %5373 = vmatpush1.bf16.msra.mxu0 %v4598
      %5374 = vmatprep.subr.bf16.mxu0 %v4607
      %5375 = vmatpush1.bf16.msra.mxu0 %v4606
      %5376 = vmatprep.subr.bf16.mxu0 %v4615
      %5377 = vmatpush1.bf16.msra.mxu0 %v4614
      %5378 = vmatprep.subr.bf16.mxu0 %v4623
      %5379 = vmatpush1.bf16.msra.mxu0 %v4622
      %5380 = vmatprep.subr.bf16.mxu0 %v4771
      %5381 = vmatpush1.bf16.msra.mxu0 %v4770
      %5382 = vmatprep.subr.bf16.mxu0 %v4779
      %5383 = vmatpush1.bf16.msra.mxu0 %v4778
      %5384 = vmatprep.subr.bf16.mxu0 %v4787
      %5385 = vmatpush1.bf16.msra.mxu0 %v4786
      %5386 = vmatprep.subr.bf16.mxu0 %v4795
      %5387 = vmatpush1.bf16.msra.mxu0 %v4794
      %5388 = vmatprep.subr.bf16.mxu0 %v4908
      %5389 = vmatpush1.bf16.msra.mxu0 %v4907
      %5390 = vmatprep.subr.bf16.mxu0 %v4916
      %5391 = vmatpush1.bf16.msra.mxu0 %v4915
      %5392 = vmatprep.subr.bf16.mxu0 %v4924
      %5393 = vmatpush1.bf16.msra.mxu0 %v4923
      %5394 = vmatprep.subr.bf16.mxu0 %v4932
      %5395 = vmatpush1.bf16.msra.mxu0 %v4931
      %5396 = vmatprep.mubr.bf16.mxu0 %v5192
      %5397 = vmatmul.mubr.bf16.gmra.mrb[0].mxu0 %v5191
      %v5398 = vpop.f32.mrb[0].mxu0
      %v5399 = vadd.f32 %v5358, %v5398
      %v5400 = vpop.f32.mrb[0].mxu0
      %v5401 = vadd.f32 %v5360, %v5400
      %v5402 = vpop.f32.mrb[0].mxu0
      %v5403 = vpop.f32.mrb[0].mxu0
      %5404 = vdwg.mxu0
      %5405 = vmatprep.subr.bf16.mxu0 %v5081
      %5406 = vmatpush1.bf16.msra.mxu0 %v5080
      %5407 = vmatprep.subr.bf16.mxu0 %v5089
      %5408 = vmatpush1.bf16.msra.mxu0 %v5088
      %5409 = vmatprep.subr.bf16.mxu0 %v5097
      %5410 = vmatpush1.bf16.msra.mxu0 %v5096
      %5411 = vmatprep.subr.bf16.mxu0 %v5105
      %5412 = vmatpush1.bf16.msra.mxu0 %v5104
      %5413 = vmatprep.subr.bf16.mxu0 0
      %5414 = vmatpush1.bf16.msra.mxu0 0
      %5415 = vmatprep.subr.bf16.mxu0 0
      %5416 = vmatpush1.bf16.msra.mxu0 0
      %5417 = vmatprep.subr.bf16.mxu0 0
      %5418 = vmatpush1.bf16.msra.mxu0 0
      %5419 = vmatprep.subr.bf16.mxu0 0
      %5420 = vmatpush1.bf16.msra.mxu0 0
      %5421 = vmatprep.subr.bf16.mxu0 0
      %5422 = vmatpush1.bf16.msra.mxu0 0
      %5423 = vmatprep.subr.bf16.mxu0 0
      %5424 = vmatpush1.bf16.msra.mxu0 0
      %5425 = vmatprep.subr.bf16.mxu0 0
      %5426 = vmatpush1.bf16.msra.mxu0 0
      %5427 = vmatprep.subr.bf16.mxu0 0
      %5428 = vmatpush1.bf16.msra.mxu0 0
      %5429 = vmatprep.subr.bf16.mxu0 0
      %5430 = vmatpush1.bf16.msra.mxu0 0
      %5431 = vmatprep.subr.bf16.mxu0 0
      %5432 = vmatpush1.bf16.msra.mxu0 0
      %5433 = vmatprep.subr.bf16.mxu0 0
      %5434 = vmatpush1.bf16.msra.mxu0 0
      %5435 = vmatprep.subr.bf16.mxu0 0
      %5436 = vmatpush1.bf16.msra.mxu0 0
      %5437 = vmatprep.mubr.bf16.mxu0 0
      %5438 = vmatmul.mubr.bf16.gmra.mrb[0].mxu0 %v5198
      %v5439 = vpop.f32.mrb[0].mxu0
      %v5440 = vadd.f32 %v5399, %v5439
      %v5441 = vpop.f32.mrb[0].mxu0
      %v5442 = vadd.f32 %v5401, %v5441
      %v5443 = vpop.f32.mrb[0].mxu0
      %v5444 = vpop.f32.mrb[0].mxu0
      %5445 = vdwg.mxu0
      %5446 = vmatprep.subr.bf16.mxu0 %v3439
      %5447 = vmatpush1.bf16.msra.mxu0 %v3438
      %5448 = vmatprep.subr.bf16.mxu0 %v3447
      %5449 = vmatpush1.bf16.msra.mxu0 %v3446
      %5450 = vmatprep.subr.bf16.mxu0 %v3455
      %5451 = vmatpush1.bf16.msra.mxu0 %v3454
      %5452 = vmatprep.subr.bf16.mxu0 %v3463
      %5453 = vmatpush1.bf16.msra.mxu0 %v3462
      %5454 = vmatprep.subr.bf16.mxu0 %v3949
      %5455 = vmatpush1.bf16.msra.mxu0 %v3948
      %5456 = vmatprep.subr.bf16.mxu0 %v3957
      %5457 = vmatpush1.bf16.msra.mxu0 %v3956
      %5458 = vmatprep.subr.bf16.mxu0 %v3965
      %5459 = vmatpush1.bf16.msra.mxu0 %v3964
      %5460 = vmatprep.subr.bf16.mxu0 %v3973
      %5461 = vmatpush1.bf16.msra.mxu0 %v3972
      %5462 = vmatprep.subr.bf16.mxu0 %v4121
      %5463 = vmatpush1.bf16.msra.mxu0 %v4120
      %5464 = vmatprep.subr.bf16.mxu0 %v4129
      %5465 = vmatpush1.bf16.msra.mxu0 %v4128
      %5466 = vmatprep.subr.bf16.mxu0 %v4137
      %5467 = vmatpush1.bf16.msra.mxu0 %v4136
      %5468 = vmatprep.subr.bf16.mxu0 %v4145
      %5469 = vmatpush1.bf16.msra.mxu0 %v4144
      %5470 = vmatprep.subr.bf16.mxu0 %v4293
      %5471 = vmatpush1.bf16.msra.mxu0 %v4292
      %5472 = vmatprep.subr.bf16.mxu0 %v4301
      %5473 = vmatpush1.bf16.msra.mxu0 %v4300
      %5474 = vmatprep.subr.bf16.mxu0 %v4309
      %5475 = vmatpush1.bf16.msra.mxu0 %v4308
      %5476 = vmatprep.subr.bf16.mxu0 %v4317
      %5477 = vmatpush1.bf16.msra.mxu0 %v4316
      %5478 = vmatprep.mubr.bf16.mxu0 %v5190
      %5479 = vmatmul.mubr.bf16.gmra.mrb[0].mxu0 %v5176
      %v5480 = vpop.f32.mrb[0].mxu0
      %v5481 = vadd.f32 %v5152, %v5480
      %v5482 = vpop.f32.mrb[0].mxu0
      %v5483 = vadd.f32 %v5152, %v5482
      %v5484 = vpop.f32.mrb[0].mxu0
      %v5485 = vpop.f32.mrb[0].mxu0
      %5486 = vdwg.mxu0
      %5487 = vmatprep.subr.bf16.mxu0 %v4429
      %5488 = vmatpush1.bf16.msra.mxu0 %v4428
      %5489 = vmatprep.subr.bf16.mxu0 %v4437
      %5490 = vmatpush1.bf16.msra.mxu0 %v4436
      %5491 = vmatprep.subr.bf16.mxu0 %v4445
      %5492 = vmatpush1.bf16.msra.mxu0 %v4444
      %5493 = vmatprep.subr.bf16.mxu0 %v4453
      %5494 = vmatpush1.bf16.msra.mxu0 %v4452
      %5495 = vmatprep.subr.bf16.mxu0 %v4601
      %5496 = vmatpush1.bf16.msra.mxu0 %v4600
      %5497 = vmatprep.subr.bf16.mxu0 %v4609
      %5498 = vmatpush1.bf16.msra.mxu0 %v4608
      %5499 = vmatprep.subr.bf16.mxu0 %v4617
      %5500 = vmatpush1.bf16.msra.mxu0 %v4616
      %5501 = vmatprep.subr.bf16.mxu0 %v4625
      %5502 = vmatpush1.bf16.msra.mxu0 %v4624
      %5503 = vmatprep.subr.bf16.mxu0 %v4773
      %5504 = vmatpush1.bf16.msra.mxu0 %v4772
      %5505 = vmatprep.subr.bf16.mxu0 %v4781
      %5506 = vmatpush1.bf16.msra.mxu0 %v4780
      %5507 = vmatprep.subr.bf16.mxu0 %v4789
      %5508 = vmatpush1.bf16.msra.mxu0 %v4788
      %5509 = vmatprep.subr.bf16.mxu0 %v4797
      %5510 = vmatpush1.bf16.msra.mxu0 %v4796
      %5511 = vmatprep.subr.bf16.mxu0 %v4910
      %5512 = vmatpush1.bf16.msra.mxu0 %v4909
      %5513 = vmatprep.subr.bf16.mxu0 %v4918
      %5514 = vmatpush1.bf16.msra.mxu0 %v4917
      %5515 = vmatprep.subr.bf16.mxu0 %v4926
      %5516 = vmatpush1.bf16.msra.mxu0 %v4925
      %5517 = vmatprep.subr.bf16.mxu0 %v4934
      %5518 = vmatpush1.bf16.msra.mxu0 %v4933
      %5519 = vmatprep.mubr.bf16.mxu0 %v5192
      %5520 = vmatmul.mubr.bf16.gmra.mrb[0].mxu0 %v5191
      %v5521 = vpop.f32.mrb[0].mxu0
      %v5522 = vadd.f32 %v5481, %v5521
      %v5523 = vpop.f32.mrb[0].mxu0
      %v5524 = vadd.f32 %v5483, %v5523
      %v5525 = vpop.f32.mrb[0].mxu0
      %v5526 = vpop.f32.mrb[0].mxu0
      %5527 = vdwg.mxu0
      %5528 = vmatprep.subr.bf16.mxu0 %v5083
      %5529 = vmatpush1.bf16.msra.mxu0 %v5082
      %5530 = vmatprep.subr.bf16.mxu0 %v5091
      %5531 = vmatpush1.bf16.msra.mxu0 %v5090
      %5532 = vmatprep.subr.bf16.mxu0 %v5099
      %5533 = vmatpush1.bf16.msra.mxu0 %v5098
      %5534 = vmatprep.subr.bf16.mxu0 %v5107
      %5535 = vmatpush1.bf16.msra.mxu0 %v5106
      %5536 = vmatprep.subr.bf16.mxu0 0
      %5537 = vmatpush1.bf16.msra.mxu0 0
      %5538 = vmatprep.subr.bf16.mxu0 0
      %5539 = vmatpush1.bf16.msra.mxu0 0
      %5540 = vmatprep.subr.bf16.mxu0 0
      %5541 = vmatpush1.bf16.msra.mxu0 0
      %5542 = vmatprep.subr.bf16.mxu0 0
      %5543 = vmatpush1.bf16.msra.mxu0 0
      %5544 = vmatprep.subr.bf16.mxu0 0
      %5545 = vmatpush1.bf16.msra.mxu0 0
      %5546 = vmatprep.subr.bf16.mxu0 0
      %5547 = vmatpush1.bf16.msra.mxu0 0
      %5548 = vmatprep.subr.bf16.mxu0 0
      %5549 = vmatpush1.bf16.msra.mxu0 0
      %5550 = vmatprep.subr.bf16.mxu0 0
      %5551 = vmatpush1.bf16.msra.mxu0 0
      %5552 = vmatprep.subr.bf16.mxu0 0
      %5553 = vmatpush1.bf16.msra.mxu0 0
      %5554 = vmatprep.subr.bf16.mxu0 0
      %5555 = vmatpush1.bf16.msra.mxu0 0
      %5556 = vmatprep.subr.bf16.mxu0 0
      %5557 = vmatpush1.bf16.msra.mxu0 0
      %5558 = vmatprep.subr.bf16.mxu0 0
      %5559 = vmatpush1.bf16.msra.mxu0 0
      %5560 = vmatprep.mubr.bf16.mxu0 0
      %5561 = vmatmul.mubr.bf16.gmra.mrb[0].mxu0 %v5198
      %v5562 = vpop.f32.mrb[0].mxu0
      %v5563 = vadd.f32 %v5522, %v5562
      %v5564 = vpop.f32.mrb[0].mxu0
      %v5565 = vadd.f32 %v5524, %v5564
      %v5566 = vpop.f32.mrb[0].mxu0
      %v5567 = vpop.f32.mrb[0].mxu0
      %5568 = vdwg.mxu0
      %5569 = vmatprep.subr.bf16.mxu0 %v3441
      %5570 = vmatpush1.bf16.msra.mxu0 %v3440
      %5571 = vmatprep.subr.bf16.mxu0 %v3449
      %5572 = vmatpush1.bf16.msra.mxu0 %v3448
      %5573 = vmatprep.subr.bf16.mxu0 %v3457
      %5574 = vmatpush1.bf16.msra.mxu0 %v3456
      %5575 = vmatprep.subr.bf16.mxu0 %v3465
      %5576 = vmatpush1.bf16.msra.mxu0 %v3464
      %5577 = vmatprep.subr.bf16.mxu0 %v3951
      %5578 = vmatpush1.bf16.msra.mxu0 %v3950
      %5579 = vmatprep.subr.bf16.mxu0 %v3959
      %5580 = vmatpush1.bf16.msra.mxu0 %v3958
      %5581 = vmatprep.subr.bf16.mxu0 %v3967
      %5582 = vmatpush1.bf16.msra.mxu0 %v3966
      %5583 = vmatprep.subr.bf16.mxu0 %v3975
      %5584 = vmatpush1.bf16.msra.mxu0 %v3974
      %5585 = vmatprep.subr.bf16.mxu0 %v4123
      %5586 = vmatpush1.bf16.msra.mxu0 %v4122
      %5587 = vmatprep.subr.bf16.mxu0 %v4131
      %5588 = vmatpush1.bf16.msra.mxu0 %v4130
      %5589 = vmatprep.subr.bf16.mxu0 %v4139
      %5590 = vmatpush1.bf16.msra.mxu0 %v4138
      %5591 = vmatprep.subr.bf16.mxu0 %v4147
      %5592 = vmatpush1.bf16.msra.mxu0 %v4146
      %5593 = vmatprep.subr.bf16.mxu0 %v4295
      %5594 = vmatpush1.bf16.msra.mxu0 %v4294
      %5595 = vmatprep.subr.bf16.mxu0 %v4303
      %5596 = vmatpush1.bf16.msra.mxu0 %v4302
      %5597 = vmatprep.subr.bf16.mxu0 %v4311
      %5598 = vmatpush1.bf16.msra.mxu0 %v4310
      %5599 = vmatprep.subr.bf16.mxu0 %v4319
      %5600 = vmatpush1.bf16.msra.mxu0 %v4318
      %5601 = vmatprep.mubr.bf16.mxu0 %v5190
      %5602 = vmatmul.mubr.bf16.gmra.mrb[0].mxu0 %v5176
      %v5603 = vpop.f32.mrb[0].mxu0
      %v5604 = vadd.f32 %v5152, %v5603
      %v5605 = vpop.f32.mrb[0].mxu0
      %v5606 = vadd.f32 %v5152, %v5605
      %v5607 = vpop.f32.mrb[0].mxu0
      %v5608 = vpop.f32.mrb[0].mxu0
      %5609 = vdwg.mxu0
      %5610 = vmatprep.subr.bf16.mxu0 %v4431
      %5611 = vmatpush1.bf16.msra.mxu0 %v4430
      %5612 = vmatprep.subr.bf16.mxu0 %v4439
      %5613 = vmatpush1.bf16.msra.mxu0 %v4438
      %5614 = vmatprep.subr.bf16.mxu0 %v4447
      %5615 = vmatpush1.bf16.msra.mxu0 %v4446
      %5616 = vmatprep.subr.bf16.mxu0 %v4455
      %5617 = vmatpush1.bf16.msra.mxu0 %v4454
      %5618 = vmatprep.subr.bf16.mxu0 %v4603
      %5619 = vmatpush1.bf16.msra.mxu0 %v4602
      %5620 = vmatprep.subr.bf16.mxu0 %v4611
      %5621 = vmatpush1.bf16.msra.mxu0 %v4610
      %5622 = vmatprep.subr.bf16.mxu0 %v4619
      %5623 = vmatpush1.bf16.msra.mxu0 %v4618
      %5624 = vmatprep.subr.bf16.mxu0 %v4627
      %5625 = vmatpush1.bf16.msra.mxu0 %v4626
      %5626 = vmatprep.subr.bf16.mxu0 %v4775
      %5627 = vmatpush1.bf16.msra.mxu0 %v4774
      %5628 = vmatprep.subr.bf16.mxu0 %v4783
      %5629 = vmatpush1.bf16.msra.mxu0 %v4782
      %5630 = vmatprep.subr.bf16.mxu0 %v4791
      %5631 = vmatpush1.bf16.msra.mxu0 %v4790
      %5632 = vmatprep.subr.bf16.mxu0 %v4799
      %5633 = vmatpush1.bf16.msra.mxu0 %v4798
      %5634 = vmatprep.subr.bf16.mxu0 %v4912
      %5635 = vmatpush1.bf16.msra.mxu0 %v4911
      %5636 = vmatprep.subr.bf16.mxu0 %v4920
      %5637 = vmatpush1.bf16.msra.mxu0 %v4919
      %5638 = vmatprep.subr.bf16.mxu0 %v4928
      %5639 = vmatpush1.bf16.msra.mxu0 %v4927
      %5640 = vmatprep.subr.bf16.mxu0 %v4936
      %5641 = vmatpush1.bf16.msra.mxu0 %v4935
      %5642 = vmatprep.mubr.bf16.mxu0 %v5192
      %5643 = vmatmul.mubr.bf16.gmra.mrb[0].mxu0 %v5191
      %v5644 = vpop.f32.mrb[0].mxu0
      %v5645 = vadd.f32 %v5604, %v5644
      %v5646 = vpop.f32.mrb[0].mxu0
      %v5647 = vadd.f32 %v5606, %v5646
      %v5648 = vpop.f32.mrb[0].mxu0
      %v5649 = vpop.f32.mrb[0].mxu0
      %5650 = vdwg.mxu0
      %5651 = vmatprep.subr.bf16.mxu0 %v5085
      %5652 = vmatpush1.bf16.msra.mxu0 %v5084
      %5653 = vmatprep.subr.bf16.mxu0 %v5093
      %5654 = vmatpush1.bf16.msra.mxu0 %v5092
      %5655 = vmatprep.subr.bf16.mxu0 %v5101
      %5656 = vmatpush1.bf16.msra.mxu0 %v5100
      %5657 = vmatprep.subr.bf16.mxu0 %v5109
      %5658 = vmatpush1.bf16.msra.mxu0 %v5108
      %5659 = vmatprep.subr.bf16.mxu0 0
      %5660 = vmatpush1.bf16.msra.mxu0 0
      %5661 = vmatprep.subr.bf16.mxu0 0
      %5662 = vmatpush1.bf16.msra.mxu0 0
      %5663 = vmatprep.subr.bf16.mxu0 0
      %5664 = vmatpush1.bf16.msra.mxu0 0
      %5665 = vmatprep.subr.bf16.mxu0 0
      %5666 = vmatpush1.bf16.msra.mxu0 0
      %5667 = vmatprep.subr.bf16.mxu0 0
      %5668 = vmatpush1.bf16.msra.mxu0 0
      %5669 = vmatprep.subr.bf16.mxu0 0
      %5670 = vmatpush1.bf16.msra.mxu0 0
      %5671 = vmatprep.subr.bf16.mxu0 0
      %5672 = vmatpush1.bf16.msra.mxu0 0
      %5673 = vmatprep.subr.bf16.mxu0 0
      %5674 = vmatpush1.bf16.msra.mxu0 0
      %5675 = vmatprep.subr.bf16.mxu0 0
      %5676 = vmatpush1.bf16.msra.mxu0 0
      %5677 = vmatprep.subr.bf16.mxu0 0
      %5678 = vmatpush1.bf16.msra.mxu0 0
      %5679 = vmatprep.subr.bf16.mxu0 0
      %5680 = vmatpush1.bf16.msra.mxu0 0
      %5681 = vmatprep.subr.bf16.mxu0 0
      %5682 = vmatpush1.bf16.msra.mxu0 0
      %5683 = vmatprep.mubr.bf16.mxu0 0
      %5684 = vmatmul.mubr.bf16.gmra.mrb[0].mxu0 %v5198
      %v5685 = vpop.f32.mrb[0].mxu0
      %v5686 = vadd.f32 %v5645, %v5685
      %v5687 = vpop.f32.mrb[0].mxu0
      %v5688 = vadd.f32 %v5647, %v5687
      %v5689 = vpop.f32.mrb[0].mxu0
      %v5690 = vpop.f32.mrb[0].mxu0
      %5691 = vdwg.mxu0
      %v5692 = vmul.f32 %v5317, 0.5
      %v5693 = vmul.f32 %v5319, 0.5
      %v5694 = vmul.f32 %v5440, 0.5
      %v5695 = vmul.f32 %v5442, 0.5
      %v5696 = vmul.f32 %v5563, 0.5
      %v5697 = vmul.f32 %v5565, 0.5
      %v5698 = vmul.f32 %v5686, 0.5
      %v5699 = vmul.f32 %v5688, 0.5
      %v5700 = vtanh.pop %v5692
      %v5701 = vtanh.pop %v5693
      %v5702 = vtanh.pop %v5694
      %v5703 = vtanh.pop %v5695
      %v5704 = vtanh.pop %v5696
      %v5705 = vtanh.pop %v5697
      %v5706 = vtanh.pop %v5698
      %v5707 = vtanh.pop %v5699
      %v5708 = vadd.f32 %v5700, 1.0
      %v5709 = vadd.f32 %v5701, 1.0
      %v5710 = vadd.f32 %v5702, 1.0
      %v5711 = vadd.f32 %v5703, 1.0
      %v5712 = vadd.f32 %v5704, 1.0
      %v5713 = vadd.f32 %v5705, 1.0
      %v5714 = vadd.f32 %v5706, 1.0
      %v5715 = vadd.f32 %v5707, 1.0
      %v5716 = vmul.f32 %v5708, 0.5
      %v5717 = vmul.f32 %v5709, 0.5
      %v5718 = vmul.f32 %v5710, 0.5
      %v5719 = vmul.f32 %v5711, 0.5
      %v5720 = vmul.f32 %v5712, 0.5
      %v5721 = vmul.f32 %v5713, 0.5
      %v5722 = vmul.f32 %v5714, 0.5
      %v5723 = vmul.f32 %v5715, 0.5
      %v5732 = vcombine.low %v5716, %v5717
      %v5733 = vcombine.low %v5718, %v5719
      %v5734 = vcombine.low %v5720, %v5721
      %v5735 = vcombine.low %v5722, %v5723
      %v5737 = vunpack.c.l.s4 1966171168
      %v5738 = vunpack.c.0.s8 %v5737
      %v5739 = vlaneseq
      %v5740 = vshrl.u32 %v5739, 7
      %v5741 = vsub.s32 %v5738, %v5740
      %v5742 = vrot.slane %v5732, %v5741
      %v5744 = vunpack.c.l.s4 1966171168
      %v5745 = vunpack.c.0.s8 %v5744
      %v5746 = vlaneseq
      %v5747 = vshrl.u32 %v5746, 7
      %v5748 = vsub.s32 %v5745, %v5747
      %v5749 = vrot.slane %v5733, %v5748
      %v5751 = vunpack.c.l.s4 1966171168
      %v5752 = vunpack.c.0.s8 %v5751
      %v5753 = vlaneseq
      %v5754 = vshrl.u32 %v5753, 7
      %v5755 = vsub.s32 %v5752, %v5754
      %v5756 = vrot.slane %v5734, %v5755
      %v5758 = vunpack.c.l.s4 1966171168
      %v5759 = vunpack.c.0.s8 %v5758
      %v5760 = vlaneseq
      %v5761 = vshrl.u32 %v5760, 7
      %v5762 = vsub.s32 %v5759, %v5761
      %v5763 = vrot.slane %v5735, %v5762
      %v5764 = vcombine.low %v5742, %v5749
      %v5765 = vcombine.low %v5756, %v5763
      %v5767 = vunpack.c.l.s4 1966171168
      %v5768 = vunpack.c.0.s8 %v5767
      %v5769 = vlaneseq
      %v5770 = vshrl.u32 %v5769, 7
      %v5771 = vsub.s32 %v5768, %v5770
      %v5772 = vrot.slane %v5764, %v5771
      %v5774 = vunpack.c.l.s4 1966171168
      %v5775 = vunpack.c.0.s8 %v5774
      %v5776 = vlaneseq
      %v5777 = vshrl.u32 %v5776, 7
      %v5778 = vsub.s32 %v5775, %v5777
      %v5779 = vrot.slane %v5765, %v5778
      %v5780 = vcombine.low %v5772, %v5779
      %5782 = vst [vmem:[%s332] sm:$0xff] %v5780
      %p5783 = scmp.lt.s32.totalorder %s22, 1
      %s5784 = scalar_select %p5783, %s22, 1
      %s5785 = smul.addr %s5784, 8
      %s5786 = scalar_lea.vmem %s9, %s5785
      // Predicated region
      $region57: #{decode_module_forward.1} parent=55 // pred_check
        %p5787 = pneg %p234
      $region58: #{decode_module_forward.1} parent=55 // pred_check_branch
        %5789 = sbr.rel (%p5787) target = $region60
      $region59: #{decode_module_forward.1} parent=55 // pred_region
        _
      $region60: #{decode_module_forward.1} parent=55 // pred_fallthru
        _
    $region56: #{decode_module_forward.1} parent=5 // pred_fallthru
      _
    %p5790 = scmp.le.s32.totalorder 2, %s17
    // Predicated region
    $region61: #{decode_module_forward.1} parent=5 // pred_check
      %p5791 = pneg %p5790
    $region62: #{decode_module_forward.1} parent=5 // pred_check_branch
      %5793 = sbr.rel (%p5791) target = $region64
    $region63: #{decode_module_forward.1} parent=5 // pred_region
      %s5794 = ssub.s32 %s17, 2
      // Predicated region
      $region65: #{decode_module_forward.1} parent=63 // pred_check
        %p5795 = pneg %p240
      $region66: #{decode_module_forward.1} parent=63 // pred_check_branch
        %5797 = sbr.rel (%p5795) target = $region68
      $region67: #{decode_module_forward.1} parent=63 // pred_region
        %p5798 = scmp.lt.s32.totalorder %s23, 1
        %s5799 = scalar_select %p5798, %s23, 1
        %s5800 = smul.addr %s5799, 8
        %s5801 = scalar_lea.vmem %s9, %s5800
      $region68: #{decode_module_forward.1} parent=63 // pred_fallthru
        _
    $region64: #{decode_module_forward.1} parent=5 // pred_fallthru
      _
  $region6: #{decode_module_forward.1} parent=0 // loop_footer
    %s21 = sadd.s32 1, %s17
  $region7: #{decode_module_forward.1} parent=0 // loop_footer_branch
    %16 = sbr.rel target = $region3
  $region8: #{decode_module_forward.1} parent=0 // loop_exit
    _

</llo_original>
